<compile_context>
chip_gen: v6e
topology: v6e:2x2x1
jax: 0.10.0
libtpu: 0.0.40
codegen_flags: <defaults>
</compile_context>

<pallas_src>
import math

import jax
import jax.numpy as jnp
from jax.experimental import pallas as pl
from jax.experimental.pallas import tpu as pltpu

# ---------------- model hyperparameters (small, consistent with the module) ---
SEQ = 8        # sequence length
BATCH = 2      # batch size
D_MODEL = 32   # d_model
NHEAD = 4      # number of attention heads
D_HEAD = D_MODEL // NHEAD
D_FF = 64      # dim_feedforward
NUM_LAYERS = 2
LN_EPS = 1e-5

N_TOKENS = BATCH * SEQ
VEC_ROWS = 8    # b_in, b_out, b1, b2, g1, beta1, g2, beta2
VEC_W = 128     # lane-padded row width (>= 3*D_MODEL)


# ------------------------------ Pallas kernel ---------------------------------
def _layer_norm(y, gamma, beta):
    mu = jnp.mean(y, axis=-1, keepdims=True)
    var = jnp.mean(jnp.square(y - mu), axis=-1, keepdims=True)
    return (y - mu) * jax.lax.rsqrt(var + LN_EPS) * gamma + beta


def _layer_forward(x2, w_in, b_in, w_out, b_out, w1, b1, w2, b2,
                   g1, beta1, g2, beta2):
    """One decoder layer on 2-D token-major activations x2: (B*S, D), float32.

    Weight layouts (pre-transposed on host):
      w_in  (D, 3D), w_out (D, D) [= W_out^T], w1 (D, Dff), w2 (Dff, D)
      biases / LN params are (1, N) rows.
    """
    D, H, Dh, B, S = D_MODEL, NHEAD, D_HEAD, BATCH, SEQ

    # --- QKV projection (no in-kernel transpose) ---
    qkv = jnp.dot(x2, w_in, preferred_element_type=jnp.float32) + b_in   # (B*S, 3D)
    q = qkv[:, 0 * D:1 * D].reshape(B, S, D)
    k = qkv[:, 1 * D:2 * D].reshape(B, S, D)
    v = qkv[:, 2 * D:3 * D].reshape(B, S, D)

    # --- fold heads into the (major) batch axis: (H*B, S, Dh) ---
    qh = jnp.concatenate([q[:, :, h * Dh:(h + 1) * Dh] for h in range(H)], axis=0)
    kh = jnp.concatenate([k[:, :, h * Dh:(h + 1) * Dh] for h in range(H)], axis=0)
    vh = jnp.concatenate([v[:, :, h * Dh:(h + 1) * Dh] for h in range(H)], axis=0)

    # --- scaled dot-product attention, batched over (head, batch) ---
    scale = 1.0 / math.sqrt(Dh)
    s = jnp.einsum('bqd,bkd->bqk', qh, kh,
                   preferred_element_type=jnp.float32) * scale           # (H*B, S, S)
    s = s - jnp.max(s, axis=-1, keepdims=True)
    p = jnp.exp(s)
    p = p * pl.reciprocal(jnp.sum(p, axis=-1, keepdims=True), approx=True)
    o = jnp.einsum('bqk,bkd->bqd', p, vh,
                   preferred_element_type=jnp.float32)                   # (H*B, S, Dh)

    # --- output projection, folded per head (no scratch, no minor-dim concat) ---
    attn = b_out                                                          # (1, D)
    for h in range(H):
        o_h = o[h * B:(h + 1) * B].reshape(B * S, Dh)                     # (B*S, Dh)
        attn = attn + jnp.dot(o_h, w_out[h * Dh:(h + 1) * Dh, :],
                              preferred_element_type=jnp.float32)

    # --- residual + LayerNorm 1 (post-norm) ---
    y = _layer_norm(x2 + attn, g1, beta1)

    # --- feed-forward (relu) + residual + LayerNorm 2 ---
    hdn = jnp.maximum(jnp.dot(y, w1, preferred_element_type=jnp.float32) + b1, 0.0)
    ff = jnp.dot(hdn, w2, preferred_element_type=jnp.float32) + b2
    return _layer_norm(y + ff, g2, beta2)


def fused_transformer_kernel(x_ref, w_in_ref, w_out_ref, w1_ref, w2_ref,
                             vec_ref, o_ref):
    """All operands resident in VMEM.

    x_ref    : (B*S, D)
    w_in_ref : (L, D, 3D)    w_out_ref : (L, D, D)
    w1_ref   : (L, D, Dff)   w2_ref    : (L, Dff, D)
    vec_ref  : (L, 8, 128)   rows = b_in, b_out, b1, b2, g1, beta1, g2, beta2
    """
    D = D_MODEL
    y = x_ref[...].astype(jnp.float32)                                    # (B*S, D)
    for layer in range(NUM_LAYERS):
        w_in = w_in_ref[layer]
        w_out = w_out_ref[layer]
        w1 = w1_ref[layer]
        w2 = w2_ref[layer]
        vec = vec_ref[layer]                                              # (8, 128)
        b_in = vec[0:1, 0:3 * D]
        b_out = vec[1:2, 0:D]
        b1 = vec[2:3, 0:D_FF]
        b2 = vec[3:4, 0:D]
        g1 = vec[4:5, 0:D]
        beta1 = vec[5:6, 0:D]
        g2 = vec[6:7, 0:D]
        beta2 = vec[7:8, 0:D]
        y = _layer_forward(y, w_in, b_in, w_out, b_out, w1, b1, w2, b2,
                           g1, beta1, g2, beta2)
    o_ref[...] = y.astype(o_ref.dtype)


# ------------------------------ wrapper ----------------------------------------
def pack_kernel_params(all_params):
    """Pre-transpose + stack all layer params once, host side (kernel layout)."""
    w_in = jnp.stack([jnp.asarray(p["w_in"].T) for p in all_params])      # (L, D, 3D)
    w_out = jnp.stack([jnp.asarray(p["w_out"].T) for p in all_params])    # (L, D, D)
    w1 = jnp.stack([jnp.asarray(p["w1"].T) for p in all_params])          # (L, D, Dff)
    w2 = jnp.stack([jnp.asarray(p["w2"].T) for p in all_params])          # (L, Dff, D)

    def _row(v):
        return jnp.pad(v, (0, VEC_W - v.shape[0]))

    vec = jnp.stack([
        jnp.stack([_row(p["b_in"]), _row(p["b_out"]), _row(p["b1"]), _row(p["b2"]),
                   _row(p["g1"]), _row(p["beta1"]), _row(p["g2"]), _row(p["beta2"])])
        for p in all_params])                                              # (L, 8, 128)
    return (w_in, w_out, w1, w2, vec)


@jax.jit
def decoder_only_transformer(x, packed):
    """x: (S, B, D) — batch_first=False, like the PyTorch module."""
    w_in, w_out, w1, w2, vec = packed
    # token-major 2-D layout for the kernel (layout plumbing stays in the wrapper)
    x2 = jnp.transpose(x, (1, 0, 2)).reshape(N_TOKENS, D_MODEL)
    vmem = pl.BlockSpec(memory_space=pltpu.MemorySpace.VMEM)
    out2 = pl.pallas_call(
        fused_transformer_kernel,
        out_shape=jax.ShapeDtypeStruct((N_TOKENS, D_MODEL), x.dtype),
        in_specs=[vmem] * 6,
        out_specs=vmem,
    )(x2, w_in, w_out, w1, w2, vec)
    return jnp.transpose(out2.reshape(BATCH, SEQ, D_MODEL), (1, 0, 2))


# ------------------------ pure-JAX reference (for checking) -------------------
def reference_layer(x, p):
    S, B, D = x.shape
    H, Dh = NHEAD, D_HEAD
    xt = x.reshape(S * B, D)
    qkv = xt @ p["w_in"].T + p["b_in"]
    q = qkv[:, :D].reshape(S, B, H, Dh)
    k = qkv[:, D:2 * D].reshape(S, B, H, Dh)
    v = qkv[:, 2 * D:].reshape(S, B, H, Dh)
    s = jnp.einsum("sbhd,tbhd->bhst", q, k) / math.sqrt(Dh)
    pw = jax.nn.softmax(s, axis=-1)
    ao = jnp.einsum("bhst,tbhd->sbhd", pw, v).reshape(S, B, D)
    attn = (ao.reshape(S * B, D) @ p["w_out"].T + p["b_out"]).reshape(S, B, D)
    y = x + attn
    mu = jnp.mean(y, -1, keepdims=True)
    var = jnp.mean((y - mu) ** 2, -1, keepdims=True)
    y = (y - mu) / jnp.sqrt(var + LN_EPS) * p["g1"] + p["beta1"]
    h = jax.nn.relu(y.reshape(S * B, D) @ p["w1"].T + p["b1"])
    ff = (h @ p["w2"].T + p["b2"]).reshape(S, B, D)
    z = y + ff
    mu2 = jnp.mean(z, -1, keepdims=True)
    var2 = jnp.mean((z - mu2) ** 2, -1, keepdims=True)
    return (z - mu2) / jnp.sqrt(var2 + LN_EPS) * p["g2"] + p["beta2"]


def reference_model(x, all_params):
    out = x
    for p in all_params:
        out = reference_layer(out, p)
    return out


# ------------------------------ parameter init --------------------------------
def init_layer_params(key):
    ks = jax.random.split(key, 6)

    def xavier(k, shape):
        fan_out, fan_in = shape
        bound = math.sqrt(6.0 / (fan_in + fan_out))
        return jax.random.uniform(k, shape, jnp.float32, -bound, bound)

    return {
        "w_in":  xavier(ks[0], (3 * D_MODEL, D_MODEL)),
        "b_in":  jnp.zeros((3 * D_MODEL,), jnp.float32),
        "w_out": xavier(ks[1], (D_MODEL, D_MODEL)),
        "b_out": jnp.zeros((D_MODEL,), jnp.float32),
        "w1":    xavier(ks[2], (D_FF, D_MODEL)),
        "b1":    0.01 * jax.random.normal(ks[3], (D_FF,), jnp.float32),
        "w2":    xavier(ks[4], (D_MODEL, D_FF)),
        "b2":    0.01 * jax.random.normal(ks[5], (D_MODEL,), jnp.float32),
        "g1":    jnp.ones((D_MODEL,), jnp.float32),
        "beta1": jnp.zeros((D_MODEL,), jnp.float32),
        "g2":    jnp.ones((D_MODEL,), jnp.float32),
        "beta2": jnp.zeros((D_MODEL,), jnp.float32),
    }


if __name__ == "__main__":
    root = jax.random.PRNGKey(0)
    kx, kp = jax.random.split(root)

    # input: (seq, batch, d_model) — batch_first=False convention
    x = jax.random.normal(kx, (SEQ, BATCH, D_MODEL), jnp.float32)

    layer_keys = jax.random.split(kp, NUM_LAYERS)
    all_params = [init_layer_params(k) for k in layer_keys]
    packed = pack_kernel_params(all_params)           # host-side, once

    out = decoder_only_transformer(x, packed)
    out = jax.block_until_ready(out)

    ref = reference_model(x, all_params)
    assert out.shape == (SEQ, BATCH, D_MODEL)
    # tolerance loosened slightly (5e-3) because the kernel uses the EUP
    # approximate reciprocal for the softmax normalization.
    assert jnp.allclose(out, ref, rtol=5e-3, atol=5e-3), "mismatch vs reference"

    print("KERNEL_OK")
</pallas_src>

<mosaic_0001>
module attributes {stable_mosaic.version = 11 : i64} {
  func.func @fused_transformer_kernel(%arg0: memref<16x32xf32, #tpu.memory_space<vmem>>, %arg1: memref<2x32x96xf32, #tpu.memory_space<vmem>>, %arg2: memref<2x32x32xf32, #tpu.memory_space<vmem>>, %arg3: memref<2x32x64xf32, #tpu.memory_space<vmem>>, %arg4: memref<2x64x32xf32, #tpu.memory_space<vmem>>, %arg5: memref<2x8x128xf32, #tpu.memory_space<vmem>>, %arg6: memref<16x32xf32, #tpu.memory_space<vmem>>) attributes {dimension_semantics = [], scalar_prefetch = 0 : i64, scratch_operands = 0 : i64, tpu.core_type = #tpu.core_type<tc>} {
    %c0 = arith.constant 0 : index
    %c0_0 = arith.constant 0 : index
    %0 = vector.load %arg0[%c0, %c0_0] : memref<16x32xf32, #tpu.memory_space<vmem>>, vector<16x32xf32>
    %c0_1 = arith.constant 0 : index
    %c0_2 = arith.constant 0 : index
    %c0_3 = arith.constant 0 : index
    %1 = vector.load %arg1[%c0_1, %c0_2, %c0_3] : memref<2x32x96xf32, #tpu.memory_space<vmem>>, vector<1x32x96xf32>
    %2 = vector.shape_cast %1 : vector<1x32x96xf32> to vector<32x96xf32>
    %c0_4 = arith.constant 0 : index
    %c0_5 = arith.constant 0 : index
    %c0_6 = arith.constant 0 : index
    %3 = vector.load %arg2[%c0_4, %c0_5, %c0_6] : memref<2x32x32xf32, #tpu.memory_space<vmem>>, vector<1x32x32xf32>
    %4 = vector.shape_cast %3 : vector<1x32x32xf32> to vector<32x32xf32>
    %c0_7 = arith.constant 0 : index
    %c0_8 = arith.constant 0 : index
    %c0_9 = arith.constant 0 : index
    %5 = vector.load %arg3[%c0_7, %c0_8, %c0_9] : memref<2x32x64xf32, #tpu.memory_space<vmem>>, vector<1x32x64xf32>
    %6 = vector.shape_cast %5 : vector<1x32x64xf32> to vector<32x64xf32>
    %c0_10 = arith.constant 0 : index
    %c0_11 = arith.constant 0 : index
    %c0_12 = arith.constant 0 : index
    %7 = vector.load %arg4[%c0_10, %c0_11, %c0_12] : memref<2x64x32xf32, #tpu.memory_space<vmem>>, vector<1x64x32xf32>
    %8 = vector.shape_cast %7 : vector<1x64x32xf32> to vector<64x32xf32>
    %c0_13 = arith.constant 0 : index
    %c0_14 = arith.constant 0 : index
    %c0_15 = arith.constant 0 : index
    %9 = vector.load %arg5[%c0_13, %c0_14, %c0_15] : memref<2x8x128xf32, #tpu.memory_space<vmem>>, vector<1x8x128xf32>
    %10 = vector.shape_cast %9 : vector<1x8x128xf32> to vector<8x128xf32>
    %11 = vector.extract_strided_slice %10 {offsets = [0, 0], sizes = [1, 96], strides = [1, 1]} : vector<8x128xf32> to vector<1x96xf32>
    %12 = vector.extract_strided_slice %10 {offsets = [1, 0], sizes = [1, 32], strides = [1, 1]} : vector<8x128xf32> to vector<1x32xf32>
    %13 = vector.extract_strided_slice %10 {offsets = [2, 0], sizes = [1, 64], strides = [1, 1]} : vector<8x128xf32> to vector<1x64xf32>
    %14 = vector.extract_strided_slice %10 {offsets = [3, 0], sizes = [1, 32], strides = [1, 1]} : vector<8x128xf32> to vector<1x32xf32>
    %15 = vector.extract_strided_slice %10 {offsets = [4, 0], sizes = [1, 32], strides = [1, 1]} : vector<8x128xf32> to vector<1x32xf32>
    %16 = vector.extract_strided_slice %10 {offsets = [5, 0], sizes = [1, 32], strides = [1, 1]} : vector<8x128xf32> to vector<1x32xf32>
    %17 = vector.extract_strided_slice %10 {offsets = [6, 0], sizes = [1, 32], strides = [1, 1]} : vector<8x128xf32> to vector<1x32xf32>
    %18 = vector.extract_strided_slice %10 {offsets = [7, 0], sizes = [1, 32], strides = [1, 1]} : vector<8x128xf32> to vector<1x32xf32>
    %cst = arith.constant dense<0.000000e+00> : vector<16x96xf32>
    %19 = tpu.matmul %0, %2, %cst {dimension_numbers = #tpu.dot_dimension_numbers<[1], [0], [0], [1], [0, 0, 1, 1], [], []>} : vector<16x32xf32>, vector<32x96xf32>, vector<16x96xf32> -> vector<16x96xf32>
    %20 = vector.broadcast %11 : vector<1x96xf32> to vector<16x96xf32>
    %21 = arith.addf %19, %20 : vector<16x96xf32>
    %22 = vector.extract_strided_slice %21 {offsets = [0, 0], sizes = [16, 32], strides = [1, 1]} : vector<16x96xf32> to vector<16x32xf32>
    %23 = vector.shape_cast %22 : vector<16x32xf32> to vector<2x8x32xf32>
    %24 = vector.extract_strided_slice %21 {offsets = [0, 32], sizes = [16, 32], strides = [1, 1]} : vector<16x96xf32> to vector<16x32xf32>
    %25 = vector.shape_cast %24 : vector<16x32xf32> to vector<2x8x32xf32>
    %26 = vector.extract_strided_slice %21 {offsets = [0, 64], sizes = [16, 32], strides = [1, 1]} : vector<16x96xf32> to vector<16x32xf32>
    %27 = vector.shape_cast %26 : vector<16x32xf32> to vector<2x8x32xf32>
    %28 = vector.extract_strided_slice %23 {offsets = [0, 0, 0], sizes = [2, 8, 8], strides = [1, 1, 1]} : vector<2x8x32xf32> to vector<2x8x8xf32>
    %29 = vector.extract_strided_slice %23 {offsets = [0, 0, 8], sizes = [2, 8, 8], strides = [1, 1, 1]} : vector<2x8x32xf32> to vector<2x8x8xf32>
    %30 = vector.extract_strided_slice %23 {offsets = [0, 0, 16], sizes = [2, 8, 8], strides = [1, 1, 1]} : vector<2x8x32xf32> to vector<2x8x8xf32>
    %31 = vector.extract_strided_slice %23 {offsets = [0, 0, 24], sizes = [2, 8, 8], strides = [1, 1, 1]} : vector<2x8x32xf32> to vector<2x8x8xf32>
    %32 = tpu.concatenate %28, %29, %30, %31 in 0 : vector<2x8x8xf32>, vector<2x8x8xf32>, vector<2x8x8xf32>, vector<2x8x8xf32> -> vector<8x8x8xf32>
    %33 = vector.extract_strided_slice %25 {offsets = [0, 0, 0], sizes = [2, 8, 8], strides = [1, 1, 1]} : vector<2x8x32xf32> to vector<2x8x8xf32>
    %34 = vector.extract_strided_slice %25 {offsets = [0, 0, 8], sizes = [2, 8, 8], strides = [1, 1, 1]} : vector<2x8x32xf32> to vector<2x8x8xf32>
    %35 = vector.extract_strided_slice %25 {offsets = [0, 0, 16], sizes = [2, 8, 8], strides = [1, 1, 1]} : vector<2x8x32xf32> to vector<2x8x8xf32>
    %36 = vector.extract_strided_slice %25 {offsets = [0, 0, 24], sizes = [2, 8, 8], strides = [1, 1, 1]} : vector<2x8x32xf32> to vector<2x8x8xf32>
    %37 = tpu.concatenate %33, %34, %35, %36 in 0 : vector<2x8x8xf32>, vector<2x8x8xf32>, vector<2x8x8xf32>, vector<2x8x8xf32> -> vector<8x8x8xf32>
    %38 = vector.extract_strided_slice %27 {offsets = [0, 0, 0], sizes = [2, 8, 8], strides = [1, 1, 1]} : vector<2x8x32xf32> to vector<2x8x8xf32>
    %39 = vector.extract_strided_slice %27 {offsets = [0, 0, 8], sizes = [2, 8, 8], strides = [1, 1, 1]} : vector<2x8x32xf32> to vector<2x8x8xf32>
    %40 = vector.extract_strided_slice %27 {offsets = [0, 0, 16], sizes = [2, 8, 8], strides = [1, 1, 1]} : vector<2x8x32xf32> to vector<2x8x8xf32>
    %41 = vector.extract_strided_slice %27 {offsets = [0, 0, 24], sizes = [2, 8, 8], strides = [1, 1, 1]} : vector<2x8x32xf32> to vector<2x8x8xf32>
    %42 = tpu.concatenate %38, %39, %40, %41 in 0 : vector<2x8x8xf32>, vector<2x8x8xf32>, vector<2x8x8xf32>, vector<2x8x8xf32> -> vector<8x8x8xf32>
    "tpu.trace_start"() <{level = 10 : i32, message = "bqd,bkd->bqk"}> : () -> ()
    %cst_16 = arith.constant dense<0.000000e+00> : vector<8x8x8xf32>
    %43 = tpu.matmul %32, %37, %cst_16 {dimension_numbers = #tpu.dot_dimension_numbers<[2], [2], [1], [1], [0, 0, 0, 1, 1, 1], [0], [0]>} : vector<8x8x8xf32>, vector<8x8x8xf32>, vector<8x8x8xf32> -> vector<8x8x8xf32>
    "tpu.trace_stop"() : () -> ()
    %cst_17 = arith.constant 0.353553385 : f32
    %44 = vector.broadcast %cst_17 : f32 to vector<8x8x8xf32>
    %45 = arith.mulf %43, %44 : vector<8x8x8xf32>
    %cst_18 = arith.constant dense<0xFF800000> : vector<8x8xf32>
    %46 = vector.multi_reduction <maximumf>, %45, %cst_18 [2] : vector<8x8x8xf32> to vector<8x8xf32>
    %47 = vector.shape_cast %46 : vector<8x8xf32> to vector<8x8x1xf32>
    %48 = vector.broadcast %47 : vector<8x8x1xf32> to vector<8x8x8xf32>
    %49 = arith.subf %45, %48 : vector<8x8x8xf32>
    %50 = math.exp %49 : vector<8x8x8xf32>
    %cst_19 = arith.constant dense<0.000000e+00> : vector<8x8xf32>
    %51 = vector.multi_reduction <add>, %50, %cst_19 [2] : vector<8x8x8xf32> to vector<8x8xf32>
    %52 = vector.shape_cast %51 : vector<8x8xf32> to vector<8x8x1xf32>
    %53 = tpu.reciprocal %52 {approx = true} : vector<8x8x1xf32> -> vector<8x8x1xf32>
    %54 = vector.broadcast %53 : vector<8x8x1xf32> to vector<8x8x8xf32>
    %55 = arith.mulf %50, %54 : vector<8x8x8xf32>
    "tpu.trace_start"() <{level = 10 : i32, message = "bqk,bkd->bqd"}> : () -> ()
    %cst_20 = arith.constant dense<0.000000e+00> : vector<8x8x8xf32>
    %56 = tpu.matmul %55, %42, %cst_20 {dimension_numbers = #tpu.dot_dimension_numbers<[2], [1], [1], [2], [0, 0, 0, 1, 1, 2], [0], [0]>} : vector<8x8x8xf32>, vector<8x8x8xf32>, vector<8x8x8xf32> -> vector<8x8x8xf32>
    "tpu.trace_stop"() : () -> ()
    %57 = vector.extract_strided_slice %56 {offsets = [0, 0, 0], sizes = [2, 8, 8], strides = [1, 1, 1]} : vector<8x8x8xf32> to vector<2x8x8xf32>
    %58 = vector.shape_cast %57 : vector<2x8x8xf32> to vector<16x8xf32>
    %59 = vector.extract_strided_slice %4 {offsets = [0, 0], sizes = [8, 32], strides = [1, 1]} : vector<32x32xf32> to vector<8x32xf32>
    %cst_21 = arith.constant dense<0.000000e+00> : vector<16x32xf32>
    %60 = tpu.matmul %58, %59, %cst_21 {dimension_numbers = #tpu.dot_dimension_numbers<[1], [0], [0], [1], [0, 0, 1, 1], [], []>} : vector<16x8xf32>, vector<8x32xf32>, vector<16x32xf32> -> vector<16x32xf32>
    %61 = vector.broadcast %12 : vector<1x32xf32> to vector<16x32xf32>
    %62 = arith.addf %61, %60 : vector<16x32xf32>
    %63 = vector.extract_strided_slice %56 {offsets = [2, 0, 0], sizes = [2, 8, 8], strides = [1, 1, 1]} : vector<8x8x8xf32> to vector<2x8x8xf32>
    %64 = vector.shape_cast %63 : vector<2x8x8xf32> to vector<16x8xf32>
    %65 = vector.extract_strided_slice %4 {offsets = [8, 0], sizes = [8, 32], strides = [1, 1]} : vector<32x32xf32> to vector<8x32xf32>
    %cst_22 = arith.constant dense<0.000000e+00> : vector<16x32xf32>
    %66 = tpu.matmul %64, %65, %cst_22 {dimension_numbers = #tpu.dot_dimension_numbers<[1], [0], [0], [1], [0, 0, 1, 1], [], []>} : vector<16x8xf32>, vector<8x32xf32>, vector<16x32xf32> -> vector<16x32xf32>
    %67 = arith.addf %62, %66 : vector<16x32xf32>
    %68 = vector.extract_strided_slice %56 {offsets = [4, 0, 0], sizes = [2, 8, 8], strides = [1, 1, 1]} : vector<8x8x8xf32> to vector<2x8x8xf32>
    %69 = vector.shape_cast %68 : vector<2x8x8xf32> to vector<16x8xf32>
    %70 = vector.extract_strided_slice %4 {offsets = [16, 0], sizes = [8, 32], strides = [1, 1]} : vector<32x32xf32> to vector<8x32xf32>
    %cst_23 = arith.constant dense<0.000000e+00> : vector<16x32xf32>
    %71 = tpu.matmul %69, %70, %cst_23 {dimension_numbers = #tpu.dot_dimension_numbers<[1], [0], [0], [1], [0, 0, 1, 1], [], []>} : vector<16x8xf32>, vector<8x32xf32>, vector<16x32xf32> -> vector<16x32xf32>
    %72 = arith.addf %67, %71 : vector<16x32xf32>
    %73 = vector.extract_strided_slice %56 {offsets = [6, 0, 0], sizes = [2, 8, 8], strides = [1, 1, 1]} : vector<8x8x8xf32> to vector<2x8x8xf32>
    %74 = vector.shape_cast %73 : vector<2x8x8xf32> to vector<16x8xf32>
    %75 = vector.extract_strided_slice %4 {offsets = [24, 0], sizes = [8, 32], strides = [1, 1]} : vector<32x32xf32> to vector<8x32xf32>
    %cst_24 = arith.constant dense<0.000000e+00> : vector<16x32xf32>
    %76 = tpu.matmul %74, %75, %cst_24 {dimension_numbers = #tpu.dot_dimension_numbers<[1], [0], [0], [1], [0, 0, 1, 1], [], []>} : vector<16x8xf32>, vector<8x32xf32>, vector<16x32xf32> -> vector<16x32xf32>
    %77 = arith.addf %72, %76 : vector<16x32xf32>
    %78 = arith.addf %0, %77 : vector<16x32xf32>
    %cst_25 = arith.constant dense<0.000000e+00> : vector<16xf32>
    %79 = vector.multi_reduction <add>, %78, %cst_25 [1] : vector<16x32xf32> to vector<16xf32>
    %80 = vector.shape_cast %79 : vector<16xf32> to vector<16x1xf32>
    %cst_26 = arith.constant 3.200000e+01 : f32
    %81 = vector.broadcast %cst_26 : f32 to vector<16x1xf32>
    %82 = arith.divf %80, %81 : vector<16x1xf32>
    %83 = vector.broadcast %82 : vector<16x1xf32> to vector<16x32xf32>
    %84 = arith.subf %78, %83 : vector<16x32xf32>
    %85 = arith.mulf %84, %84 : vector<16x32xf32>
    %cst_27 = arith.constant dense<0.000000e+00> : vector<16xf32>
    %86 = vector.multi_reduction <add>, %85, %cst_27 [1] : vector<16x32xf32> to vector<16xf32>
    %87 = vector.shape_cast %86 : vector<16xf32> to vector<16x1xf32>
    %cst_28 = arith.constant 3.200000e+01 : f32
    %88 = vector.broadcast %cst_28 : f32 to vector<16x1xf32>
    %89 = arith.divf %87, %88 : vector<16x1xf32>
    %90 = vector.broadcast %82 : vector<16x1xf32> to vector<16x32xf32>
    %91 = arith.subf %78, %90 : vector<16x32xf32>
    %cst_29 = arith.constant 9.99999974E-6 : f32
    %92 = vector.broadcast %cst_29 : f32 to vector<16x1xf32>
    %93 = arith.addf %89, %92 : vector<16x1xf32>
    %94 = math.rsqrt %93 : vector<16x1xf32>
    %95 = vector.broadcast %94 : vector<16x1xf32> to vector<16x32xf32>
    %96 = arith.mulf %91, %95 : vector<16x32xf32>
    %97 = vector.broadcast %15 : vector<1x32xf32> to vector<16x32xf32>
    %98 = arith.mulf %96, %97 : vector<16x32xf32>
    %99 = vector.broadcast %16 : vector<1x32xf32> to vector<16x32xf32>
    %100 = arith.addf %98, %99 : vector<16x32xf32>
    %cst_30 = arith.constant dense<0.000000e+00> : vector<16x64xf32>
    %101 = tpu.matmul %100, %6, %cst_30 {dimension_numbers = #tpu.dot_dimension_numbers<[1], [0], [0], [1], [0, 0, 1, 1], [], []>} : vector<16x32xf32>, vector<32x64xf32>, vector<16x64xf32> -> vector<16x64xf32>
    %102 = vector.broadcast %13 : vector<1x64xf32> to vector<16x64xf32>
    %103 = arith.addf %101, %102 : vector<16x64xf32>
    %cst_31 = arith.constant 0.000000e+00 : f32
    %104 = vector.broadcast %cst_31 : f32 to vector<16x64xf32>
    %105 = arith.maximumf %103, %104 : vector<16x64xf32>
    %cst_32 = arith.constant dense<0.000000e+00> : vector<16x32xf32>
    %106 = tpu.matmul %105, %8, %cst_32 {dimension_numbers = #tpu.dot_dimension_numbers<[1], [0], [0], [1], [0, 0, 1, 1], [], []>} : vector<16x64xf32>, vector<64x32xf32>, vector<16x32xf32> -> vector<16x32xf32>
    %107 = vector.broadcast %14 : vector<1x32xf32> to vector<16x32xf32>
    %108 = arith.addf %106, %107 : vector<16x32xf32>
    %109 = arith.addf %100, %108 : vector<16x32xf32>
    %cst_33 = arith.constant dense<0.000000e+00> : vector<16xf32>
    %110 = vector.multi_reduction <add>, %109, %cst_33 [1] : vector<16x32xf32> to vector<16xf32>
    %111 = vector.shape_cast %110 : vector<16xf32> to vector<16x1xf32>
    %cst_34 = arith.constant 3.200000e+01 : f32
    %112 = vector.broadcast %cst_34 : f32 to vector<16x1xf32>
    %113 = arith.divf %111, %112 : vector<16x1xf32>
    %114 = vector.broadcast %113 : vector<16x1xf32> to vector<16x32xf32>
    %115 = arith.subf %109, %114 : vector<16x32xf32>
    %116 = arith.mulf %115, %115 : vector<16x32xf32>
    %cst_35 = arith.constant dense<0.000000e+00> : vector<16xf32>
    %117 = vector.multi_reduction <add>, %116, %cst_35 [1] : vector<16x32xf32> to vector<16xf32>
    %118 = vector.shape_cast %117 : vector<16xf32> to vector<16x1xf32>
    %cst_36 = arith.constant 3.200000e+01 : f32
    %119 = vector.broadcast %cst_36 : f32 to vector<16x1xf32>
    %120 = arith.divf %118, %119 : vector<16x1xf32>
    %121 = vector.broadcast %113 : vector<16x1xf32> to vector<16x32xf32>
    %122 = arith.subf %109, %121 : vector<16x32xf32>
    %cst_37 = arith.constant 9.99999974E-6 : f32
    %123 = vector.broadcast %cst_37 : f32 to vector<16x1xf32>
    %124 = arith.addf %120, %123 : vector<16x1xf32>
    %125 = math.rsqrt %124 : vector<16x1xf32>
    %126 = vector.broadcast %125 : vector<16x1xf32> to vector<16x32xf32>
    %127 = arith.mulf %122, %126 : vector<16x32xf32>
    %128 = vector.broadcast %17 : vector<1x32xf32> to vector<16x32xf32>
    %129 = arith.mulf %127, %128 : vector<16x32xf32>
    %130 = vector.broadcast %18 : vector<1x32xf32> to vector<16x32xf32>
    %131 = arith.addf %129, %130 : vector<16x32xf32>
    %c1 = arith.constant 1 : index
    %c0_38 = arith.constant 0 : index
    %c0_39 = arith.constant 0 : index
    %132 = vector.load %arg1[%c1, %c0_38, %c0_39] : memref<2x32x96xf32, #tpu.memory_space<vmem>>, vector<1x32x96xf32>
    %133 = vector.shape_cast %132 : vector<1x32x96xf32> to vector<32x96xf32>
    %c1_40 = arith.constant 1 : index
    %c0_41 = arith.constant 0 : index
    %c0_42 = arith.constant 0 : index
    %134 = vector.load %arg2[%c1_40, %c0_41, %c0_42] : memref<2x32x32xf32, #tpu.memory_space<vmem>>, vector<1x32x32xf32>
    %135 = vector.shape_cast %134 : vector<1x32x32xf32> to vector<32x32xf32>
    %c1_43 = arith.constant 1 : index
    %c0_44 = arith.constant 0 : index
    %c0_45 = arith.constant 0 : index
    %136 = vector.load %arg3[%c1_43, %c0_44, %c0_45] : memref<2x32x64xf32, #tpu.memory_space<vmem>>, vector<1x32x64xf32>
    %137 = vector.shape_cast %136 : vector<1x32x64xf32> to vector<32x64xf32>
    %c1_46 = arith.constant 1 : index
    %c0_47 = arith.constant 0 : index
    %c0_48 = arith.constant 0 : index
    %138 = vector.load %arg4[%c1_46, %c0_47, %c0_48] : memref<2x64x32xf32, #tpu.memory_space<vmem>>, vector<1x64x32xf32>
    %139 = vector.shape_cast %138 : vector<1x64x32xf32> to vector<64x32xf32>
    %c1_49 = arith.constant 1 : index
    %c0_50 = arith.constant 0 : index
    %c0_51 = arith.constant 0 : index
    %140 = vector.load %arg5[%c1_49, %c0_50, %c0_51] : memref<2x8x128xf32, #tpu.memory_space<vmem>>, vector<1x8x128xf32>
    %141 = vector.shape_cast %140 : vector<1x8x128xf32> to vector<8x128xf32>
    %142 = vector.extract_strided_slice %141 {offsets = [0, 0], sizes = [1, 96], strides = [1, 1]} : vector<8x128xf32> to vector<1x96xf32>
    %143 = vector.extract_strided_slice %141 {offsets = [1, 0], sizes = [1, 32], strides = [1, 1]} : vector<8x128xf32> to vector<1x32xf32>
    %144 = vector.extract_strided_slice %141 {offsets = [2, 0], sizes = [1, 64], strides = [1, 1]} : vector<8x128xf32> to vector<1x64xf32>
    %145 = vector.extract_strided_slice %141 {offsets = [3, 0], sizes = [1, 32], strides = [1, 1]} : vector<8x128xf32> to vector<1x32xf32>
    %146 = vector.extract_strided_slice %141 {offsets = [4, 0], sizes = [1, 32], strides = [1, 1]} : vector<8x128xf32> to vector<1x32xf32>
    %147 = vector.extract_strided_slice %141 {offsets = [5, 0], sizes = [1, 32], strides = [1, 1]} : vector<8x128xf32> to vector<1x32xf32>
    %148 = vector.extract_strided_slice %141 {offsets = [6, 0], sizes = [1, 32], strides = [1, 1]} : vector<8x128xf32> to vector<1x32xf32>
    %149 = vector.extract_strided_slice %141 {offsets = [7, 0], sizes = [1, 32], strides = [1, 1]} : vector<8x128xf32> to vector<1x32xf32>
    %cst_52 = arith.constant dense<0.000000e+00> : vector<16x96xf32>
    %150 = tpu.matmul %131, %133, %cst_52 {dimension_numbers = #tpu.dot_dimension_numbers<[1], [0], [0], [1], [0, 0, 1, 1], [], []>} : vector<16x32xf32>, vector<32x96xf32>, vector<16x96xf32> -> vector<16x96xf32>
    %151 = vector.broadcast %142 : vector<1x96xf32> to vector<16x96xf32>
    %152 = arith.addf %150, %151 : vector<16x96xf32>
    %153 = vector.extract_strided_slice %152 {offsets = [0, 0], sizes = [16, 32], strides = [1, 1]} : vector<16x96xf32> to vector<16x32xf32>
    %154 = vector.shape_cast %153 : vector<16x32xf32> to vector<2x8x32xf32>
    %155 = vector.extract_strided_slice %152 {offsets = [0, 32], sizes = [16, 32], strides = [1, 1]} : vector<16x96xf32> to vector<16x32xf32>
    %156 = vector.shape_cast %155 : vector<16x32xf32> to vector<2x8x32xf32>
    %157 = vector.extract_strided_slice %152 {offsets = [0, 64], sizes = [16, 32], strides = [1, 1]} : vector<16x96xf32> to vector<16x32xf32>
    %158 = vector.shape_cast %157 : vector<16x32xf32> to vector<2x8x32xf32>
    %159 = vector.extract_strided_slice %154 {offsets = [0, 0, 0], sizes = [2, 8, 8], strides = [1, 1, 1]} : vector<2x8x32xf32> to vector<2x8x8xf32>
    %160 = vector.extract_strided_slice %154 {offsets = [0, 0, 8], sizes = [2, 8, 8], strides = [1, 1, 1]} : vector<2x8x32xf32> to vector<2x8x8xf32>
    %161 = vector.extract_strided_slice %154 {offsets = [0, 0, 16], sizes = [2, 8, 8], strides = [1, 1, 1]} : vector<2x8x32xf32> to vector<2x8x8xf32>
    %162 = vector.extract_strided_slice %154 {offsets = [0, 0, 24], sizes = [2, 8, 8], strides = [1, 1, 1]} : vector<2x8x32xf32> to vector<2x8x8xf32>
    %163 = tpu.concatenate %159, %160, %161, %162 in 0 : vector<2x8x8xf32>, vector<2x8x8xf32>, vector<2x8x8xf32>, vector<2x8x8xf32> -> vector<8x8x8xf32>
    %164 = vector.extract_strided_slice %156 {offsets = [0, 0, 0], sizes = [2, 8, 8], strides = [1, 1, 1]} : vector<2x8x32xf32> to vector<2x8x8xf32>
    %165 = vector.extract_strided_slice %156 {offsets = [0, 0, 8], sizes = [2, 8, 8], strides = [1, 1, 1]} : vector<2x8x32xf32> to vector<2x8x8xf32>
    %166 = vector.extract_strided_slice %156 {offsets = [0, 0, 16], sizes = [2, 8, 8], strides = [1, 1, 1]} : vector<2x8x32xf32> to vector<2x8x8xf32>
    %167 = vector.extract_strided_slice %156 {offsets = [0, 0, 24], sizes = [2, 8, 8], strides = [1, 1, 1]} : vector<2x8x32xf32> to vector<2x8x8xf32>
    %168 = tpu.concatenate %164, %165, %166, %167 in 0 : vector<2x8x8xf32>, vector<2x8x8xf32>, vector<2x8x8xf32>, vector<2x8x8xf32> -> vector<8x8x8xf32>
    %169 = vector.extract_strided_slice %158 {offsets = [0, 0, 0], sizes = [2, 8, 8], strides = [1, 1, 1]} : vector<2x8x32xf32> to vector<2x8x8xf32>
    %170 = vector.extract_strided_slice %158 {offsets = [0, 0, 8], sizes = [2, 8, 8], strides = [1, 1, 1]} : vector<2x8x32xf32> to vector<2x8x8xf32>
    %171 = vector.extract_strided_slice %158 {offsets = [0, 0, 16], sizes = [2, 8, 8], strides = [1, 1, 1]} : vector<2x8x32xf32> to vector<2x8x8xf32>
    %172 = vector.extract_strided_slice %158 {offsets = [0, 0, 24], sizes = [2, 8, 8], strides = [1, 1, 1]} : vector<2x8x32xf32> to vector<2x8x8xf32>
    %173 = tpu.concatenate %169, %170, %171, %172 in 0 : vector<2x8x8xf32>, vector<2x8x8xf32>, vector<2x8x8xf32>, vector<2x8x8xf32> -> vector<8x8x8xf32>
    "tpu.trace_start"() <{level = 10 : i32, message = "bqd,bkd->bqk"}> : () -> ()
    %cst_53 = arith.constant dense<0.000000e+00> : vector<8x8x8xf32>
    %174 = tpu.matmul %163, %168, %cst_53 {dimension_numbers = #tpu.dot_dimension_numbers<[2], [2], [1], [1], [0, 0, 0, 1, 1, 1], [0], [0]>} : vector<8x8x8xf32>, vector<8x8x8xf32>, vector<8x8x8xf32> -> vector<8x8x8xf32>
    "tpu.trace_stop"() : () -> ()
    %cst_54 = arith.constant 0.353553385 : f32
    %175 = vector.broadcast %cst_54 : f32 to vector<8x8x8xf32>
    %176 = arith.mulf %174, %175 : vector<8x8x8xf32>
    %cst_55 = arith.constant dense<0xFF800000> : vector<8x8xf32>
    %177 = vector.multi_reduction <maximumf>, %176, %cst_55 [2] : vector<8x8x8xf32> to vector<8x8xf32>
    %178 = vector.shape_cast %177 : vector<8x8xf32> to vector<8x8x1xf32>
    %179 = vector.broadcast %178 : vector<8x8x1xf32> to vector<8x8x8xf32>
    %180 = arith.subf %176, %179 : vector<8x8x8xf32>
    %181 = math.exp %180 : vector<8x8x8xf32>
    %cst_56 = arith.constant dense<0.000000e+00> : vector<8x8xf32>
    %182 = vector.multi_reduction <add>, %181, %cst_56 [2] : vector<8x8x8xf32> to vector<8x8xf32>
    %183 = vector.shape_cast %182 : vector<8x8xf32> to vector<8x8x1xf32>
    %184 = tpu.reciprocal %183 {approx = true} : vector<8x8x1xf32> -> vector<8x8x1xf32>
    %185 = vector.broadcast %184 : vector<8x8x1xf32> to vector<8x8x8xf32>
    %186 = arith.mulf %181, %185 : vector<8x8x8xf32>
    "tpu.trace_start"() <{level = 10 : i32, message = "bqk,bkd->bqd"}> : () -> ()
    %cst_57 = arith.constant dense<0.000000e+00> : vector<8x8x8xf32>
    %187 = tpu.matmul %186, %173, %cst_57 {dimension_numbers = #tpu.dot_dimension_numbers<[2], [1], [1], [2], [0, 0, 0, 1, 1, 2], [0], [0]>} : vector<8x8x8xf32>, vector<8x8x8xf32>, vector<8x8x8xf32> -> vector<8x8x8xf32>
    "tpu.trace_stop"() : () -> ()
    %188 = vector.extract_strided_slice %187 {offsets = [0, 0, 0], sizes = [2, 8, 8], strides = [1, 1, 1]} : vector<8x8x8xf32> to vector<2x8x8xf32>
    %189 = vector.shape_cast %188 : vector<2x8x8xf32> to vector<16x8xf32>
    %190 = vector.extract_strided_slice %135 {offsets = [0, 0], sizes = [8, 32], strides = [1, 1]} : vector<32x32xf32> to vector<8x32xf32>
    %cst_58 = arith.constant dense<0.000000e+00> : vector<16x32xf32>
    %191 = tpu.matmul %189, %190, %cst_58 {dimension_numbers = #tpu.dot_dimension_numbers<[1], [0], [0], [1], [0, 0, 1, 1], [], []>} : vector<16x8xf32>, vector<8x32xf32>, vector<16x32xf32> -> vector<16x32xf32>
    %192 = vector.broadcast %143 : vector<1x32xf32> to vector<16x32xf32>
    %193 = arith.addf %192, %191 : vector<16x32xf32>
    %194 = vector.extract_strided_slice %187 {offsets = [2, 0, 0], sizes = [2, 8, 8], strides = [1, 1, 1]} : vector<8x8x8xf32> to vector<2x8x8xf32>
    %195 = vector.shape_cast %194 : vector<2x8x8xf32> to vector<16x8xf32>
    %196 = vector.extract_strided_slice %135 {offsets = [8, 0], sizes = [8, 32], strides = [1, 1]} : vector<32x32xf32> to vector<8x32xf32>
    %cst_59 = arith.constant dense<0.000000e+00> : vector<16x32xf32>
    %197 = tpu.matmul %195, %196, %cst_59 {dimension_numbers = #tpu.dot_dimension_numbers<[1], [0], [0], [1], [0, 0, 1, 1], [], []>} : vector<16x8xf32>, vector<8x32xf32>, vector<16x32xf32> -> vector<16x32xf32>
    %198 = arith.addf %193, %197 : vector<16x32xf32>
    %199 = vector.extract_strided_slice %187 {offsets = [4, 0, 0], sizes = [2, 8, 8], strides = [1, 1, 1]} : vector<8x8x8xf32> to vector<2x8x8xf32>
    %200 = vector.shape_cast %199 : vector<2x8x8xf32> to vector<16x8xf32>
    %201 = vector.extract_strided_slice %135 {offsets = [16, 0], sizes = [8, 32], strides = [1, 1]} : vector<32x32xf32> to vector<8x32xf32>
    %cst_60 = arith.constant dense<0.000000e+00> : vector<16x32xf32>
    %202 = tpu.matmul %200, %201, %cst_60 {dimension_numbers = #tpu.dot_dimension_numbers<[1], [0], [0], [1], [0, 0, 1, 1], [], []>} : vector<16x8xf32>, vector<8x32xf32>, vector<16x32xf32> -> vector<16x32xf32>
    %203 = arith.addf %198, %202 : vector<16x32xf32>
    %204 = vector.extract_strided_slice %187 {offsets = [6, 0, 0], sizes = [2, 8, 8], strides = [1, 1, 1]} : vector<8x8x8xf32> to vector<2x8x8xf32>
    %205 = vector.shape_cast %204 : vector<2x8x8xf32> to vector<16x8xf32>
    %206 = vector.extract_strided_slice %135 {offsets = [24, 0], sizes = [8, 32], strides = [1, 1]} : vector<32x32xf32> to vector<8x32xf32>
    %cst_61 = arith.constant dense<0.000000e+00> : vector<16x32xf32>
    %207 = tpu.matmul %205, %206, %cst_61 {dimension_numbers = #tpu.dot_dimension_numbers<[1], [0], [0], [1], [0, 0, 1, 1], [], []>} : vector<16x8xf32>, vector<8x32xf32>, vector<16x32xf32> -> vector<16x32xf32>
    %208 = arith.addf %203, %207 : vector<16x32xf32>
    %209 = arith.addf %131, %208 : vector<16x32xf32>
    %cst_62 = arith.constant dense<0.000000e+00> : vector<16xf32>
    %210 = vector.multi_reduction <add>, %209, %cst_62 [1] : vector<16x32xf32> to vector<16xf32>
    %211 = vector.shape_cast %210 : vector<16xf32> to vector<16x1xf32>
    %cst_63 = arith.constant 3.200000e+01 : f32
    %212 = vector.broadcast %cst_63 : f32 to vector<16x1xf32>
    %213 = arith.divf %211, %212 : vector<16x1xf32>
    %214 = vector.broadcast %213 : vector<16x1xf32> to vector<16x32xf32>
    %215 = arith.subf %209, %214 : vector<16x32xf32>
    %216 = arith.mulf %215, %215 : vector<16x32xf32>
    %cst_64 = arith.constant dense<0.000000e+00> : vector<16xf32>
    %217 = vector.multi_reduction <add>, %216, %cst_64 [1] : vector<16x32xf32> to vector<16xf32>
    %218 = vector.shape_cast %217 : vector<16xf32> to vector<16x1xf32>
    %cst_65 = arith.constant 3.200000e+01 : f32
    %219 = vector.broadcast %cst_65 : f32 to vector<16x1xf32>
    %220 = arith.divf %218, %219 : vector<16x1xf32>
    %221 = vector.broadcast %213 : vector<16x1xf32> to vector<16x32xf32>
    %222 = arith.subf %209, %221 : vector<16x32xf32>
    %cst_66 = arith.constant 9.99999974E-6 : f32
    %223 = vector.broadcast %cst_66 : f32 to vector<16x1xf32>
    %224 = arith.addf %220, %223 : vector<16x1xf32>
    %225 = math.rsqrt %224 : vector<16x1xf32>
    %226 = vector.broadcast %225 : vector<16x1xf32> to vector<16x32xf32>
    %227 = arith.mulf %222, %226 : vector<16x32xf32>
    %228 = vector.broadcast %146 : vector<1x32xf32> to vector<16x32xf32>
    %229 = arith.mulf %227, %228 : vector<16x32xf32>
    %230 = vector.broadcast %147 : vector<1x32xf32> to vector<16x32xf32>
    %231 = arith.addf %229, %230 : vector<16x32xf32>
    %cst_67 = arith.constant dense<0.000000e+00> : vector<16x64xf32>
    %232 = tpu.matmul %231, %137, %cst_67 {dimension_numbers = #tpu.dot_dimension_numbers<[1], [0], [0], [1], [0, 0, 1, 1], [], []>} : vector<16x32xf32>, vector<32x64xf32>, vector<16x64xf32> -> vector<16x64xf32>
    %233 = vector.broadcast %144 : vector<1x64xf32> to vector<16x64xf32>
    %234 = arith.addf %232, %233 : vector<16x64xf32>
    %cst_68 = arith.constant 0.000000e+00 : f32
    %235 = vector.broadcast %cst_68 : f32 to vector<16x64xf32>
    %236 = arith.maximumf %234, %235 : vector<16x64xf32>
    %cst_69 = arith.constant dense<0.000000e+00> : vector<16x32xf32>
    %237 = tpu.matmul %236, %139, %cst_69 {dimension_numbers = #tpu.dot_dimension_numbers<[1], [0], [0], [1], [0, 0, 1, 1], [], []>} : vector<16x64xf32>, vector<64x32xf32>, vector<16x32xf32> -> vector<16x32xf32>
    %238 = vector.broadcast %145 : vector<1x32xf32> to vector<16x32xf32>
    %239 = arith.addf %237, %238 : vector<16x32xf32>
    %240 = arith.addf %231, %239 : vector<16x32xf32>
    %cst_70 = arith.constant dense<0.000000e+00> : vector<16xf32>
    %241 = vector.multi_reduction <add>, %240, %cst_70 [1] : vector<16x32xf32> to vector<16xf32>
    %242 = vector.shape_cast %241 : vector<16xf32> to vector<16x1xf32>
    %cst_71 = arith.constant 3.200000e+01 : f32
    %243 = vector.broadcast %cst_71 : f32 to vector<16x1xf32>
    %244 = arith.divf %242, %243 : vector<16x1xf32>
    %245 = vector.broadcast %244 : vector<16x1xf32> to vector<16x32xf32>
    %246 = arith.subf %240, %245 : vector<16x32xf32>
    %247 = arith.mulf %246, %246 : vector<16x32xf32>
    %cst_72 = arith.constant dense<0.000000e+00> : vector<16xf32>
    %248 = vector.multi_reduction <add>, %247, %cst_72 [1] : vector<16x32xf32> to vector<16xf32>
    %249 = vector.shape_cast %248 : vector<16xf32> to vector<16x1xf32>
    %cst_73 = arith.constant 3.200000e+01 : f32
    %250 = vector.broadcast %cst_73 : f32 to vector<16x1xf32>
    %251 = arith.divf %249, %250 : vector<16x1xf32>
    %252 = vector.broadcast %244 : vector<16x1xf32> to vector<16x32xf32>
    %253 = arith.subf %240, %252 : vector<16x32xf32>
    %cst_74 = arith.constant 9.99999974E-6 : f32
    %254 = vector.broadcast %cst_74 : f32 to vector<16x1xf32>
    %255 = arith.addf %251, %254 : vector<16x1xf32>
    %256 = math.rsqrt %255 : vector<16x1xf32>
    %257 = vector.broadcast %256 : vector<16x1xf32> to vector<16x32xf32>
    %258 = arith.mulf %253, %257 : vector<16x32xf32>
    %259 = vector.broadcast %148 : vector<1x32xf32> to vector<16x32xf32>
    %260 = arith.mulf %258, %259 : vector<16x32xf32>
    %261 = vector.broadcast %149 : vector<1x32xf32> to vector<16x32xf32>
    %262 = arith.addf %260, %261 : vector<16x32xf32>
    %c0_75 = arith.constant 0 : index
    %c0_76 = arith.constant 0 : index
    %263 = vector.load %arg6[%c0_75, %c0_76] : memref<16x32xf32, #tpu.memory_space<vmem>>, vector<16x32xf32>
    tpu.vector_store %arg6[%c0_75, %c0_76], %262 {strides = array<i32>} : memref<16x32xf32, #tpu.memory_space<vmem>>, vector<16x32xf32>,
    return
  }
}

</mosaic_0001>

<llo_original>
// kernel: decoder_only_transformer.1
$region0: #{decoder_only_transformer.1}
  #allocation0 [shape = 'u32[]', space=smem, size = 0x4, offset = 0x4, fixed_abs, tag = 'smem constant byte address 0x4 - core index']
  #allocation1 [shape = 'u32[144,128]{1,0:T(1,128)}', space=vmem, size = 0x12000, scoped, tag = 'internal scratch']
  %s0 = inlined_call_operand.vmem [shape: f32[16,32], index: 0, kind: input, shape index: {}]
  %s1 = inlined_call_operand.vmem [shape: f32[2,32,96], index: 1, kind: input, shape index: {}]
  %s2 = inlined_call_operand.vmem [shape: f32[2,32,32], index: 2, kind: input, shape index: {}]
  %s3 = inlined_call_operand.vmem [shape: f32[2,32,64], index: 3, kind: input, shape index: {}]
  %s4 = inlined_call_operand.vmem [shape: f32[2,64,32], index: 4, kind: input, shape index: {}]
  %s5 = inlined_call_operand.vmem [shape: f32[2,8,128], index: 5, kind: input, shape index: {}]
  %s6 = inlined_call_operand.vmem [shape: f32[16,32], index: 6, kind: output, shape index: {}]
  %s7 = sld [smem:[#allocation0]]
  $region34: #{decoder_only_transformer.1} parent=0
    _
  %s9 = ssub.s32 1, %s7
  %s10 = scalar_select 0, %s9, %s7
  // Predicated region
  $region2: #{decoder_only_transformer.1} parent=0 // pred_check
    _
  $region3: #{decoder_only_transformer.1} parent=0 // pred_check_branch
    %12 = sbr.rel (0) target = $region5
  $region4: #{decoder_only_transformer.1} parent=0 // pred_region
    _
  $region5: #{decoder_only_transformer.1} parent=0 // pred_fallthru
    _
  // Predicated region
  $region6: #{decoder_only_transformer.1} parent=0 // pred_check
    _
  $region7: #{decoder_only_transformer.1} parent=0 // pred_check_branch
    %14 = sbr.rel (0) target = $region9
  $region8: #{decoder_only_transformer.1} parent=0 // pred_region
    _
  $region9: #{decoder_only_transformer.1} parent=0 // pred_fallthru
    _
  // Predicated region
  $region10: #{decoder_only_transformer.1} parent=0 // pred_check
    _
  $region11: #{decoder_only_transformer.1} parent=0 // pred_check_branch
    %16 = sbr.rel (0) target = $region13
  $region12: #{decoder_only_transformer.1} parent=0 // pred_region
    _
  $region13: #{decoder_only_transformer.1} parent=0 // pred_fallthru
    _
  // Predicated region
  $region14: #{decoder_only_transformer.1} parent=0 // pred_check
    _
  $region15: #{decoder_only_transformer.1} parent=0 // pred_check_branch
    %18 = sbr.rel (0) target = $region17
  $region16: #{decoder_only_transformer.1} parent=0 // pred_region
    _
  $region17: #{decoder_only_transformer.1} parent=0 // pred_fallthru
    _
  // Predicated region
  $region18: #{decoder_only_transformer.1} parent=0 // pred_check
    _
  $region19: #{decoder_only_transformer.1} parent=0 // pred_check_branch
    %20 = sbr.rel (0) target = $region21
  $region20: #{decoder_only_transformer.1} parent=0 // pred_region
    _
  $region21: #{decoder_only_transformer.1} parent=0 // pred_fallthru
    _
  // Predicated region
  $region22: #{decoder_only_transformer.1} parent=0 // pred_check
    _
  $region23: #{decoder_only_transformer.1} parent=0 // pred_check_branch
    %22 = sbr.rel (0) target = $region25
  $region24: #{decoder_only_transformer.1} parent=0 // pred_region
    _
  $region25: #{decoder_only_transformer.1} parent=0 // pred_fallthru
    _
  %v23 = vld [vmem:[%s0] sm:$0xff]
  %v24 = vld [vmem:[%s0 + $0x8] sm:$0xff]
  %v25 = vld [vmem:[%s1] sm:$0xff]
  %v26 = vld [vmem:[%s1 + $0x8] sm:$0xff]
  %v27 = vld [vmem:[%s1 + $0x10] sm:$0xff]
  %v28 = vld [vmem:[%s1 + $0x18] sm:$0xff]
  %v29 = vld [vmem:[%s2] sm:$0xff]
  %v30 = vld [vmem:[%s2 + $0x8] sm:$0xff]
  %v31 = vld [vmem:[%s2 + $0x10] sm:$0xff]
  %v32 = vld [vmem:[%s2 + $0x18] sm:$0xff]
  %v33 = vld [vmem:[%s3] sm:$0xff]
  %v34 = vld [vmem:[%s3 + $0x8] sm:$0xff]
  %v35 = vld [vmem:[%s3 + $0x10] sm:$0xff]
  %v36 = vld [vmem:[%s3 + $0x18] sm:$0xff]
  %v37 = vld [vmem:[%s4] sm:$0xff]
  %v38 = vld [vmem:[%s4 + $0x8] sm:$0xff]
  %v39 = vld [vmem:[%s4 + $0x10] sm:$0xff]
  %v40 = vld [vmem:[%s4 + $0x18] sm:$0xff]
  %v41 = vld [vmem:[%s4 + $0x20] sm:$0xff]
  %v42 = vld [vmem:[%s4 + $0x28] sm:$0xff]
  %v43 = vld [vmem:[%s4 + $0x30] sm:$0xff]
  %v44 = vld [vmem:[%s4 + $0x38] sm:$0xff]
  %v45 = vld [vmem:[%s5] sm:$0xff]
  %v46 = vlaneseq
  %v47 = vshrl.u32 %v46, 7
  %v48 = vsub.s32 0, %v47
  %v49 = vrot.slane %v45, %v48
  %vm50 = vcmask 261120
  %v52 = vsel %vm50, %v23, 0
  %v55 = vsel %vm50, %v24, 0
  %57 = vmatprep.subr.mxu0 0.0
  %58 = vmatpush1.msra.mxu0 0.0
  %59 = vmatprep.subr.mxu0 0.0
  %60 = vmatpush1.msra.mxu0 0.0
  %61 = vmatprep.subr.mxu0 0.0
  %62 = vmatpush1.msra.mxu0 0.0
  %63 = vmatprep.subr.mxu0 0.0
  %64 = vmatpush1.msra.mxu0 0.0
  %65 = vmatprep.subr.mxu0 0.0
  %66 = vmatpush1.msra.mxu0 0.0
  %67 = vmatprep.subr.mxu0 0.0
  %68 = vmatpush1.msra.mxu0 0.0
  %69 = vmatprep.subr.mxu0 0.0
  %70 = vmatpush1.msra.mxu0 0.0
  %71 = vmatprep.subr.mxu0 0.0
  %72 = vmatpush1.msra.mxu0 0.0
  %73 = vmatprep.subr.mxu0 0.0
  %74 = vmatpush1.msra.mxu0 0.0
  %75 = vmatprep.subr.mxu0 0.0
  %76 = vmatpush1.msra.mxu0 0.0
  %77 = vmatprep.subr.mxu0 0.0
  %78 = vmatpush1.msra.mxu0 0.0
  %79 = vmatprep.subr.mxu0 0.0
  %80 = vmatpush1.msra.mxu0 0.0
  %81 = vmatprep.subr.mxu0 0.0
  %82 = vmatpush1.msra.mxu0 %v28
  %83 = vmatprep.subr.mxu0 0.0
  %84 = vmatpush1.msra.mxu0 %v27
  %85 = vmatprep.subr.mxu0 0.0
  %86 = vmatpush1.msra.mxu0 %v26
  %87 = vmatprep.subr.mxu0 0.0
  %88 = vmatpush1.msra.mxu0 %v25
  %89 = vmatprep.subr.mxu0 0.0
  %90 = vmatpush2.msra.mxu0 0.0
  %91 = vmatprep.subr.mxu0 0.0
  %92 = vmatpush2.msra.mxu0 0.0
  %93 = vmatprep.subr.mxu0 0.0
  %94 = vmatpush2.msra.mxu0 0.0
  %95 = vmatprep.subr.mxu0 0.0
  %96 = vmatpush2.msra.mxu0 0.0
  %97 = vmatprep.subr.mxu0 0.0
  %98 = vmatpush2.msra.mxu0 0.0
  %99 = vmatprep.subr.mxu0 0.0
  %100 = vmatpush2.msra.mxu0 0.0
  %101 = vmatprep.subr.mxu0 0.0
  %102 = vmatpush2.msra.mxu0 0.0
  %103 = vmatprep.subr.mxu0 0.0
  %104 = vmatpush2.msra.mxu0 0.0
  %105 = vmatprep.subr.mxu0 0.0
  %106 = vmatpush2.msra.mxu0 0.0
  %107 = vmatprep.subr.mxu0 0.0
  %108 = vmatpush2.msra.mxu0 0.0
  %109 = vmatprep.subr.mxu0 0.0
  %110 = vmatpush2.msra.mxu0 0.0
  %111 = vmatprep.subr.mxu0 0.0
  %112 = vmatpush2.msra.mxu0 0.0
  %113 = vmatprep.subr.mxu0 0.0
  %114 = vmatpush2.msra.mxu0 0.0
  %115 = vmatprep.subr.mxu0 0.0
  %116 = vmatpush2.msra.mxu0 0.0
  %117 = vmatprep.subr.mxu0 0.0
  %118 = vmatpush2.msra.mxu0 0.0
  %119 = vmatprep.subr.mxu0 0.0
  %120 = vmatpush2.msra.mxu0 0.0
  %121 = vmatprep.mubr.f32.mxu0 0.0
  %122 = vmatmul.mubr.f32.gmra.mxu0 %v52
  %v123 = vpop.f32.mrf.mxu0
  %v124 = vadd.f32 %v49, %v123
  %v125 = vpop.f32.mrf.mxu0
  %126 = vmatprep.mubr.f32.mxu0 0.0
  %127 = vmatmul.mubr.f32.gmra.mxu0 %v55
  %v128 = vpop.f32.mrf.mxu0
  %v129 = vadd.f32 %v49, %v128
  %v130 = vpop.f32.mrf.mxu0
  %131 = vdwg.mxu0
  %134 = vrot.lane.b32.xlu0 %v124, 120
  %v135 = vpop.permute.xlu0 %134
  %136 = vrot.lane.b32.xlu0 %v129, 120
  %v137 = vpop.permute.xlu0 %136
  %138 = vrot.lane.b32.xlu0 %v124, 112
  %v139 = vpop.permute.xlu0 %138
  %140 = vrot.lane.b32.xlu0 %v129, 112
  %v141 = vpop.permute.xlu0 %140
  %142 = vrot.lane.b32.xlu0 %v124, 104
  %v143 = vpop.permute.xlu0 %142
  %144 = vrot.lane.b32.xlu0 %v129, 104
  %v145 = vpop.permute.xlu0 %144
  %146 = vrot.lane.b32.xlu0 %v124, 96
  %v147 = vpop.permute.xlu0 %146
  %vm148 = vcmask 64512
  %v149 = vsel %vm148, %v124, 0
  %v151 = vsel %vm148, %v147, 0
  %153 = vmatprep.subr.mxu0 0.0
  %154 = vmatpush1.xpose.msra.mxu0 0.0
  %155 = vmatprep.subr.mxu0 0.0
  %156 = vmatpush1.xpose.msra.mxu0 0.0
  %157 = vmatprep.subr.mxu0 0.0
  %158 = vmatpush1.xpose.msra.mxu0 0.0
  %159 = vmatprep.subr.mxu0 0.0
  %160 = vmatpush1.xpose.msra.mxu0 0.0
  %161 = vmatprep.subr.mxu0 0.0
  %162 = vmatpush1.xpose.msra.mxu0 0.0
  %163 = vmatprep.subr.mxu0 0.0
  %164 = vmatpush1.xpose.msra.mxu0 0.0
  %165 = vmatprep.subr.mxu0 0.0
  %166 = vmatpush1.xpose.msra.mxu0 0.0
  %167 = vmatprep.subr.mxu0 0.0
  %168 = vmatpush1.xpose.msra.mxu0 0.0
  %169 = vmatprep.subr.mxu0 0.0
  %170 = vmatpush1.xpose.msra.mxu0 0.0
  %171 = vmatprep.subr.mxu0 0.0
  %172 = vmatpush1.xpose.msra.mxu0 0.0
  %173 = vmatprep.subr.mxu0 0.0
  %174 = vmatpush1.xpose.msra.mxu0 0.0
  %175 = vmatprep.subr.mxu0 0.0
  %176 = vmatpush1.xpose.msra.mxu0 0.0
  %177 = vmatprep.subr.mxu0 0.0
  %178 = vmatpush1.xpose.msra.mxu0 0.0
  %179 = vmatprep.subr.mxu0 0.0
  %180 = vmatpush1.xpose.msra.mxu0 0.0
  %181 = vmatprep.subr.mxu0 0.0
  %182 = vmatpush1.xpose.msra.mxu0 0.0
  %183 = vmatprep.subr.mxu0 0.0
  %184 = vmatpush1.xpose.msra.mxu0 %v151
  %185 = vmatprep.subr.mxu0 0.0
  %186 = vmatpush2.xpose.msra.mxu0 0.0
  %187 = vmatprep.subr.mxu0 0.0
  %188 = vmatpush2.xpose.msra.mxu0 0.0
  %189 = vmatprep.subr.mxu0 0.0
  %190 = vmatpush2.xpose.msra.mxu0 0.0
  %191 = vmatprep.subr.mxu0 0.0
  %192 = vmatpush2.xpose.msra.mxu0 0.0
  %193 = vmatprep.subr.mxu0 0.0
  %194 = vmatpush2.xpose.msra.mxu0 0.0
  %195 = vmatprep.subr.mxu0 0.0
  %196 = vmatpush2.xpose.msra.mxu0 0.0
  %197 = vmatprep.subr.mxu0 0.0
  %198 = vmatpush2.xpose.msra.mxu0 0.0
  %199 = vmatprep.subr.mxu0 0.0
  %200 = vmatpush2.xpose.msra.mxu0 0.0
  %201 = vmatprep.subr.mxu0 0.0
  %202 = vmatpush2.xpose.msra.mxu0 0.0
  %203 = vmatprep.subr.mxu0 0.0
  %204 = vmatpush2.xpose.msra.mxu0 0.0
  %205 = vmatprep.subr.mxu0 0.0
  %206 = vmatpush2.xpose.msra.mxu0 0.0
  %207 = vmatprep.subr.mxu0 0.0
  %208 = vmatpush2.xpose.msra.mxu0 0.0
  %209 = vmatprep.subr.mxu0 0.0
  %210 = vmatpush2.xpose.msra.mxu0 0.0
  %211 = vmatprep.subr.mxu0 0.0
  %212 = vmatpush2.xpose.msra.mxu0 0.0
  %213 = vmatprep.subr.mxu0 0.0
  %214 = vmatpush2.xpose.msra.mxu0 0.0
  %215 = vmatprep.subr.mxu0 0.0
  %216 = vmatpush2.xpose.msra.mxu0 0.0
  %217 = vmatprep.mubr.f32.mxu0 0.0
  %218 = vmatmul.mubr.f32.gmra.mxu0 %v149
  %v219 = vpop.f32.mrf.mxu0
  %v220 = vadd.f32 0.0, %v219
  %v221 = vpop.f32.mrf.mxu0
  %222 = vdwg.mxu0
  %223 = vrot.lane.b32.xlu0 %v129, 96
  %v224 = vpop.permute.xlu0 %223
  %v225 = vsel %vm148, %v129, 0
  %v227 = vsel %vm148, %v224, 0
  %229 = vmatprep.subr.mxu0 0.0
  %230 = vmatpush1.xpose.msra.mxu0 0.0
  %231 = vmatprep.subr.mxu0 0.0
  %232 = vmatpush1.xpose.msra.mxu0 0.0
  %233 = vmatprep.subr.mxu0 0.0
  %234 = vmatpush1.xpose.msra.mxu0 0.0
  %235 = vmatprep.subr.mxu0 0.0
  %236 = vmatpush1.xpose.msra.mxu0 0.0
  %237 = vmatprep.subr.mxu0 0.0
  %238 = vmatpush1.xpose.msra.mxu0 0.0
  %239 = vmatprep.subr.mxu0 0.0
  %240 = vmatpush1.xpose.msra.mxu0 0.0
  %241 = vmatprep.subr.mxu0 0.0
  %242 = vmatpush1.xpose.msra.mxu0 0.0
  %243 = vmatprep.subr.mxu0 0.0
  %244 = vmatpush1.xpose.msra.mxu0 0.0
  %245 = vmatprep.subr.mxu0 0.0
  %246 = vmatpush1.xpose.msra.mxu0 0.0
  %247 = vmatprep.subr.mxu0 0.0
  %248 = vmatpush1.xpose.msra.mxu0 0.0
  %249 = vmatprep.subr.mxu0 0.0
  %250 = vmatpush1.xpose.msra.mxu0 0.0
  %251 = vmatprep.subr.mxu0 0.0
  %252 = vmatpush1.xpose.msra.mxu0 0.0
  %253 = vmatprep.subr.mxu0 0.0
  %254 = vmatpush1.xpose.msra.mxu0 0.0
  %255 = vmatprep.subr.mxu0 0.0
  %256 = vmatpush1.xpose.msra.mxu0 0.0
  %257 = vmatprep.subr.mxu0 0.0
  %258 = vmatpush1.xpose.msra.mxu0 0.0
  %259 = vmatprep.subr.mxu0 0.0
  %260 = vmatpush1.xpose.msra.mxu0 %v227
  %261 = vmatprep.subr.mxu0 0.0
  %262 = vmatpush2.xpose.msra.mxu0 0.0
  %263 = vmatprep.subr.mxu0 0.0
  %264 = vmatpush2.xpose.msra.mxu0 0.0
  %265 = vmatprep.subr.mxu0 0.0
  %266 = vmatpush2.xpose.msra.mxu0 0.0
  %267 = vmatprep.subr.mxu0 0.0
  %268 = vmatpush2.xpose.msra.mxu0 0.0
  %269 = vmatprep.subr.mxu0 0.0
  %270 = vmatpush2.xpose.msra.mxu0 0.0
  %271 = vmatprep.subr.mxu0 0.0
  %272 = vmatpush2.xpose.msra.mxu0 0.0
  %273 = vmatprep.subr.mxu0 0.0
  %274 = vmatpush2.xpose.msra.mxu0 0.0
  %275 = vmatprep.subr.mxu0 0.0
  %276 = vmatpush2.xpose.msra.mxu0 0.0
  %277 = vmatprep.subr.mxu0 0.0
  %278 = vmatpush2.xpose.msra.mxu0 0.0
  %279 = vmatprep.subr.mxu0 0.0
  %280 = vmatpush2.xpose.msra.mxu0 0.0
  %281 = vmatprep.subr.mxu0 0.0
  %282 = vmatpush2.xpose.msra.mxu0 0.0
  %283 = vmatprep.subr.mxu0 0.0
  %284 = vmatpush2.xpose.msra.mxu0 0.0
  %285 = vmatprep.subr.mxu0 0.0
  %286 = vmatpush2.xpose.msra.mxu0 0.0
  %287 = vmatprep.subr.mxu0 0.0
  %288 = vmatpush2.xpose.msra.mxu0 0.0
  %289 = vmatprep.subr.mxu0 0.0
  %290 = vmatpush2.xpose.msra.mxu0 0.0
  %291 = vmatprep.subr.mxu0 0.0
  %292 = vmatpush2.xpose.msra.mxu0 0.0
  %293 = vmatprep.mubr.f32.mxu0 0.0
  %294 = vmatmul.mubr.f32.gmra.mxu0 %v225
  %v295 = vpop.f32.mrf.mxu0
  %v296 = vadd.f32 0.0, %v295
  %v297 = vpop.f32.mrf.mxu0
  %298 = vdwg.mxu0
  %299 = vrot.lane.b32.xlu0 %v135, 96
  %v300 = vpop.permute.xlu0 %299
  %v301 = vsel %vm148, %v135, 0
  %v303 = vsel %vm148, %v300, 0
  %305 = vmatprep.subr.mxu0 0.0
  %306 = vmatpush1.xpose.msra.mxu0 0.0
  %307 = vmatprep.subr.mxu0 0.0
  %308 = vmatpush1.xpose.msra.mxu0 0.0
  %309 = vmatprep.subr.mxu0 0.0
  %310 = vmatpush1.xpose.msra.mxu0 0.0
  %311 = vmatprep.subr.mxu0 0.0
  %312 = vmatpush1.xpose.msra.mxu0 0.0
  %313 = vmatprep.subr.mxu0 0.0
  %314 = vmatpush1.xpose.msra.mxu0 0.0
  %315 = vmatprep.subr.mxu0 0.0
  %316 = vmatpush1.xpose.msra.mxu0 0.0
  %317 = vmatprep.subr.mxu0 0.0
  %318 = vmatpush1.xpose.msra.mxu0 0.0
  %319 = vmatprep.subr.mxu0 0.0
  %320 = vmatpush1.xpose.msra.mxu0 0.0
  %321 = vmatprep.subr.mxu0 0.0
  %322 = vmatpush1.xpose.msra.mxu0 0.0
  %323 = vmatprep.subr.mxu0 0.0
  %324 = vmatpush1.xpose.msra.mxu0 0.0
  %325 = vmatprep.subr.mxu0 0.0
  %326 = vmatpush1.xpose.msra.mxu0 0.0
  %327 = vmatprep.subr.mxu0 0.0
  %328 = vmatpush1.xpose.msra.mxu0 0.0
  %329 = vmatprep.subr.mxu0 0.0
  %330 = vmatpush1.xpose.msra.mxu0 0.0
  %331 = vmatprep.subr.mxu0 0.0
  %332 = vmatpush1.xpose.msra.mxu0 0.0
  %333 = vmatprep.subr.mxu0 0.0
  %334 = vmatpush1.xpose.msra.mxu0 0.0
  %335 = vmatprep.subr.mxu0 0.0
  %336 = vmatpush1.xpose.msra.mxu0 %v303
  %337 = vmatprep.subr.mxu0 0.0
  %338 = vmatpush2.xpose.msra.mxu0 0.0
  %339 = vmatprep.subr.mxu0 0.0
  %340 = vmatpush2.xpose.msra.mxu0 0.0
  %341 = vmatprep.subr.mxu0 0.0
  %342 = vmatpush2.xpose.msra.mxu0 0.0
  %343 = vmatprep.subr.mxu0 0.0
  %344 = vmatpush2.xpose.msra.mxu0 0.0
  %345 = vmatprep.subr.mxu0 0.0
  %346 = vmatpush2.xpose.msra.mxu0 0.0
  %347 = vmatprep.subr.mxu0 0.0
  %348 = vmatpush2.xpose.msra.mxu0 0.0
  %349 = vmatprep.subr.mxu0 0.0
  %350 = vmatpush2.xpose.msra.mxu0 0.0
  %351 = vmatprep.subr.mxu0 0.0
  %352 = vmatpush2.xpose.msra.mxu0 0.0
  %353 = vmatprep.subr.mxu0 0.0
  %354 = vmatpush2.xpose.msra.mxu0 0.0
  %355 = vmatprep.subr.mxu0 0.0
  %356 = vmatpush2.xpose.msra.mxu0 0.0
  %357 = vmatprep.subr.mxu0 0.0
  %358 = vmatpush2.xpose.msra.mxu0 0.0
  %359 = vmatprep.subr.mxu0 0.0
  %360 = vmatpush2.xpose.msra.mxu0 0.0
  %361 = vmatprep.subr.mxu0 0.0
  %362 = vmatpush2.xpose.msra.mxu0 0.0
  %363 = vmatprep.subr.mxu0 0.0
  %364 = vmatpush2.xpose.msra.mxu0 0.0
  %365 = vmatprep.subr.mxu0 0.0
  %366 = vmatpush2.xpose.msra.mxu0 0.0
  %367 = vmatprep.subr.mxu0 0.0
  %368 = vmatpush2.xpose.msra.mxu0 0.0
  %369 = vmatprep.mubr.f32.mxu0 0.0
  %370 = vmatmul.mubr.f32.gmra.mxu0 %v301
  %v371 = vpop.f32.mrf.mxu0
  %v372 = vadd.f32 0.0, %v371
  %v373 = vpop.f32.mrf.mxu0
  %374 = vdwg.mxu0
  %375 = vrot.lane.b32.xlu0 %v137, 96
  %v376 = vpop.permute.xlu0 %375
  %v377 = vsel %vm148, %v137, 0
  %v379 = vsel %vm148, %v376, 0
  %381 = vmatprep.subr.mxu0 0.0
  %382 = vmatpush1.xpose.msra.mxu0 0.0
  %383 = vmatprep.subr.mxu0 0.0
  %384 = vmatpush1.xpose.msra.mxu0 0.0
  %385 = vmatprep.subr.mxu0 0.0
  %386 = vmatpush1.xpose.msra.mxu0 0.0
  %387 = vmatprep.subr.mxu0 0.0
  %388 = vmatpush1.xpose.msra.mxu0 0.0
  %389 = vmatprep.subr.mxu0 0.0
  %390 = vmatpush1.xpose.msra.mxu0 0.0
  %391 = vmatprep.subr.mxu0 0.0
  %392 = vmatpush1.xpose.msra.mxu0 0.0
  %393 = vmatprep.subr.mxu0 0.0
  %394 = vmatpush1.xpose.msra.mxu0 0.0
  %395 = vmatprep.subr.mxu0 0.0
  %396 = vmatpush1.xpose.msra.mxu0 0.0
  %397 = vmatprep.subr.mxu0 0.0
  %398 = vmatpush1.xpose.msra.mxu0 0.0
  %399 = vmatprep.subr.mxu0 0.0
  %400 = vmatpush1.xpose.msra.mxu0 0.0
  %401 = vmatprep.subr.mxu0 0.0
  %402 = vmatpush1.xpose.msra.mxu0 0.0
  %403 = vmatprep.subr.mxu0 0.0
  %404 = vmatpush1.xpose.msra.mxu0 0.0
  %405 = vmatprep.subr.mxu0 0.0
  %406 = vmatpush1.xpose.msra.mxu0 0.0
  %407 = vmatprep.subr.mxu0 0.0
  %408 = vmatpush1.xpose.msra.mxu0 0.0
  %409 = vmatprep.subr.mxu0 0.0
  %410 = vmatpush1.xpose.msra.mxu0 0.0
  %411 = vmatprep.subr.mxu0 0.0
  %412 = vmatpush1.xpose.msra.mxu0 %v379
  %413 = vmatprep.subr.mxu0 0.0
  %414 = vmatpush2.xpose.msra.mxu0 0.0
  %415 = vmatprep.subr.mxu0 0.0
  %416 = vmatpush2.xpose.msra.mxu0 0.0
  %417 = vmatprep.subr.mxu0 0.0
  %418 = vmatpush2.xpose.msra.mxu0 0.0
  %419 = vmatprep.subr.mxu0 0.0
  %420 = vmatpush2.xpose.msra.mxu0 0.0
  %421 = vmatprep.subr.mxu0 0.0
  %422 = vmatpush2.xpose.msra.mxu0 0.0
  %423 = vmatprep.subr.mxu0 0.0
  %424 = vmatpush2.xpose.msra.mxu0 0.0
  %425 = vmatprep.subr.mxu0 0.0
  %426 = vmatpush2.xpose.msra.mxu0 0.0
  %427 = vmatprep.subr.mxu0 0.0
  %428 = vmatpush2.xpose.msra.mxu0 0.0
  %429 = vmatprep.subr.mxu0 0.0
  %430 = vmatpush2.xpose.msra.mxu0 0.0
  %431 = vmatprep.subr.mxu0 0.0
  %432 = vmatpush2.xpose.msra.mxu0 0.0
  %433 = vmatprep.subr.mxu0 0.0
  %434 = vmatpush2.xpose.msra.mxu0 0.0
  %435 = vmatprep.subr.mxu0 0.0
  %436 = vmatpush2.xpose.msra.mxu0 0.0
  %437 = vmatprep.subr.mxu0 0.0
  %438 = vmatpush2.xpose.msra.mxu0 0.0
  %439 = vmatprep.subr.mxu0 0.0
  %440 = vmatpush2.xpose.msra.mxu0 0.0
  %441 = vmatprep.subr.mxu0 0.0
  %442 = vmatpush2.xpose.msra.mxu0 0.0
  %443 = vmatprep.subr.mxu0 0.0
  %444 = vmatpush2.xpose.msra.mxu0 0.0
  %445 = vmatprep.mubr.f32.mxu0 0.0
  %446 = vmatmul.mubr.f32.gmra.mxu0 %v377
  %v447 = vpop.f32.mrf.mxu0
  %v448 = vadd.f32 0.0, %v447
  %v449 = vpop.f32.mrf.mxu0
  %450 = vdwg.mxu0
  %451 = vrot.lane.b32.xlu0 %v139, 96
  %v452 = vpop.permute.xlu0 %451
  %v453 = vsel %vm148, %v139, 0
  %v455 = vsel %vm148, %v452, 0
  %457 = vmatprep.subr.mxu0 0.0
  %458 = vmatpush1.xpose.msra.mxu0 0.0
  %459 = vmatprep.subr.mxu0 0.0
  %460 = vmatpush1.xpose.msra.mxu0 0.0
  %461 = vmatprep.subr.mxu0 0.0
  %462 = vmatpush1.xpose.msra.mxu0 0.0
  %463 = vmatprep.subr.mxu0 0.0
  %464 = vmatpush1.xpose.msra.mxu0 0.0
  %465 = vmatprep.subr.mxu0 0.0
  %466 = vmatpush1.xpose.msra.mxu0 0.0
  %467 = vmatprep.subr.mxu0 0.0
  %468 = vmatpush1.xpose.msra.mxu0 0.0
  %469 = vmatprep.subr.mxu0 0.0
  %470 = vmatpush1.xpose.msra.mxu0 0.0
  %471 = vmatprep.subr.mxu0 0.0
  %472 = vmatpush1.xpose.msra.mxu0 0.0
  %473 = vmatprep.subr.mxu0 0.0
  %474 = vmatpush1.xpose.msra.mxu0 0.0
  %475 = vmatprep.subr.mxu0 0.0
  %476 = vmatpush1.xpose.msra.mxu0 0.0
  %477 = vmatprep.subr.mxu0 0.0
  %478 = vmatpush1.xpose.msra.mxu0 0.0
  %479 = vmatprep.subr.mxu0 0.0
  %480 = vmatpush1.xpose.msra.mxu0 0.0
  %481 = vmatprep.subr.mxu0 0.0
  %482 = vmatpush1.xpose.msra.mxu0 0.0
  %483 = vmatprep.subr.mxu0 0.0
  %484 = vmatpush1.xpose.msra.mxu0 0.0
  %485 = vmatprep.subr.mxu0 0.0
  %486 = vmatpush1.xpose.msra.mxu0 0.0
  %487 = vmatprep.subr.mxu0 0.0
  %488 = vmatpush1.xpose.msra.mxu0 %v455
  %489 = vmatprep.subr.mxu0 0.0
  %490 = vmatpush2.xpose.msra.mxu0 0.0
  %491 = vmatprep.subr.mxu0 0.0
  %492 = vmatpush2.xpose.msra.mxu0 0.0
  %493 = vmatprep.subr.mxu0 0.0
  %494 = vmatpush2.xpose.msra.mxu0 0.0
  %495 = vmatprep.subr.mxu0 0.0
  %496 = vmatpush2.xpose.msra.mxu0 0.0
  %497 = vmatprep.subr.mxu0 0.0
  %498 = vmatpush2.xpose.msra.mxu0 0.0
  %499 = vmatprep.subr.mxu0 0.0
  %500 = vmatpush2.xpose.msra.mxu0 0.0
  %501 = vmatprep.subr.mxu0 0.0
  %502 = vmatpush2.xpose.msra.mxu0 0.0
  %503 = vmatprep.subr.mxu0 0.0
  %504 = vmatpush2.xpose.msra.mxu0 0.0
  %505 = vmatprep.subr.mxu0 0.0
  %506 = vmatpush2.xpose.msra.mxu0 0.0
  %507 = vmatprep.subr.mxu0 0.0
  %508 = vmatpush2.xpose.msra.mxu0 0.0
  %509 = vmatprep.subr.mxu0 0.0
  %510 = vmatpush2.xpose.msra.mxu0 0.0
  %511 = vmatprep.subr.mxu0 0.0
  %512 = vmatpush2.xpose.msra.mxu0 0.0
  %513 = vmatprep.subr.mxu0 0.0
  %514 = vmatpush2.xpose.msra.mxu0 0.0
  %515 = vmatprep.subr.mxu0 0.0
  %516 = vmatpush2.xpose.msra.mxu0 0.0
  %517 = vmatprep.subr.mxu0 0.0
  %518 = vmatpush2.xpose.msra.mxu0 0.0
  %519 = vmatprep.subr.mxu0 0.0
  %520 = vmatpush2.xpose.msra.mxu0 0.0
  %521 = vmatprep.mubr.f32.mxu0 0.0
  %522 = vmatmul.mubr.f32.gmra.mxu0 %v453
  %v523 = vpop.f32.mrf.mxu0
  %v524 = vadd.f32 0.0, %v523
  %v525 = vpop.f32.mrf.mxu0
  %526 = vdwg.mxu0
  %527 = vrot.lane.b32.xlu0 %v141, 96
  %v528 = vpop.permute.xlu0 %527
  %v529 = vsel %vm148, %v141, 0
  %v531 = vsel %vm148, %v528, 0
  %533 = vmatprep.subr.mxu0 0.0
  %534 = vmatpush1.xpose.msra.mxu0 0.0
  %535 = vmatprep.subr.mxu0 0.0
  %536 = vmatpush1.xpose.msra.mxu0 0.0
  %537 = vmatprep.subr.mxu0 0.0
  %538 = vmatpush1.xpose.msra.mxu0 0.0
  %539 = vmatprep.subr.mxu0 0.0
  %540 = vmatpush1.xpose.msra.mxu0 0.0
  %541 = vmatprep.subr.mxu0 0.0
  %542 = vmatpush1.xpose.msra.mxu0 0.0
  %543 = vmatprep.subr.mxu0 0.0
  %544 = vmatpush1.xpose.msra.mxu0 0.0
  %545 = vmatprep.subr.mxu0 0.0
  %546 = vmatpush1.xpose.msra.mxu0 0.0
  %547 = vmatprep.subr.mxu0 0.0
  %548 = vmatpush1.xpose.msra.mxu0 0.0
  %549 = vmatprep.subr.mxu0 0.0
  %550 = vmatpush1.xpose.msra.mxu0 0.0
  %551 = vmatprep.subr.mxu0 0.0
  %552 = vmatpush1.xpose.msra.mxu0 0.0
  %553 = vmatprep.subr.mxu0 0.0
  %554 = vmatpush1.xpose.msra.mxu0 0.0
  %555 = vmatprep.subr.mxu0 0.0
  %556 = vmatpush1.xpose.msra.mxu0 0.0
  %557 = vmatprep.subr.mxu0 0.0
  %558 = vmatpush1.xpose.msra.mxu0 0.0
  %559 = vmatprep.subr.mxu0 0.0
  %560 = vmatpush1.xpose.msra.mxu0 0.0
  %561 = vmatprep.subr.mxu0 0.0
  %562 = vmatpush1.xpose.msra.mxu0 0.0
  %563 = vmatprep.subr.mxu0 0.0
  %564 = vmatpush1.xpose.msra.mxu0 %v531
  %565 = vmatprep.subr.mxu0 0.0
  %566 = vmatpush2.xpose.msra.mxu0 0.0
  %567 = vmatprep.subr.mxu0 0.0
  %568 = vmatpush2.xpose.msra.mxu0 0.0
  %569 = vmatprep.subr.mxu0 0.0
  %570 = vmatpush2.xpose.msra.mxu0 0.0
  %571 = vmatprep.subr.mxu0 0.0
  %572 = vmatpush2.xpose.msra.mxu0 0.0
  %573 = vmatprep.subr.mxu0 0.0
  %574 = vmatpush2.xpose.msra.mxu0 0.0
  %575 = vmatprep.subr.mxu0 0.0
  %576 = vmatpush2.xpose.msra.mxu0 0.0
  %577 = vmatprep.subr.mxu0 0.0
  %578 = vmatpush2.xpose.msra.mxu0 0.0
  %579 = vmatprep.subr.mxu0 0.0
  %580 = vmatpush2.xpose.msra.mxu0 0.0
  %581 = vmatprep.subr.mxu0 0.0
  %582 = vmatpush2.xpose.msra.mxu0 0.0
  %583 = vmatprep.subr.mxu0 0.0
  %584 = vmatpush2.xpose.msra.mxu0 0.0
  %585 = vmatprep.subr.mxu0 0.0
  %586 = vmatpush2.xpose.msra.mxu0 0.0
  %587 = vmatprep.subr.mxu0 0.0
  %588 = vmatpush2.xpose.msra.mxu0 0.0
  %589 = vmatprep.subr.mxu0 0.0
  %590 = vmatpush2.xpose.msra.mxu0 0.0
  %591 = vmatprep.subr.mxu0 0.0
  %592 = vmatpush2.xpose.msra.mxu0 0.0
  %593 = vmatprep.subr.mxu0 0.0
  %594 = vmatpush2.xpose.msra.mxu0 0.0
  %595 = vmatprep.subr.mxu0 0.0
  %596 = vmatpush2.xpose.msra.mxu0 0.0
  %597 = vmatprep.mubr.f32.mxu0 0.0
  %598 = vmatmul.mubr.f32.gmra.mxu0 %v529
  %v599 = vpop.f32.mrf.mxu0
  %v600 = vadd.f32 0.0, %v599
  %v601 = vpop.f32.mrf.mxu0
  %602 = vdwg.mxu0
  %603 = vrot.lane.b32.xlu0 %v143, 96
  %v604 = vpop.permute.xlu0 %603
  %v605 = vsel %vm148, %v143, 0
  %v607 = vsel %vm148, %v604, 0
  %609 = vmatprep.subr.mxu0 0.0
  %610 = vmatpush1.xpose.msra.mxu0 0.0
  %611 = vmatprep.subr.mxu0 0.0
  %612 = vmatpush1.xpose.msra.mxu0 0.0
  %613 = vmatprep.subr.mxu0 0.0
  %614 = vmatpush1.xpose.msra.mxu0 0.0
  %615 = vmatprep.subr.mxu0 0.0
  %616 = vmatpush1.xpose.msra.mxu0 0.0
  %617 = vmatprep.subr.mxu0 0.0
  %618 = vmatpush1.xpose.msra.mxu0 0.0
  %619 = vmatprep.subr.mxu0 0.0
  %620 = vmatpush1.xpose.msra.mxu0 0.0
  %621 = vmatprep.subr.mxu0 0.0
  %622 = vmatpush1.xpose.msra.mxu0 0.0
  %623 = vmatprep.subr.mxu0 0.0
  %624 = vmatpush1.xpose.msra.mxu0 0.0
  %625 = vmatprep.subr.mxu0 0.0
  %626 = vmatpush1.xpose.msra.mxu0 0.0
  %627 = vmatprep.subr.mxu0 0.0
  %628 = vmatpush1.xpose.msra.mxu0 0.0
  %629 = vmatprep.subr.mxu0 0.0
  %630 = vmatpush1.xpose.msra.mxu0 0.0
  %631 = vmatprep.subr.mxu0 0.0
  %632 = vmatpush1.xpose.msra.mxu0 0.0
  %633 = vmatprep.subr.mxu0 0.0
  %634 = vmatpush1.xpose.msra.mxu0 0.0
  %635 = vmatprep.subr.mxu0 0.0
  %636 = vmatpush1.xpose.msra.mxu0 0.0
  %637 = vmatprep.subr.mxu0 0.0
  %638 = vmatpush1.xpose.msra.mxu0 0.0
  %639 = vmatprep.subr.mxu0 0.0
  %640 = vmatpush1.xpose.msra.mxu0 %v607
  %641 = vmatprep.subr.mxu0 0.0
  %642 = vmatpush2.xpose.msra.mxu0 0.0
  %643 = vmatprep.subr.mxu0 0.0
  %644 = vmatpush2.xpose.msra.mxu0 0.0
  %645 = vmatprep.subr.mxu0 0.0
  %646 = vmatpush2.xpose.msra.mxu0 0.0
  %647 = vmatprep.subr.mxu0 0.0
  %648 = vmatpush2.xpose.msra.mxu0 0.0
  %649 = vmatprep.subr.mxu0 0.0
  %650 = vmatpush2.xpose.msra.mxu0 0.0
  %651 = vmatprep.subr.mxu0 0.0
  %652 = vmatpush2.xpose.msra.mxu0 0.0
  %653 = vmatprep.subr.mxu0 0.0
  %654 = vmatpush2.xpose.msra.mxu0 0.0
  %655 = vmatprep.subr.mxu0 0.0
  %656 = vmatpush2.xpose.msra.mxu0 0.0
  %657 = vmatprep.subr.mxu0 0.0
  %658 = vmatpush2.xpose.msra.mxu0 0.0
  %659 = vmatprep.subr.mxu0 0.0
  %660 = vmatpush2.xpose.msra.mxu0 0.0
  %661 = vmatprep.subr.mxu0 0.0
  %662 = vmatpush2.xpose.msra.mxu0 0.0
  %663 = vmatprep.subr.mxu0 0.0
  %664 = vmatpush2.xpose.msra.mxu0 0.0
  %665 = vmatprep.subr.mxu0 0.0
  %666 = vmatpush2.xpose.msra.mxu0 0.0
  %667 = vmatprep.subr.mxu0 0.0
  %668 = vmatpush2.xpose.msra.mxu0 0.0
  %669 = vmatprep.subr.mxu0 0.0
  %670 = vmatpush2.xpose.msra.mxu0 0.0
  %671 = vmatprep.subr.mxu0 0.0
  %672 = vmatpush2.xpose.msra.mxu0 0.0
  %673 = vmatprep.mubr.f32.mxu0 0.0
  %674 = vmatmul.mubr.f32.gmra.mxu0 %v605
  %v675 = vpop.f32.mrf.mxu0
  %v676 = vadd.f32 0.0, %v675
  %v677 = vpop.f32.mrf.mxu0
  %678 = vdwg.mxu0
  %679 = vrot.lane.b32.xlu0 %v145, 96
  %v680 = vpop.permute.xlu0 %679
  %v681 = vsel %vm148, %v145, 0
  %v683 = vsel %vm148, %v680, 0
  %685 = vmatprep.subr.mxu0 0.0
  %686 = vmatpush1.xpose.msra.mxu0 0.0
  %687 = vmatprep.subr.mxu0 0.0
  %688 = vmatpush1.xpose.msra.mxu0 0.0
  %689 = vmatprep.subr.mxu0 0.0
  %690 = vmatpush1.xpose.msra.mxu0 0.0
  %691 = vmatprep.subr.mxu0 0.0
  %692 = vmatpush1.xpose.msra.mxu0 0.0
  %693 = vmatprep.subr.mxu0 0.0
  %694 = vmatpush1.xpose.msra.mxu0 0.0
  %695 = vmatprep.subr.mxu0 0.0
  %696 = vmatpush1.xpose.msra.mxu0 0.0
  %697 = vmatprep.subr.mxu0 0.0
  %698 = vmatpush1.xpose.msra.mxu0 0.0
  %699 = vmatprep.subr.mxu0 0.0
  %700 = vmatpush1.xpose.msra.mxu0 0.0
  %701 = vmatprep.subr.mxu0 0.0
  %702 = vmatpush1.xpose.msra.mxu0 0.0
  %703 = vmatprep.subr.mxu0 0.0
  %704 = vmatpush1.xpose.msra.mxu0 0.0
  %705 = vmatprep.subr.mxu0 0.0
  %706 = vmatpush1.xpose.msra.mxu0 0.0
  %707 = vmatprep.subr.mxu0 0.0
  %708 = vmatpush1.xpose.msra.mxu0 0.0
  %709 = vmatprep.subr.mxu0 0.0
  %710 = vmatpush1.xpose.msra.mxu0 0.0
  %711 = vmatprep.subr.mxu0 0.0
  %712 = vmatpush1.xpose.msra.mxu0 0.0
  %713 = vmatprep.subr.mxu0 0.0
  %714 = vmatpush1.xpose.msra.mxu0 0.0
  %715 = vmatprep.subr.mxu0 0.0
  %716 = vmatpush1.xpose.msra.mxu0 %v683
  %717 = vmatprep.subr.mxu0 0.0
  %718 = vmatpush2.xpose.msra.mxu0 0.0
  %719 = vmatprep.subr.mxu0 0.0
  %720 = vmatpush2.xpose.msra.mxu0 0.0
  %721 = vmatprep.subr.mxu0 0.0
  %722 = vmatpush2.xpose.msra.mxu0 0.0
  %723 = vmatprep.subr.mxu0 0.0
  %724 = vmatpush2.xpose.msra.mxu0 0.0
  %725 = vmatprep.subr.mxu0 0.0
  %726 = vmatpush2.xpose.msra.mxu0 0.0
  %727 = vmatprep.subr.mxu0 0.0
  %728 = vmatpush2.xpose.msra.mxu0 0.0
  %729 = vmatprep.subr.mxu0 0.0
  %730 = vmatpush2.xpose.msra.mxu0 0.0
  %731 = vmatprep.subr.mxu0 0.0
  %732 = vmatpush2.xpose.msra.mxu0 0.0
  %733 = vmatprep.subr.mxu0 0.0
  %734 = vmatpush2.xpose.msra.mxu0 0.0
  %735 = vmatprep.subr.mxu0 0.0
  %736 = vmatpush2.xpose.msra.mxu0 0.0
  %737 = vmatprep.subr.mxu0 0.0
  %738 = vmatpush2.xpose.msra.mxu0 0.0
  %739 = vmatprep.subr.mxu0 0.0
  %740 = vmatpush2.xpose.msra.mxu0 0.0
  %741 = vmatprep.subr.mxu0 0.0
  %742 = vmatpush2.xpose.msra.mxu0 0.0
  %743 = vmatprep.subr.mxu0 0.0
  %744 = vmatpush2.xpose.msra.mxu0 0.0
  %745 = vmatprep.subr.mxu0 0.0
  %746 = vmatpush2.xpose.msra.mxu0 0.0
  %747 = vmatprep.subr.mxu0 0.0
  %748 = vmatpush2.xpose.msra.mxu0 0.0
  %749 = vmatprep.mubr.f32.mxu0 0.0
  %750 = vmatmul.mubr.f32.gmra.mxu0 %v681
  %v751 = vpop.f32.mrf.mxu0
  %v752 = vadd.f32 0.0, %v751
  %v753 = vpop.f32.mrf.mxu0
  %754 = vdwg.mxu0
  %v755 = vmul.f32 %v220, 0.35355338
  %v756 = vmul.f32 %v296, 0.35355338
  %v757 = vmul.f32 %v372, 0.35355338
  %v758 = vmul.f32 %v448, 0.35355338
  %v759 = vmul.f32 %v524, 0.35355338
  %v760 = vmul.f32 %v600, 0.35355338
  %v761 = vmul.f32 %v676, 0.35355338
  %v762 = vmul.f32 %v752, 0.35355338
  %v763 = vsel %vm148, %v755, -inf
  %764 = vmax.xlane.f32.xlu0 %v763
  %v765 = vpop.xlane.xlu0 %764
  %v766 = vsel %vm148, %v756, -inf
  %767 = vmax.xlane.f32.xlu0 %v766
  %v768 = vpop.xlane.xlu0 %767
  %v769 = vsel %vm148, %v757, -inf
  %770 = vmax.xlane.f32.xlu0 %v769
  %v771 = vpop.xlane.xlu0 %770
  %v772 = vsel %vm148, %v758, -inf
  %773 = vmax.xlane.f32.xlu0 %v772
  %v774 = vpop.xlane.xlu0 %773
  %v775 = vsel %vm148, %v759, -inf
  %776 = vmax.xlane.f32.xlu0 %v775
  %v777 = vpop.xlane.xlu0 %776
  %v778 = vsel %vm148, %v760, -inf
  %779 = vmax.xlane.f32.xlu0 %v778
  %v780 = vpop.xlane.xlu0 %779
  %v781 = vsel %vm148, %v761, -inf
  %782 = vmax.xlane.f32.xlu0 %v781
  %v783 = vpop.xlane.xlu0 %782
  %v784 = vsel %vm148, %v762, -inf
  %785 = vmax.xlane.f32.xlu0 %v784
  %v786 = vpop.xlane.xlu0 %785
  %v787 = vsub.f32 %v755, %v765
  %v788 = vsub.f32 %v756, %v768
  %v789 = vsub.f32 %v757, %v771
  %v790 = vsub.f32 %v758, %v774
  %v791 = vsub.f32 %v759, %v777
  %v792 = vsub.f32 %v760, %v780
  %v793 = vsub.f32 %v761, %v783
  %v794 = vsub.f32 %v762, %v786
  %v795 = vmul.f32 %v787, 1.442695
  %v796 = vpow.pop %v795
  %v797 = vmul.f32 %v788, 1.442695
  %v798 = vpow.pop %v797
  %v799 = vmul.f32 %v789, 1.442695
  %v800 = vpow.pop %v799
  %v801 = vmul.f32 %v790, 1.442695
  %v802 = vpow.pop %v801
  %v803 = vmul.f32 %v791, 1.442695
  %v804 = vpow.pop %v803
  %v805 = vmul.f32 %v792, 1.442695
  %v806 = vpow.pop %v805
  %v807 = vmul.f32 %v793, 1.442695
  %v808 = vpow.pop %v807
  %v809 = vmul.f32 %v794, 1.442695
  %v810 = vpow.pop %v809
  %v811 = vsel %vm148, %v796, 0.0
  %812 = vadd.xlane.f32.xlu0 %v811
  %v813 = vpop.xlane.xlu0 %812
  %v814 = vsel %vm148, %v798, 0.0
  %815 = vadd.xlane.f32.xlu0 %v814
  %v816 = vpop.xlane.xlu0 %815
  %v817 = vsel %vm148, %v800, 0.0
  %818 = vadd.xlane.f32.xlu0 %v817
  %v819 = vpop.xlane.xlu0 %818
  %v820 = vsel %vm148, %v802, 0.0
  %821 = vadd.xlane.f32.xlu0 %v820
  %v822 = vpop.xlane.xlu0 %821
  %v823 = vsel %vm148, %v804, 0.0
  %824 = vadd.xlane.f32.xlu0 %v823
  %v825 = vpop.xlane.xlu0 %824
  %v826 = vsel %vm148, %v806, 0.0
  %827 = vadd.xlane.f32.xlu0 %v826
  %v828 = vpop.xlane.xlu0 %827
  %v829 = vsel %vm148, %v808, 0.0
  %830 = vadd.xlane.f32.xlu0 %v829
  %v831 = vpop.xlane.xlu0 %830
  %v832 = vsel %vm148, %v810, 0.0
  %833 = vadd.xlane.f32.xlu0 %v832
  %v834 = vpop.xlane.xlu0 %833
  %v835 = vrcp.pop %v813
  %v836 = vrcp.pop %v816
  %v837 = vrcp.pop %v819
  %v838 = vrcp.pop %v822
  %v839 = vrcp.pop %v825
  %v840 = vrcp.pop %v828
  %v841 = vrcp.pop %v831
  %v842 = vrcp.pop %v834
  %v843 = vmul.f32 %v796, %v835
  %v844 = vmul.f32 %v798, %v836
  %v845 = vmul.f32 %v800, %v837
  %v846 = vmul.f32 %v802, %v838
  %v847 = vmul.f32 %v804, %v839
  %v848 = vmul.f32 %v806, %v840
  %v849 = vmul.f32 %v808, %v841
  %v850 = vmul.f32 %v810, %v842
  %851 = vrot.lane.b32.xlu0 %v124, 64
  %v852 = vpop.permute.xlu0 %851
  %v855 = vsel %vm148, %v843, 0
  %857 = vmatprep.subr.mxu0 0.0
  %858 = vmatpush1.msra.mxu0 0.0
  %859 = vmatprep.subr.mxu0 0.0
  %860 = vmatpush1.msra.mxu0 0.0
  %861 = vmatprep.subr.mxu0 0.0
  %862 = vmatpush1.msra.mxu0 0.0
  %863 = vmatprep.subr.mxu0 0.0
  %864 = vmatpush1.msra.mxu0 0.0
  %865 = vmatprep.subr.mxu0 0.0
  %866 = vmatpush1.msra.mxu0 0.0
  %867 = vmatprep.subr.mxu0 0.0
  %868 = vmatpush1.msra.mxu0 0.0
  %869 = vmatprep.subr.mxu0 0.0
  %870 = vmatpush1.msra.mxu0 0.0
  %871 = vmatprep.subr.mxu0 0.0
  %872 = vmatpush1.msra.mxu0 0.0
  %873 = vmatprep.subr.mxu0 0.0
  %874 = vmatpush1.msra.mxu0 0.0
  %875 = vmatprep.subr.mxu0 0.0
  %876 = vmatpush1.msra.mxu0 0.0
  %877 = vmatprep.subr.mxu0 0.0
  %878 = vmatpush1.msra.mxu0 0.0
  %879 = vmatprep.subr.mxu0 0.0
  %880 = vmatpush1.msra.mxu0 0.0
  %881 = vmatprep.subr.mxu0 0.0
  %882 = vmatpush1.msra.mxu0 0.0
  %883 = vmatprep.subr.mxu0 0.0
  %884 = vmatpush1.msra.mxu0 0.0
  %885 = vmatprep.subr.mxu0 0.0
  %886 = vmatpush1.msra.mxu0 0.0
  %887 = vmatprep.subr.mxu0 0.0
  %888 = vmatpush1.msra.mxu0 %v852
  %889 = vmatprep.subr.mxu0 0.0
  %890 = vmatpush2.msra.mxu0 0.0
  %891 = vmatprep.subr.mxu0 0.0
  %892 = vmatpush2.msra.mxu0 0.0
  %893 = vmatprep.subr.mxu0 0.0
  %894 = vmatpush2.msra.mxu0 0.0
  %895 = vmatprep.subr.mxu0 0.0
  %896 = vmatpush2.msra.mxu0 0.0
  %897 = vmatprep.subr.mxu0 0.0
  %898 = vmatpush2.msra.mxu0 0.0
  %899 = vmatprep.subr.mxu0 0.0
  %900 = vmatpush2.msra.mxu0 0.0
  %901 = vmatprep.subr.mxu0 0.0
  %902 = vmatpush2.msra.mxu0 0.0
  %903 = vmatprep.subr.mxu0 0.0
  %904 = vmatpush2.msra.mxu0 0.0
  %905 = vmatprep.subr.mxu0 0.0
  %906 = vmatpush2.msra.mxu0 0.0
  %907 = vmatprep.subr.mxu0 0.0
  %908 = vmatpush2.msra.mxu0 0.0
  %909 = vmatprep.subr.mxu0 0.0
  %910 = vmatpush2.msra.mxu0 0.0
  %911 = vmatprep.subr.mxu0 0.0
  %912 = vmatpush2.msra.mxu0 0.0
  %913 = vmatprep.subr.mxu0 0.0
  %914 = vmatpush2.msra.mxu0 0.0
  %915 = vmatprep.subr.mxu0 0.0
  %916 = vmatpush2.msra.mxu0 0.0
  %917 = vmatprep.subr.mxu0 0.0
  %918 = vmatpush2.msra.mxu0 0.0
  %919 = vmatprep.subr.mxu0 0.0
  %920 = vmatpush2.msra.mxu0 0.0
  %921 = vmatprep.mubr.f32.mxu0 0.0
  %922 = vmatmul.mubr.f32.gmra.mxu0 %v855
  %v923 = vpop.f32.mrf.mxu0
  %v924 = vadd.f32 0.0, %v923
  %v925 = vpop.f32.mrf.mxu0
  %926 = vdwg.mxu0
  %927 = vrot.lane.b32.xlu0 %v129, 64
  %v928 = vpop.permute.xlu0 %927
  %v931 = vsel %vm148, %v844, 0
  %933 = vmatprep.subr.mxu0 0.0
  %934 = vmatpush1.msra.mxu0 0.0
  %935 = vmatprep.subr.mxu0 0.0
  %936 = vmatpush1.msra.mxu0 0.0
  %937 = vmatprep.subr.mxu0 0.0
  %938 = vmatpush1.msra.mxu0 0.0
  %939 = vmatprep.subr.mxu0 0.0
  %940 = vmatpush1.msra.mxu0 0.0
  %941 = vmatprep.subr.mxu0 0.0
  %942 = vmatpush1.msra.mxu0 0.0
  %943 = vmatprep.subr.mxu0 0.0
  %944 = vmatpush1.msra.mxu0 0.0
  %945 = vmatprep.subr.mxu0 0.0
  %946 = vmatpush1.msra.mxu0 0.0
  %947 = vmatprep.subr.mxu0 0.0
  %948 = vmatpush1.msra.mxu0 0.0
  %949 = vmatprep.subr.mxu0 0.0
  %950 = vmatpush1.msra.mxu0 0.0
  %951 = vmatprep.subr.mxu0 0.0
  %952 = vmatpush1.msra.mxu0 0.0
  %953 = vmatprep.subr.mxu0 0.0
  %954 = vmatpush1.msra.mxu0 0.0
  %955 = vmatprep.subr.mxu0 0.0
  %956 = vmatpush1.msra.mxu0 0.0
  %957 = vmatprep.subr.mxu0 0.0
  %958 = vmatpush1.msra.mxu0 0.0
  %959 = vmatprep.subr.mxu0 0.0
  %960 = vmatpush1.msra.mxu0 0.0
  %961 = vmatprep.subr.mxu0 0.0
  %962 = vmatpush1.msra.mxu0 0.0
  %963 = vmatprep.subr.mxu0 0.0
  %964 = vmatpush1.msra.mxu0 %v928
  %965 = vmatprep.subr.mxu0 0.0
  %966 = vmatpush2.msra.mxu0 0.0
  %967 = vmatprep.subr.mxu0 0.0
  %968 = vmatpush2.msra.mxu0 0.0
  %969 = vmatprep.subr.mxu0 0.0
  %970 = vmatpush2.msra.mxu0 0.0
  %971 = vmatprep.subr.mxu0 0.0
  %972 = vmatpush2.msra.mxu0 0.0
  %973 = vmatprep.subr.mxu0 0.0
  %974 = vmatpush2.msra.mxu0 0.0
  %975 = vmatprep.subr.mxu0 0.0
  %976 = vmatpush2.msra.mxu0 0.0
  %977 = vmatprep.subr.mxu0 0.0
  %978 = vmatpush2.msra.mxu0 0.0
  %979 = vmatprep.subr.mxu0 0.0
  %980 = vmatpush2.msra.mxu0 0.0
  %981 = vmatprep.subr.mxu0 0.0
  %982 = vmatpush2.msra.mxu0 0.0
  %983 = vmatprep.subr.mxu0 0.0
  %984 = vmatpush2.msra.mxu0 0.0
  %985 = vmatprep.subr.mxu0 0.0
  %986 = vmatpush2.msra.mxu0 0.0
  %987 = vmatprep.subr.mxu0 0.0
  %988 = vmatpush2.msra.mxu0 0.0
  %989 = vmatprep.subr.mxu0 0.0
  %990 = vmatpush2.msra.mxu0 0.0
  %991 = vmatprep.subr.mxu0 0.0
  %992 = vmatpush2.msra.mxu0 0.0
  %993 = vmatprep.subr.mxu0 0.0
  %994 = vmatpush2.msra.mxu0 0.0
  %995 = vmatprep.subr.mxu0 0.0
  %996 = vmatpush2.msra.mxu0 0.0
  %997 = vmatprep.mubr.f32.mxu0 0.0
  %998 = vmatmul.mubr.f32.gmra.mxu0 %v931
  %v999 = vpop.f32.mrf.mxu0
  %v1000 = vadd.f32 0.0, %v999
  %v1001 = vpop.f32.mrf.mxu0
  %1002 = vdwg.mxu0
  %1003 = vrot.lane.b32.xlu0 %v135, 64
  %v1004 = vpop.permute.xlu0 %1003
  %v1007 = vsel %vm148, %v845, 0
  %1009 = vmatprep.subr.mxu0 0.0
  %1010 = vmatpush1.msra.mxu0 0.0
  %1011 = vmatprep.subr.mxu0 0.0
  %1012 = vmatpush1.msra.mxu0 0.0
  %1013 = vmatprep.subr.mxu0 0.0
  %1014 = vmatpush1.msra.mxu0 0.0
  %1015 = vmatprep.subr.mxu0 0.0
  %1016 = vmatpush1.msra.mxu0 0.0
  %1017 = vmatprep.subr.mxu0 0.0
  %1018 = vmatpush1.msra.mxu0 0.0
  %1019 = vmatprep.subr.mxu0 0.0
  %1020 = vmatpush1.msra.mxu0 0.0
  %1021 = vmatprep.subr.mxu0 0.0
  %1022 = vmatpush1.msra.mxu0 0.0
  %1023 = vmatprep.subr.mxu0 0.0
  %1024 = vmatpush1.msra.mxu0 0.0
  %1025 = vmatprep.subr.mxu0 0.0
  %1026 = vmatpush1.msra.mxu0 0.0
  %1027 = vmatprep.subr.mxu0 0.0
  %1028 = vmatpush1.msra.mxu0 0.0
  %1029 = vmatprep.subr.mxu0 0.0
  %1030 = vmatpush1.msra.mxu0 0.0
  %1031 = vmatprep.subr.mxu0 0.0
  %1032 = vmatpush1.msra.mxu0 0.0
  %1033 = vmatprep.subr.mxu0 0.0
  %1034 = vmatpush1.msra.mxu0 0.0
  %1035 = vmatprep.subr.mxu0 0.0
  %1036 = vmatpush1.msra.mxu0 0.0
  %1037 = vmatprep.subr.mxu0 0.0
  %1038 = vmatpush1.msra.mxu0 0.0
  %1039 = vmatprep.subr.mxu0 0.0
  %1040 = vmatpush1.msra.mxu0 %v1004
  %1041 = vmatprep.subr.mxu0 0.0
  %1042 = vmatpush2.msra.mxu0 0.0
  %1043 = vmatprep.subr.mxu0 0.0
  %1044 = vmatpush2.msra.mxu0 0.0
  %1045 = vmatprep.subr.mxu0 0.0
  %1046 = vmatpush2.msra.mxu0 0.0
  %1047 = vmatprep.subr.mxu0 0.0
  %1048 = vmatpush2.msra.mxu0 0.0
  %1049 = vmatprep.subr.mxu0 0.0
  %1050 = vmatpush2.msra.mxu0 0.0
  %1051 = vmatprep.subr.mxu0 0.0
  %1052 = vmatpush2.msra.mxu0 0.0
  %1053 = vmatprep.subr.mxu0 0.0
  %1054 = vmatpush2.msra.mxu0 0.0
  %1055 = vmatprep.subr.mxu0 0.0
  %1056 = vmatpush2.msra.mxu0 0.0
  %1057 = vmatprep.subr.mxu0 0.0
  %1058 = vmatpush2.msra.mxu0 0.0
  %1059 = vmatprep.subr.mxu0 0.0
  %1060 = vmatpush2.msra.mxu0 0.0
  %1061 = vmatprep.subr.mxu0 0.0
  %1062 = vmatpush2.msra.mxu0 0.0
  %1063 = vmatprep.subr.mxu0 0.0
  %1064 = vmatpush2.msra.mxu0 0.0
  %1065 = vmatprep.subr.mxu0 0.0
  %1066 = vmatpush2.msra.mxu0 0.0
  %1067 = vmatprep.subr.mxu0 0.0
  %1068 = vmatpush2.msra.mxu0 0.0
  %1069 = vmatprep.subr.mxu0 0.0
  %1070 = vmatpush2.msra.mxu0 0.0
  %1071 = vmatprep.subr.mxu0 0.0
  %1072 = vmatpush2.msra.mxu0 0.0
  %1073 = vmatprep.mubr.f32.mxu0 0.0
  %1074 = vmatmul.mubr.f32.gmra.mxu0 %v1007
  %v1075 = vpop.f32.mrf.mxu0
  %v1076 = vadd.f32 0.0, %v1075
  %v1077 = vpop.f32.mrf.mxu0
  %1078 = vdwg.mxu0
  %1079 = vrot.lane.b32.xlu0 %v137, 64
  %v1080 = vpop.permute.xlu0 %1079
  %v1083 = vsel %vm148, %v846, 0
  %1085 = vmatprep.subr.mxu0 0.0
  %1086 = vmatpush1.msra.mxu0 0.0
  %1087 = vmatprep.subr.mxu0 0.0
  %1088 = vmatpush1.msra.mxu0 0.0
  %1089 = vmatprep.subr.mxu0 0.0
  %1090 = vmatpush1.msra.mxu0 0.0
  %1091 = vmatprep.subr.mxu0 0.0
  %1092 = vmatpush1.msra.mxu0 0.0
  %1093 = vmatprep.subr.mxu0 0.0
  %1094 = vmatpush1.msra.mxu0 0.0
  %1095 = vmatprep.subr.mxu0 0.0
  %1096 = vmatpush1.msra.mxu0 0.0
  %1097 = vmatprep.subr.mxu0 0.0
  %1098 = vmatpush1.msra.mxu0 0.0
  %1099 = vmatprep.subr.mxu0 0.0
  %1100 = vmatpush1.msra.mxu0 0.0
  %1101 = vmatprep.subr.mxu0 0.0
  %1102 = vmatpush1.msra.mxu0 0.0
  %1103 = vmatprep.subr.mxu0 0.0
  %1104 = vmatpush1.msra.mxu0 0.0
  %1105 = vmatprep.subr.mxu0 0.0
  %1106 = vmatpush1.msra.mxu0 0.0
  %1107 = vmatprep.subr.mxu0 0.0
  %1108 = vmatpush1.msra.mxu0 0.0
  %1109 = vmatprep.subr.mxu0 0.0
  %1110 = vmatpush1.msra.mxu0 0.0
  %1111 = vmatprep.subr.mxu0 0.0
  %1112 = vmatpush1.msra.mxu0 0.0
  %1113 = vmatprep.subr.mxu0 0.0
  %1114 = vmatpush1.msra.mxu0 0.0
  %1115 = vmatprep.subr.mxu0 0.0
  %1116 = vmatpush1.msra.mxu0 %v1080
  %1117 = vmatprep.subr.mxu0 0.0
  %1118 = vmatpush2.msra.mxu0 0.0
  %1119 = vmatprep.subr.mxu0 0.0
  %1120 = vmatpush2.msra.mxu0 0.0
  %1121 = vmatprep.subr.mxu0 0.0
  %1122 = vmatpush2.msra.mxu0 0.0
  %1123 = vmatprep.subr.mxu0 0.0
  %1124 = vmatpush2.msra.mxu0 0.0
  %1125 = vmatprep.subr.mxu0 0.0
  %1126 = vmatpush2.msra.mxu0 0.0
  %1127 = vmatprep.subr.mxu0 0.0
  %1128 = vmatpush2.msra.mxu0 0.0
  %1129 = vmatprep.subr.mxu0 0.0
  %1130 = vmatpush2.msra.mxu0 0.0
  %1131 = vmatprep.subr.mxu0 0.0
  %1132 = vmatpush2.msra.mxu0 0.0
  %1133 = vmatprep.subr.mxu0 0.0
  %1134 = vmatpush2.msra.mxu0 0.0
  %1135 = vmatprep.subr.mxu0 0.0
  %1136 = vmatpush2.msra.mxu0 0.0
  %1137 = vmatprep.subr.mxu0 0.0
  %1138 = vmatpush2.msra.mxu0 0.0
  %1139 = vmatprep.subr.mxu0 0.0
  %1140 = vmatpush2.msra.mxu0 0.0
  %1141 = vmatprep.subr.mxu0 0.0
  %1142 = vmatpush2.msra.mxu0 0.0
  %1143 = vmatprep.subr.mxu0 0.0
  %1144 = vmatpush2.msra.mxu0 0.0
  %1145 = vmatprep.subr.mxu0 0.0
  %1146 = vmatpush2.msra.mxu0 0.0
  %1147 = vmatprep.subr.mxu0 0.0
  %1148 = vmatpush2.msra.mxu0 0.0
  %1149 = vmatprep.mubr.f32.mxu0 0.0
  %1150 = vmatmul.mubr.f32.gmra.mxu0 %v1083
  %v1151 = vpop.f32.mrf.mxu0
  %v1152 = vadd.f32 0.0, %v1151
  %v1153 = vpop.f32.mrf.mxu0
  %1154 = vdwg.mxu0
  %1155 = vrot.lane.b32.xlu0 %v139, 64
  %v1156 = vpop.permute.xlu0 %1155
  %v1159 = vsel %vm148, %v847, 0
  %1161 = vmatprep.subr.mxu0 0.0
  %1162 = vmatpush1.msra.mxu0 0.0
  %1163 = vmatprep.subr.mxu0 0.0
  %1164 = vmatpush1.msra.mxu0 0.0
  %1165 = vmatprep.subr.mxu0 0.0
  %1166 = vmatpush1.msra.mxu0 0.0
  %1167 = vmatprep.subr.mxu0 0.0
  %1168 = vmatpush1.msra.mxu0 0.0
  %1169 = vmatprep.subr.mxu0 0.0
  %1170 = vmatpush1.msra.mxu0 0.0
  %1171 = vmatprep.subr.mxu0 0.0
  %1172 = vmatpush1.msra.mxu0 0.0
  %1173 = vmatprep.subr.mxu0 0.0
  %1174 = vmatpush1.msra.mxu0 0.0
  %1175 = vmatprep.subr.mxu0 0.0
  %1176 = vmatpush1.msra.mxu0 0.0
  %1177 = vmatprep.subr.mxu0 0.0
  %1178 = vmatpush1.msra.mxu0 0.0
  %1179 = vmatprep.subr.mxu0 0.0
  %1180 = vmatpush1.msra.mxu0 0.0
  %1181 = vmatprep.subr.mxu0 0.0
  %1182 = vmatpush1.msra.mxu0 0.0
  %1183 = vmatprep.subr.mxu0 0.0
  %1184 = vmatpush1.msra.mxu0 0.0
  %1185 = vmatprep.subr.mxu0 0.0
  %1186 = vmatpush1.msra.mxu0 0.0
  %1187 = vmatprep.subr.mxu0 0.0
  %1188 = vmatpush1.msra.mxu0 0.0
  %1189 = vmatprep.subr.mxu0 0.0
  %1190 = vmatpush1.msra.mxu0 0.0
  %1191 = vmatprep.subr.mxu0 0.0
  %1192 = vmatpush1.msra.mxu0 %v1156
  %1193 = vmatprep.subr.mxu0 0.0
  %1194 = vmatpush2.msra.mxu0 0.0
  %1195 = vmatprep.subr.mxu0 0.0
  %1196 = vmatpush2.msra.mxu0 0.0
  %1197 = vmatprep.subr.mxu0 0.0
  %1198 = vmatpush2.msra.mxu0 0.0
  %1199 = vmatprep.subr.mxu0 0.0
  %1200 = vmatpush2.msra.mxu0 0.0
  %1201 = vmatprep.subr.mxu0 0.0
  %1202 = vmatpush2.msra.mxu0 0.0
  %1203 = vmatprep.subr.mxu0 0.0
  %1204 = vmatpush2.msra.mxu0 0.0
  %1205 = vmatprep.subr.mxu0 0.0
  %1206 = vmatpush2.msra.mxu0 0.0
  %1207 = vmatprep.subr.mxu0 0.0
  %1208 = vmatpush2.msra.mxu0 0.0
  %1209 = vmatprep.subr.mxu0 0.0
  %1210 = vmatpush2.msra.mxu0 0.0
  %1211 = vmatprep.subr.mxu0 0.0
  %1212 = vmatpush2.msra.mxu0 0.0
  %1213 = vmatprep.subr.mxu0 0.0
  %1214 = vmatpush2.msra.mxu0 0.0
  %1215 = vmatprep.subr.mxu0 0.0
  %1216 = vmatpush2.msra.mxu0 0.0
  %1217 = vmatprep.subr.mxu0 0.0
  %1218 = vmatpush2.msra.mxu0 0.0
  %1219 = vmatprep.subr.mxu0 0.0
  %1220 = vmatpush2.msra.mxu0 0.0
  %1221 = vmatprep.subr.mxu0 0.0
  %1222 = vmatpush2.msra.mxu0 0.0
  %1223 = vmatprep.subr.mxu0 0.0
  %1224 = vmatpush2.msra.mxu0 0.0
  %1225 = vmatprep.mubr.f32.mxu0 0.0
  %1226 = vmatmul.mubr.f32.gmra.mxu0 %v1159
  %v1227 = vpop.f32.mrf.mxu0
  %v1228 = vadd.f32 0.0, %v1227
  %v1229 = vpop.f32.mrf.mxu0
  %1230 = vdwg.mxu0
  %1231 = vrot.lane.b32.xlu0 %v141, 64
  %v1232 = vpop.permute.xlu0 %1231
  %v1235 = vsel %vm148, %v848, 0
  %1237 = vmatprep.subr.mxu0 0.0
  %1238 = vmatpush1.msra.mxu0 0.0
  %1239 = vmatprep.subr.mxu0 0.0
  %1240 = vmatpush1.msra.mxu0 0.0
  %1241 = vmatprep.subr.mxu0 0.0
  %1242 = vmatpush1.msra.mxu0 0.0
  %1243 = vmatprep.subr.mxu0 0.0
  %1244 = vmatpush1.msra.mxu0 0.0
  %1245 = vmatprep.subr.mxu0 0.0
  %1246 = vmatpush1.msra.mxu0 0.0
  %1247 = vmatprep.subr.mxu0 0.0
  %1248 = vmatpush1.msra.mxu0 0.0
  %1249 = vmatprep.subr.mxu0 0.0
  %1250 = vmatpush1.msra.mxu0 0.0
  %1251 = vmatprep.subr.mxu0 0.0
  %1252 = vmatpush1.msra.mxu0 0.0
  %1253 = vmatprep.subr.mxu0 0.0
  %1254 = vmatpush1.msra.mxu0 0.0
  %1255 = vmatprep.subr.mxu0 0.0
  %1256 = vmatpush1.msra.mxu0 0.0
  %1257 = vmatprep.subr.mxu0 0.0
  %1258 = vmatpush1.msra.mxu0 0.0
  %1259 = vmatprep.subr.mxu0 0.0
  %1260 = vmatpush1.msra.mxu0 0.0
  %1261 = vmatprep.subr.mxu0 0.0
  %1262 = vmatpush1.msra.mxu0 0.0
  %1263 = vmatprep.subr.mxu0 0.0
  %1264 = vmatpush1.msra.mxu0 0.0
  %1265 = vmatprep.subr.mxu0 0.0
  %1266 = vmatpush1.msra.mxu0 0.0
  %1267 = vmatprep.subr.mxu0 0.0
  %1268 = vmatpush1.msra.mxu0 %v1232
  %1269 = vmatprep.subr.mxu0 0.0
  %1270 = vmatpush2.msra.mxu0 0.0
  %1271 = vmatprep.subr.mxu0 0.0
  %1272 = vmatpush2.msra.mxu0 0.0
  %1273 = vmatprep.subr.mxu0 0.0
  %1274 = vmatpush2.msra.mxu0 0.0
  %1275 = vmatprep.subr.mxu0 0.0
  %1276 = vmatpush2.msra.mxu0 0.0
  %1277 = vmatprep.subr.mxu0 0.0
  %1278 = vmatpush2.msra.mxu0 0.0
  %1279 = vmatprep.subr.mxu0 0.0
  %1280 = vmatpush2.msra.mxu0 0.0
  %1281 = vmatprep.subr.mxu0 0.0
  %1282 = vmatpush2.msra.mxu0 0.0
  %1283 = vmatprep.subr.mxu0 0.0
  %1284 = vmatpush2.msra.mxu0 0.0
  %1285 = vmatprep.subr.mxu0 0.0
  %1286 = vmatpush2.msra.mxu0 0.0
  %1287 = vmatprep.subr.mxu0 0.0
  %1288 = vmatpush2.msra.mxu0 0.0
  %1289 = vmatprep.subr.mxu0 0.0
  %1290 = vmatpush2.msra.mxu0 0.0
  %1291 = vmatprep.subr.mxu0 0.0
  %1292 = vmatpush2.msra.mxu0 0.0
  %1293 = vmatprep.subr.mxu0 0.0
  %1294 = vmatpush2.msra.mxu0 0.0
  %1295 = vmatprep.subr.mxu0 0.0
  %1296 = vmatpush2.msra.mxu0 0.0
  %1297 = vmatprep.subr.mxu0 0.0
  %1298 = vmatpush2.msra.mxu0 0.0
  %1299 = vmatprep.subr.mxu0 0.0
  %1300 = vmatpush2.msra.mxu0 0.0
  %1301 = vmatprep.mubr.f32.mxu0 0.0
  %1302 = vmatmul.mubr.f32.gmra.mxu0 %v1235
  %v1303 = vpop.f32.mrf.mxu0
  %v1304 = vadd.f32 0.0, %v1303
  %v1305 = vpop.f32.mrf.mxu0
  %1306 = vdwg.mxu0
  %1307 = vrot.lane.b32.xlu0 %v143, 64
  %v1308 = vpop.permute.xlu0 %1307
  %v1311 = vsel %vm148, %v849, 0
  %1313 = vmatprep.subr.mxu0 0.0
  %1314 = vmatpush1.msra.mxu0 0.0
  %1315 = vmatprep.subr.mxu0 0.0
  %1316 = vmatpush1.msra.mxu0 0.0
  %1317 = vmatprep.subr.mxu0 0.0
  %1318 = vmatpush1.msra.mxu0 0.0
  %1319 = vmatprep.subr.mxu0 0.0
  %1320 = vmatpush1.msra.mxu0 0.0
  %1321 = vmatprep.subr.mxu0 0.0
  %1322 = vmatpush1.msra.mxu0 0.0
  %1323 = vmatprep.subr.mxu0 0.0
  %1324 = vmatpush1.msra.mxu0 0.0
  %1325 = vmatprep.subr.mxu0 0.0
  %1326 = vmatpush1.msra.mxu0 0.0
  %1327 = vmatprep.subr.mxu0 0.0
  %1328 = vmatpush1.msra.mxu0 0.0
  %1329 = vmatprep.subr.mxu0 0.0
  %1330 = vmatpush1.msra.mxu0 0.0
  %1331 = vmatprep.subr.mxu0 0.0
  %1332 = vmatpush1.msra.mxu0 0.0
  %1333 = vmatprep.subr.mxu0 0.0
  %1334 = vmatpush1.msra.mxu0 0.0
  %1335 = vmatprep.subr.mxu0 0.0
  %1336 = vmatpush1.msra.mxu0 0.0
  %1337 = vmatprep.subr.mxu0 0.0
  %1338 = vmatpush1.msra.mxu0 0.0
  %1339 = vmatprep.subr.mxu0 0.0
  %1340 = vmatpush1.msra.mxu0 0.0
  %1341 = vmatprep.subr.mxu0 0.0
  %1342 = vmatpush1.msra.mxu0 0.0
  %1343 = vmatprep.subr.mxu0 0.0
  %1344 = vmatpush1.msra.mxu0 %v1308
  %1345 = vmatprep.subr.mxu0 0.0
  %1346 = vmatpush2.msra.mxu0 0.0
  %1347 = vmatprep.subr.mxu0 0.0
  %1348 = vmatpush2.msra.mxu0 0.0
  %1349 = vmatprep.subr.mxu0 0.0
  %1350 = vmatpush2.msra.mxu0 0.0
  %1351 = vmatprep.subr.mxu0 0.0
  %1352 = vmatpush2.msra.mxu0 0.0
  %1353 = vmatprep.subr.mxu0 0.0
  %1354 = vmatpush2.msra.mxu0 0.0
  %1355 = vmatprep.subr.mxu0 0.0
  %1356 = vmatpush2.msra.mxu0 0.0
  %1357 = vmatprep.subr.mxu0 0.0
  %1358 = vmatpush2.msra.mxu0 0.0
  %1359 = vmatprep.subr.mxu0 0.0
  %1360 = vmatpush2.msra.mxu0 0.0
  %1361 = vmatprep.subr.mxu0 0.0
  %1362 = vmatpush2.msra.mxu0 0.0
  %1363 = vmatprep.subr.mxu0 0.0
  %1364 = vmatpush2.msra.mxu0 0.0
  %1365 = vmatprep.subr.mxu0 0.0
  %1366 = vmatpush2.msra.mxu0 0.0
  %1367 = vmatprep.subr.mxu0 0.0
  %1368 = vmatpush2.msra.mxu0 0.0
  %1369 = vmatprep.subr.mxu0 0.0
  %1370 = vmatpush2.msra.mxu0 0.0
  %1371 = vmatprep.subr.mxu0 0.0
  %1372 = vmatpush2.msra.mxu0 0.0
  %1373 = vmatprep.subr.mxu0 0.0
  %1374 = vmatpush2.msra.mxu0 0.0
  %1375 = vmatprep.subr.mxu0 0.0
  %1376 = vmatpush2.msra.mxu0 0.0
  %1377 = vmatprep.mubr.f32.mxu0 0.0
  %1378 = vmatmul.mubr.f32.gmra.mxu0 %v1311
  %v1379 = vpop.f32.mrf.mxu0
  %v1380 = vadd.f32 0.0, %v1379
  %v1381 = vpop.f32.mrf.mxu0
  %1382 = vdwg.mxu0
  %1383 = vrot.lane.b32.xlu0 %v145, 64
  %v1384 = vpop.permute.xlu0 %1383
  %v1387 = vsel %vm148, %v850, 0
  %1389 = vmatprep.subr.mxu0 0.0
  %1390 = vmatpush1.msra.mxu0 0.0
  %1391 = vmatprep.subr.mxu0 0.0
  %1392 = vmatpush1.msra.mxu0 0.0
  %1393 = vmatprep.subr.mxu0 0.0
  %1394 = vmatpush1.msra.mxu0 0.0
  %1395 = vmatprep.subr.mxu0 0.0
  %1396 = vmatpush1.msra.mxu0 0.0
  %1397 = vmatprep.subr.mxu0 0.0
  %1398 = vmatpush1.msra.mxu0 0.0
  %1399 = vmatprep.subr.mxu0 0.0
  %1400 = vmatpush1.msra.mxu0 0.0
  %1401 = vmatprep.subr.mxu0 0.0
  %1402 = vmatpush1.msra.mxu0 0.0
  %1403 = vmatprep.subr.mxu0 0.0
  %1404 = vmatpush1.msra.mxu0 0.0
  %1405 = vmatprep.subr.mxu0 0.0
  %1406 = vmatpush1.msra.mxu0 0.0
  %1407 = vmatprep.subr.mxu0 0.0
  %1408 = vmatpush1.msra.mxu0 0.0
  %1409 = vmatprep.subr.mxu0 0.0
  %1410 = vmatpush1.msra.mxu0 0.0
  %1411 = vmatprep.subr.mxu0 0.0
  %1412 = vmatpush1.msra.mxu0 0.0
  %1413 = vmatprep.subr.mxu0 0.0
  %1414 = vmatpush1.msra.mxu0 0.0
  %1415 = vmatprep.subr.mxu0 0.0
  %1416 = vmatpush1.msra.mxu0 0.0
  %1417 = vmatprep.subr.mxu0 0.0
  %1418 = vmatpush1.msra.mxu0 0.0
  %1419 = vmatprep.subr.mxu0 0.0
  %1420 = vmatpush1.msra.mxu0 %v1384
  %1421 = vmatprep.subr.mxu0 0.0
  %1422 = vmatpush2.msra.mxu0 0.0
  %1423 = vmatprep.subr.mxu0 0.0
  %1424 = vmatpush2.msra.mxu0 0.0
  %1425 = vmatprep.subr.mxu0 0.0
  %1426 = vmatpush2.msra.mxu0 0.0
  %1427 = vmatprep.subr.mxu0 0.0
  %1428 = vmatpush2.msra.mxu0 0.0
  %1429 = vmatprep.subr.mxu0 0.0
  %1430 = vmatpush2.msra.mxu0 0.0
  %1431 = vmatprep.subr.mxu0 0.0
  %1432 = vmatpush2.msra.mxu0 0.0
  %1433 = vmatprep.subr.mxu0 0.0
  %1434 = vmatpush2.msra.mxu0 0.0
  %1435 = vmatprep.subr.mxu0 0.0
  %1436 = vmatpush2.msra.mxu0 0.0
  %1437 = vmatprep.subr.mxu0 0.0
  %1438 = vmatpush2.msra.mxu0 0.0
  %1439 = vmatprep.subr.mxu0 0.0
  %1440 = vmatpush2.msra.mxu0 0.0
  %1441 = vmatprep.subr.mxu0 0.0
  %1442 = vmatpush2.msra.mxu0 0.0
  %1443 = vmatprep.subr.mxu0 0.0
  %1444 = vmatpush2.msra.mxu0 0.0
  %1445 = vmatprep.subr.mxu0 0.0
  %1446 = vmatpush2.msra.mxu0 0.0
  %1447 = vmatprep.subr.mxu0 0.0
  %1448 = vmatpush2.msra.mxu0 0.0
  %1449 = vmatprep.subr.mxu0 0.0
  %1450 = vmatpush2.msra.mxu0 0.0
  %1451 = vmatprep.subr.mxu0 0.0
  %1452 = vmatpush2.msra.mxu0 0.0
  %1453 = vmatprep.mubr.f32.mxu0 0.0
  %1454 = vmatmul.mubr.f32.gmra.mxu0 %v1387
  %v1455 = vpop.f32.mrf.mxu0
  %v1456 = vadd.f32 0.0, %v1455
  %v1457 = vpop.f32.mrf.mxu0
  %1458 = vdwg.mxu0
  %v1460 = vsel %vm148, %v924, 0
  %v1463 = vsel %vm148, %v1000, 0
  %1465 = vmatprep.subr.mxu0 0.0
  %1466 = vmatpush1.msra.mxu0 0.0
  %1467 = vmatprep.subr.mxu0 0.0
  %1468 = vmatpush1.msra.mxu0 0.0
  %1469 = vmatprep.subr.mxu0 0.0
  %1470 = vmatpush1.msra.mxu0 0.0
  %1471 = vmatprep.subr.mxu0 0.0
  %1472 = vmatpush1.msra.mxu0 0.0
  %1473 = vmatprep.subr.mxu0 0.0
  %1474 = vmatpush1.msra.mxu0 0.0
  %1475 = vmatprep.subr.mxu0 0.0
  %1476 = vmatpush1.msra.mxu0 0.0
  %1477 = vmatprep.subr.mxu0 0.0
  %1478 = vmatpush1.msra.mxu0 0.0
  %1479 = vmatprep.subr.mxu0 0.0
  %1480 = vmatpush1.msra.mxu0 0.0
  %1481 = vmatprep.subr.mxu0 0.0
  %1482 = vmatpush1.msra.mxu0 0.0
  %1483 = vmatprep.subr.mxu0 0.0
  %1484 = vmatpush1.msra.mxu0 0.0
  %1485 = vmatprep.subr.mxu0 0.0
  %1486 = vmatpush1.msra.mxu0 0.0
  %1487 = vmatprep.subr.mxu0 0.0
  %1488 = vmatpush1.msra.mxu0 0.0
  %1489 = vmatprep.subr.mxu0 0.0
  %1490 = vmatpush1.msra.mxu0 0.0
  %1491 = vmatprep.subr.mxu0 0.0
  %1492 = vmatpush1.msra.mxu0 0.0
  %1493 = vmatprep.subr.mxu0 0.0
  %1494 = vmatpush1.msra.mxu0 0.0
  %1495 = vmatprep.subr.mxu0 0.0
  %1496 = vmatpush1.msra.mxu0 %v29
  %1497 = vmatprep.subr.mxu0 0.0
  %1498 = vmatpush2.msra.mxu0 0.0
  %1499 = vmatprep.subr.mxu0 0.0
  %1500 = vmatpush2.msra.mxu0 0.0
  %1501 = vmatprep.subr.mxu0 0.0
  %1502 = vmatpush2.msra.mxu0 0.0
  %1503 = vmatprep.subr.mxu0 0.0
  %1504 = vmatpush2.msra.mxu0 0.0
  %1505 = vmatprep.subr.mxu0 0.0
  %1506 = vmatpush2.msra.mxu0 0.0
  %1507 = vmatprep.subr.mxu0 0.0
  %1508 = vmatpush2.msra.mxu0 0.0
  %1509 = vmatprep.subr.mxu0 0.0
  %1510 = vmatpush2.msra.mxu0 0.0
  %1511 = vmatprep.subr.mxu0 0.0
  %1512 = vmatpush2.msra.mxu0 0.0
  %1513 = vmatprep.subr.mxu0 0.0
  %1514 = vmatpush2.msra.mxu0 0.0
  %1515 = vmatprep.subr.mxu0 0.0
  %1516 = vmatpush2.msra.mxu0 0.0
  %1517 = vmatprep.subr.mxu0 0.0
  %1518 = vmatpush2.msra.mxu0 0.0
  %1519 = vmatprep.subr.mxu0 0.0
  %1520 = vmatpush2.msra.mxu0 0.0
  %1521 = vmatprep.subr.mxu0 0.0
  %1522 = vmatpush2.msra.mxu0 0.0
  %1523 = vmatprep.subr.mxu0 0.0
  %1524 = vmatpush2.msra.mxu0 0.0
  %1525 = vmatprep.subr.mxu0 0.0
  %1526 = vmatpush2.msra.mxu0 0.0
  %1527 = vmatprep.subr.mxu0 0.0
  %1528 = vmatpush2.msra.mxu0 0.0
  %1529 = vmatprep.mubr.f32.mxu0 0.0
  %1530 = vmatmul.mubr.f32.gmra.mxu0 %v1460
  %v1531 = vpop.f32.mrf.mxu0
  %v1532 = vadd.f32 0.0, %v1531
  %v1533 = vpop.f32.mrf.mxu0
  %1534 = vmatprep.mubr.f32.mxu0 0.0
  %1535 = vmatmul.mubr.f32.gmra.mxu0 %v1463
  %v1536 = vpop.f32.mrf.mxu0
  %v1537 = vadd.f32 0.0, %v1536
  %v1538 = vpop.f32.mrf.mxu0
  %1539 = vdwg.mxu0
  %v1540 = vlaneseq
  %v1541 = vshrl.u32 %v1540, 7
  %v1542 = vsub.s32 1, %v1541
  %v1543 = vrot.slane %v45, %v1542
  %v1544 = vadd.f32 %v1543, %v1532
  %v1545 = vadd.f32 %v1543, %v1537
  %v1547 = vsel %vm148, %v1076, 0
  %v1550 = vsel %vm148, %v1152, 0
  %1552 = vmatprep.subr.mxu0 0.0
  %1553 = vmatpush1.msra.mxu0 0.0
  %1554 = vmatprep.subr.mxu0 0.0
  %1555 = vmatpush1.msra.mxu0 0.0
  %1556 = vmatprep.subr.mxu0 0.0
  %1557 = vmatpush1.msra.mxu0 0.0
  %1558 = vmatprep.subr.mxu0 0.0
  %1559 = vmatpush1.msra.mxu0 0.0
  %1560 = vmatprep.subr.mxu0 0.0
  %1561 = vmatpush1.msra.mxu0 0.0
  %1562 = vmatprep.subr.mxu0 0.0
  %1563 = vmatpush1.msra.mxu0 0.0
  %1564 = vmatprep.subr.mxu0 0.0
  %1565 = vmatpush1.msra.mxu0 0.0
  %1566 = vmatprep.subr.mxu0 0.0
  %1567 = vmatpush1.msra.mxu0 0.0
  %1568 = vmatprep.subr.mxu0 0.0
  %1569 = vmatpush1.msra.mxu0 0.0
  %1570 = vmatprep.subr.mxu0 0.0
  %1571 = vmatpush1.msra.mxu0 0.0
  %1572 = vmatprep.subr.mxu0 0.0
  %1573 = vmatpush1.msra.mxu0 0.0
  %1574 = vmatprep.subr.mxu0 0.0
  %1575 = vmatpush1.msra.mxu0 0.0
  %1576 = vmatprep.subr.mxu0 0.0
  %1577 = vmatpush1.msra.mxu0 0.0
  %1578 = vmatprep.subr.mxu0 0.0
  %1579 = vmatpush1.msra.mxu0 0.0
  %1580 = vmatprep.subr.mxu0 0.0
  %1581 = vmatpush1.msra.mxu0 0.0
  %1582 = vmatprep.subr.mxu0 0.0
  %1583 = vmatpush1.msra.mxu0 %v30
  %1584 = vmatprep.subr.mxu0 0.0
  %1585 = vmatpush2.msra.mxu0 0.0
  %1586 = vmatprep.subr.mxu0 0.0
  %1587 = vmatpush2.msra.mxu0 0.0
  %1588 = vmatprep.subr.mxu0 0.0
  %1589 = vmatpush2.msra.mxu0 0.0
  %1590 = vmatprep.subr.mxu0 0.0
  %1591 = vmatpush2.msra.mxu0 0.0
  %1592 = vmatprep.subr.mxu0 0.0
  %1593 = vmatpush2.msra.mxu0 0.0
  %1594 = vmatprep.subr.mxu0 0.0
  %1595 = vmatpush2.msra.mxu0 0.0
  %1596 = vmatprep.subr.mxu0 0.0
  %1597 = vmatpush2.msra.mxu0 0.0
  %1598 = vmatprep.subr.mxu0 0.0
  %1599 = vmatpush2.msra.mxu0 0.0
  %1600 = vmatprep.subr.mxu0 0.0
  %1601 = vmatpush2.msra.mxu0 0.0
  %1602 = vmatprep.subr.mxu0 0.0
  %1603 = vmatpush2.msra.mxu0 0.0
  %1604 = vmatprep.subr.mxu0 0.0
  %1605 = vmatpush2.msra.mxu0 0.0
  %1606 = vmatprep.subr.mxu0 0.0
  %1607 = vmatpush2.msra.mxu0 0.0
  %1608 = vmatprep.subr.mxu0 0.0
  %1609 = vmatpush2.msra.mxu0 0.0
  %1610 = vmatprep.subr.mxu0 0.0
  %1611 = vmatpush2.msra.mxu0 0.0
  %1612 = vmatprep.subr.mxu0 0.0
  %1613 = vmatpush2.msra.mxu0 0.0
  %1614 = vmatprep.subr.mxu0 0.0
  %1615 = vmatpush2.msra.mxu0 0.0
  %1616 = vmatprep.mubr.f32.mxu0 0.0
  %1617 = vmatmul.mubr.f32.gmra.mxu0 %v1547
  %v1618 = vpop.f32.mrf.mxu0
  %v1619 = vadd.f32 0.0, %v1618
  %v1620 = vpop.f32.mrf.mxu0
  %1621 = vmatprep.mubr.f32.mxu0 0.0
  %1622 = vmatmul.mubr.f32.gmra.mxu0 %v1550
  %v1623 = vpop.f32.mrf.mxu0
  %v1624 = vadd.f32 0.0, %v1623
  %v1625 = vpop.f32.mrf.mxu0
  %1626 = vdwg.mxu0
  %v1627 = vadd.f32 %v1544, %v1619
  %v1628 = vadd.f32 %v1545, %v1624
  %v1630 = vsel %vm148, %v1228, 0
  %v1633 = vsel %vm148, %v1304, 0
  %1635 = vmatprep.subr.mxu0 0.0
  %1636 = vmatpush1.msra.mxu0 0.0
  %1637 = vmatprep.subr.mxu0 0.0
  %1638 = vmatpush1.msra.mxu0 0.0
  %1639 = vmatprep.subr.mxu0 0.0
  %1640 = vmatpush1.msra.mxu0 0.0
  %1641 = vmatprep.subr.mxu0 0.0
  %1642 = vmatpush1.msra.mxu0 0.0
  %1643 = vmatprep.subr.mxu0 0.0
  %1644 = vmatpush1.msra.mxu0 0.0
  %1645 = vmatprep.subr.mxu0 0.0
  %1646 = vmatpush1.msra.mxu0 0.0
  %1647 = vmatprep.subr.mxu0 0.0
  %1648 = vmatpush1.msra.mxu0 0.0
  %1649 = vmatprep.subr.mxu0 0.0
  %1650 = vmatpush1.msra.mxu0 0.0
  %1651 = vmatprep.subr.mxu0 0.0
  %1652 = vmatpush1.msra.mxu0 0.0
  %1653 = vmatprep.subr.mxu0 0.0
  %1654 = vmatpush1.msra.mxu0 0.0
  %1655 = vmatprep.subr.mxu0 0.0
  %1656 = vmatpush1.msra.mxu0 0.0
  %1657 = vmatprep.subr.mxu0 0.0
  %1658 = vmatpush1.msra.mxu0 0.0
  %1659 = vmatprep.subr.mxu0 0.0
  %1660 = vmatpush1.msra.mxu0 0.0
  %1661 = vmatprep.subr.mxu0 0.0
  %1662 = vmatpush1.msra.mxu0 0.0
  %1663 = vmatprep.subr.mxu0 0.0
  %1664 = vmatpush1.msra.mxu0 0.0
  %1665 = vmatprep.subr.mxu0 0.0
  %1666 = vmatpush1.msra.mxu0 %v31
  %1667 = vmatprep.subr.mxu0 0.0
  %1668 = vmatpush2.msra.mxu0 0.0
  %1669 = vmatprep.subr.mxu0 0.0
  %1670 = vmatpush2.msra.mxu0 0.0
  %1671 = vmatprep.subr.mxu0 0.0
  %1672 = vmatpush2.msra.mxu0 0.0
  %1673 = vmatprep.subr.mxu0 0.0
  %1674 = vmatpush2.msra.mxu0 0.0
  %1675 = vmatprep.subr.mxu0 0.0
  %1676 = vmatpush2.msra.mxu0 0.0
  %1677 = vmatprep.subr.mxu0 0.0
  %1678 = vmatpush2.msra.mxu0 0.0
  %1679 = vmatprep.subr.mxu0 0.0
  %1680 = vmatpush2.msra.mxu0 0.0
  %1681 = vmatprep.subr.mxu0 0.0
  %1682 = vmatpush2.msra.mxu0 0.0
  %1683 = vmatprep.subr.mxu0 0.0
  %1684 = vmatpush2.msra.mxu0 0.0
  %1685 = vmatprep.subr.mxu0 0.0
  %1686 = vmatpush2.msra.mxu0 0.0
  %1687 = vmatprep.subr.mxu0 0.0
  %1688 = vmatpush2.msra.mxu0 0.0
  %1689 = vmatprep.subr.mxu0 0.0
  %1690 = vmatpush2.msra.mxu0 0.0
  %1691 = vmatprep.subr.mxu0 0.0
  %1692 = vmatpush2.msra.mxu0 0.0
  %1693 = vmatprep.subr.mxu0 0.0
  %1694 = vmatpush2.msra.mxu0 0.0
  %1695 = vmatprep.subr.mxu0 0.0
  %1696 = vmatpush2.msra.mxu0 0.0
  %1697 = vmatprep.subr.mxu0 0.0
  %1698 = vmatpush2.msra.mxu0 0.0
  %1699 = vmatprep.mubr.f32.mxu0 0.0
  %1700 = vmatmul.mubr.f32.gmra.mxu0 %v1630
  %v1701 = vpop.f32.mrf.mxu0
  %v1702 = vadd.f32 0.0, %v1701
  %v1703 = vpop.f32.mrf.mxu0
  %1704 = vmatprep.mubr.f32.mxu0 0.0
  %1705 = vmatmul.mubr.f32.gmra.mxu0 %v1633
  %v1706 = vpop.f32.mrf.mxu0
  %v1707 = vadd.f32 0.0, %v1706
  %v1708 = vpop.f32.mrf.mxu0
  %1709 = vdwg.mxu0
  %v1710 = vadd.f32 %v1627, %v1702
  %v1711 = vadd.f32 %v1628, %v1707
  %v1713 = vsel %vm148, %v1380, 0
  %v1716 = vsel %vm148, %v1456, 0
  %1718 = vmatprep.subr.mxu0 0.0
  %1719 = vmatpush1.msra.mxu0 0.0
  %1720 = vmatprep.subr.mxu0 0.0
  %1721 = vmatpush1.msra.mxu0 0.0
  %1722 = vmatprep.subr.mxu0 0.0
  %1723 = vmatpush1.msra.mxu0 0.0
  %1724 = vmatprep.subr.mxu0 0.0
  %1725 = vmatpush1.msra.mxu0 0.0
  %1726 = vmatprep.subr.mxu0 0.0
  %1727 = vmatpush1.msra.mxu0 0.0
  %1728 = vmatprep.subr.mxu0 0.0
  %1729 = vmatpush1.msra.mxu0 0.0
  %1730 = vmatprep.subr.mxu0 0.0
  %1731 = vmatpush1.msra.mxu0 0.0
  %1732 = vmatprep.subr.mxu0 0.0
  %1733 = vmatpush1.msra.mxu0 0.0
  %1734 = vmatprep.subr.mxu0 0.0
  %1735 = vmatpush1.msra.mxu0 0.0
  %1736 = vmatprep.subr.mxu0 0.0
  %1737 = vmatpush1.msra.mxu0 0.0
  %1738 = vmatprep.subr.mxu0 0.0
  %1739 = vmatpush1.msra.mxu0 0.0
  %1740 = vmatprep.subr.mxu0 0.0
  %1741 = vmatpush1.msra.mxu0 0.0
  %1742 = vmatprep.subr.mxu0 0.0
  %1743 = vmatpush1.msra.mxu0 0.0
  %1744 = vmatprep.subr.mxu0 0.0
  %1745 = vmatpush1.msra.mxu0 0.0
  %1746 = vmatprep.subr.mxu0 0.0
  %1747 = vmatpush1.msra.mxu0 0.0
  %1748 = vmatprep.subr.mxu0 0.0
  %1749 = vmatpush1.msra.mxu0 %v32
  %1750 = vmatprep.subr.mxu0 0.0
  %1751 = vmatpush2.msra.mxu0 0.0
  %1752 = vmatprep.subr.mxu0 0.0
  %1753 = vmatpush2.msra.mxu0 0.0
  %1754 = vmatprep.subr.mxu0 0.0
  %1755 = vmatpush2.msra.mxu0 0.0
  %1756 = vmatprep.subr.mxu0 0.0
  %1757 = vmatpush2.msra.mxu0 0.0
  %1758 = vmatprep.subr.mxu0 0.0
  %1759 = vmatpush2.msra.mxu0 0.0
  %1760 = vmatprep.subr.mxu0 0.0
  %1761 = vmatpush2.msra.mxu0 0.0
  %1762 = vmatprep.subr.mxu0 0.0
  %1763 = vmatpush2.msra.mxu0 0.0
  %1764 = vmatprep.subr.mxu0 0.0
  %1765 = vmatpush2.msra.mxu0 0.0
  %1766 = vmatprep.subr.mxu0 0.0
  %1767 = vmatpush2.msra.mxu0 0.0
  %1768 = vmatprep.subr.mxu0 0.0
  %1769 = vmatpush2.msra.mxu0 0.0
  %1770 = vmatprep.subr.mxu0 0.0
  %1771 = vmatpush2.msra.mxu0 0.0
  %1772 = vmatprep.subr.mxu0 0.0
  %1773 = vmatpush2.msra.mxu0 0.0
  %1774 = vmatprep.subr.mxu0 0.0
  %1775 = vmatpush2.msra.mxu0 0.0
  %1776 = vmatprep.subr.mxu0 0.0
  %1777 = vmatpush2.msra.mxu0 0.0
  %1778 = vmatprep.subr.mxu0 0.0
  %1779 = vmatpush2.msra.mxu0 0.0
  %1780 = vmatprep.subr.mxu0 0.0
  %1781 = vmatpush2.msra.mxu0 0.0
  %1782 = vmatprep.mubr.f32.mxu0 0.0
  %1783 = vmatmul.mubr.f32.gmra.mxu0 %v1713
  %v1784 = vpop.f32.mrf.mxu0
  %v1785 = vadd.f32 0.0, %v1784
  %v1786 = vpop.f32.mrf.mxu0
  %1787 = vmatprep.mubr.f32.mxu0 0.0
  %1788 = vmatmul.mubr.f32.gmra.mxu0 %v1716
  %v1789 = vpop.f32.mrf.mxu0
  %v1790 = vadd.f32 0.0, %v1789
  %v1791 = vpop.f32.mrf.mxu0
  %1792 = vdwg.mxu0
  %v1793 = vadd.f32 %v1710, %v1785
  %v1794 = vadd.f32 %v1711, %v1790
  %v1795 = vadd.f32 %v23, %v1793
  %v1796 = vadd.f32 %v24, %v1794
  %v1797 = vsel %vm50, %v1795, 0.0
  %1798 = vadd.xlane.f32.xlu0 %v1797
  %v1799 = vpop.xlane.xlu0 %1798
  %v1800 = vsel %vm50, %v1796, 0.0
  %1801 = vadd.xlane.f32.xlu0 %v1800
  %v1802 = vpop.xlane.xlu0 %1801
  %v1803 = vrcp.pop 32.0
  %v1804 = vmul.f32 %v1799, %v1803
  %v1805 = vmul.f32 %v1802, %v1803
  %v1806 = vsub.f32 %v1795, %v1804
  %v1807 = vsub.f32 %v1796, %v1805
  %v1808 = vmul.f32 %v1806, %v1806
  %v1809 = vmul.f32 %v1807, %v1807
  %v1810 = vsel %vm50, %v1808, 0.0
  %1811 = vadd.xlane.f32.xlu0 %v1810
  %v1812 = vpop.xlane.xlu0 %1811
  %v1813 = vsel %vm50, %v1809, 0.0
  %1814 = vadd.xlane.f32.xlu0 %v1813
  %v1815 = vpop.xlane.xlu0 %1814
  %v1816 = vmul.f32 %v1812, %v1803
  %v1817 = vmul.f32 %v1815, %v1803
  %v1818 = vadd.f32 %v1816, 1e-05
  %v1819 = vadd.f32 %v1817, 1e-05
  %v1820 = vrsqrt.pop %v1818
  %v1821 = vrsqrt.pop %v1819
  %v1822 = vmul.f32 %v1806, %v1820
  %v1823 = vmul.f32 %v1807, %v1821
  %v1824 = vlaneseq
  %v1825 = vshrl.u32 %v1824, 7
  %v1826 = vsub.s32 4, %v1825
  %v1827 = vrot.slane %v45, %v1826
  %v1828 = vmul.f32 %v1822, %v1827
  %v1829 = vmul.f32 %v1823, %v1827
  %v1830 = vlaneseq
  %v1831 = vshrl.u32 %v1830, 7
  %v1832 = vsub.s32 5, %v1831
  %v1833 = vrot.slane %v45, %v1832
  %v1834 = vadd.f32 %v1828, %v1833
  %v1835 = vadd.f32 %v1829, %v1833
  %v1836 = vlaneseq
  %v1837 = vshrl.u32 %v1836, 7
  %v1838 = vsub.s32 2, %v1837
  %v1839 = vrot.slane %v45, %v1838
  %v1841 = vsel %vm50, %v1834, 0
  %v1844 = vsel %vm50, %v1835, 0
  %1846 = vmatprep.subr.mxu0 0.0
  %1847 = vmatpush1.msra.mxu0 0.0
  %1848 = vmatprep.subr.mxu0 0.0
  %1849 = vmatpush1.msra.mxu0 0.0
  %1850 = vmatprep.subr.mxu0 0.0
  %1851 = vmatpush1.msra.mxu0 0.0
  %1852 = vmatprep.subr.mxu0 0.0
  %1853 = vmatpush1.msra.mxu0 0.0
  %1854 = vmatprep.subr.mxu0 0.0
  %1855 = vmatpush1.msra.mxu0 0.0
  %1856 = vmatprep.subr.mxu0 0.0
  %1857 = vmatpush1.msra.mxu0 0.0
  %1858 = vmatprep.subr.mxu0 0.0
  %1859 = vmatpush1.msra.mxu0 0.0
  %1860 = vmatprep.subr.mxu0 0.0
  %1861 = vmatpush1.msra.mxu0 0.0
  %1862 = vmatprep.subr.mxu0 0.0
  %1863 = vmatpush1.msra.mxu0 0.0
  %1864 = vmatprep.subr.mxu0 0.0
  %1865 = vmatpush1.msra.mxu0 0.0
  %1866 = vmatprep.subr.mxu0 0.0
  %1867 = vmatpush1.msra.mxu0 0.0
  %1868 = vmatprep.subr.mxu0 0.0
  %1869 = vmatpush1.msra.mxu0 0.0
  %1870 = vmatprep.subr.mxu0 0.0
  %1871 = vmatpush1.msra.mxu0 %v36
  %1872 = vmatprep.subr.mxu0 0.0
  %1873 = vmatpush1.msra.mxu0 %v35
  %1874 = vmatprep.subr.mxu0 0.0
  %1875 = vmatpush1.msra.mxu0 %v34
  %1876 = vmatprep.subr.mxu0 0.0
  %1877 = vmatpush1.msra.mxu0 %v33
  %1878 = vmatprep.subr.mxu0 0.0
  %1879 = vmatpush2.msra.mxu0 0.0
  %1880 = vmatprep.subr.mxu0 0.0
  %1881 = vmatpush2.msra.mxu0 0.0
  %1882 = vmatprep.subr.mxu0 0.0
  %1883 = vmatpush2.msra.mxu0 0.0
  %1884 = vmatprep.subr.mxu0 0.0
  %1885 = vmatpush2.msra.mxu0 0.0
  %1886 = vmatprep.subr.mxu0 0.0
  %1887 = vmatpush2.msra.mxu0 0.0
  %1888 = vmatprep.subr.mxu0 0.0
  %1889 = vmatpush2.msra.mxu0 0.0
  %1890 = vmatprep.subr.mxu0 0.0
  %1891 = vmatpush2.msra.mxu0 0.0
  %1892 = vmatprep.subr.mxu0 0.0
  %1893 = vmatpush2.msra.mxu0 0.0
  %1894 = vmatprep.subr.mxu0 0.0
  %1895 = vmatpush2.msra.mxu0 0.0
  %1896 = vmatprep.subr.mxu0 0.0
  %1897 = vmatpush2.msra.mxu0 0.0
  %1898 = vmatprep.subr.mxu0 0.0
  %1899 = vmatpush2.msra.mxu0 0.0
  %1900 = vmatprep.subr.mxu0 0.0
  %1901 = vmatpush2.msra.mxu0 0.0
  %1902 = vmatprep.subr.mxu0 0.0
  %1903 = vmatpush2.msra.mxu0 0.0
  %1904 = vmatprep.subr.mxu0 0.0
  %1905 = vmatpush2.msra.mxu0 0.0
  %1906 = vmatprep.subr.mxu0 0.0
  %1907 = vmatpush2.msra.mxu0 0.0
  %1908 = vmatprep.subr.mxu0 0.0
  %1909 = vmatpush2.msra.mxu0 0.0
  %1910 = vmatprep.mubr.f32.mxu0 0.0
  %1911 = vmatmul.mubr.f32.gmra.mxu0 %v1841
  %v1912 = vpop.f32.mrf.mxu0
  %v1913 = vadd.f32 %v1839, %v1912
  %v1914 = vpop.f32.mrf.mxu0
  %1915 = vmatprep.mubr.f32.mxu0 0.0
  %1916 = vmatmul.mubr.f32.gmra.mxu0 %v1844
  %v1917 = vpop.f32.mrf.mxu0
  %v1918 = vadd.f32 %v1839, %v1917
  %v1919 = vpop.f32.mrf.mxu0
  %1920 = vdwg.mxu0
  %v1921 = vmax.f32 %v1913, 0.0
  %v1922 = vmax.f32 %v1918, 0.0
  %v1923 = vlaneseq
  %v1924 = vshrl.u32 %v1923, 7
  %v1925 = vsub.s32 3, %v1924
  %v1926 = vrot.slane %v45, %v1925
  %vm1927 = vcmask 523264
  %v1929 = vsel %vm1927, %v1921, 0
  %v1932 = vsel %vm1927, %v1922, 0
  %1934 = vmatprep.subr.mxu0 0.0
  %1935 = vmatpush1.msra.mxu0 0.0
  %1936 = vmatprep.subr.mxu0 0.0
  %1937 = vmatpush1.msra.mxu0 0.0
  %1938 = vmatprep.subr.mxu0 0.0
  %1939 = vmatpush1.msra.mxu0 0.0
  %1940 = vmatprep.subr.mxu0 0.0
  %1941 = vmatpush1.msra.mxu0 0.0
  %1942 = vmatprep.subr.mxu0 0.0
  %1943 = vmatpush1.msra.mxu0 0.0
  %1944 = vmatprep.subr.mxu0 0.0
  %1945 = vmatpush1.msra.mxu0 0.0
  %1946 = vmatprep.subr.mxu0 0.0
  %1947 = vmatpush1.msra.mxu0 0.0
  %1948 = vmatprep.subr.mxu0 0.0
  %1949 = vmatpush1.msra.mxu0 0.0
  %1950 = vmatprep.subr.mxu0 0.0
  %1951 = vmatpush1.msra.mxu0 %v44
  %1952 = vmatprep.subr.mxu0 0.0
  %1953 = vmatpush1.msra.mxu0 %v43
  %1954 = vmatprep.subr.mxu0 0.0
  %1955 = vmatpush1.msra.mxu0 %v42
  %1956 = vmatprep.subr.mxu0 0.0
  %1957 = vmatpush1.msra.mxu0 %v41
  %1958 = vmatprep.subr.mxu0 0.0
  %1959 = vmatpush1.msra.mxu0 %v40
  %1960 = vmatprep.subr.mxu0 0.0
  %1961 = vmatpush1.msra.mxu0 %v39
  %1962 = vmatprep.subr.mxu0 0.0
  %1963 = vmatpush1.msra.mxu0 %v38
  %1964 = vmatprep.subr.mxu0 0.0
  %1965 = vmatpush1.msra.mxu0 %v37
  %1966 = vmatprep.subr.mxu0 0.0
  %1967 = vmatpush2.msra.mxu0 0.0
  %1968 = vmatprep.subr.mxu0 0.0
  %1969 = vmatpush2.msra.mxu0 0.0
  %1970 = vmatprep.subr.mxu0 0.0
  %1971 = vmatpush2.msra.mxu0 0.0
  %1972 = vmatprep.subr.mxu0 0.0
  %1973 = vmatpush2.msra.mxu0 0.0
  %1974 = vmatprep.subr.mxu0 0.0
  %1975 = vmatpush2.msra.mxu0 0.0
  %1976 = vmatprep.subr.mxu0 0.0
  %1977 = vmatpush2.msra.mxu0 0.0
  %1978 = vmatprep.subr.mxu0 0.0
  %1979 = vmatpush2.msra.mxu0 0.0
  %1980 = vmatprep.subr.mxu0 0.0
  %1981 = vmatpush2.msra.mxu0 0.0
  %1982 = vmatprep.subr.mxu0 0.0
  %1983 = vmatpush2.msra.mxu0 0.0
  %1984 = vmatprep.subr.mxu0 0.0
  %1985 = vmatpush2.msra.mxu0 0.0
  %1986 = vmatprep.subr.mxu0 0.0
  %1987 = vmatpush2.msra.mxu0 0.0
  %1988 = vmatprep.subr.mxu0 0.0
  %1989 = vmatpush2.msra.mxu0 0.0
  %1990 = vmatprep.subr.mxu0 0.0
  %1991 = vmatpush2.msra.mxu0 0.0
  %1992 = vmatprep.subr.mxu0 0.0
  %1993 = vmatpush2.msra.mxu0 0.0
  %1994 = vmatprep.subr.mxu0 0.0
  %1995 = vmatpush2.msra.mxu0 0.0
  %1996 = vmatprep.subr.mxu0 0.0
  %1997 = vmatpush2.msra.mxu0 0.0
  %1998 = vmatprep.mubr.f32.mxu0 0.0
  %1999 = vmatmul.mubr.f32.gmra.mxu0 %v1929
  %v2000 = vpop.f32.mrf.mxu0
  %v2001 = vadd.f32 %v1926, %v2000
  %v2002 = vpop.f32.mrf.mxu0
  %2003 = vmatprep.mubr.f32.mxu0 0.0
  %2004 = vmatmul.mubr.f32.gmra.mxu0 %v1932
  %v2005 = vpop.f32.mrf.mxu0
  %v2006 = vadd.f32 %v1926, %v2005
  %v2007 = vpop.f32.mrf.mxu0
  %2008 = vdwg.mxu0
  %v2009 = vadd.f32 %v1834, %v2001
  %v2010 = vadd.f32 %v1835, %v2006
  %v2011 = vsel %vm50, %v2009, 0.0
  %2012 = vadd.xlane.f32.xlu0 %v2011
  %v2013 = vpop.xlane.xlu0 %2012
  %v2014 = vsel %vm50, %v2010, 0.0
  %2015 = vadd.xlane.f32.xlu0 %v2014
  %v2016 = vpop.xlane.xlu0 %2015
  %v2017 = vmul.f32 %v2013, %v1803
  %v2018 = vmul.f32 %v2016, %v1803
  %v2019 = vsub.f32 %v2009, %v2017
  %v2020 = vsub.f32 %v2010, %v2018
  %v2021 = vmul.f32 %v2019, %v2019
  %v2022 = vmul.f32 %v2020, %v2020
  %v2023 = vsel %vm50, %v2021, 0.0
  %2024 = vadd.xlane.f32.xlu0 %v2023
  %v2025 = vpop.xlane.xlu0 %2024
  %v2026 = vsel %vm50, %v2022, 0.0
  %2027 = vadd.xlane.f32.xlu0 %v2026
  %v2028 = vpop.xlane.xlu0 %2027
  %v2029 = vmul.f32 %v2025, %v1803
  %v2030 = vmul.f32 %v2028, %v1803
  %v2031 = vadd.f32 %v2029, 1e-05
  %v2032 = vadd.f32 %v2030, 1e-05
  %v2033 = vrsqrt.pop %v2031
  %v2034 = vrsqrt.pop %v2032
  %v2035 = vmul.f32 %v2019, %v2033
  %v2036 = vmul.f32 %v2020, %v2034
  %v2037 = vlaneseq
  %v2038 = vshrl.u32 %v2037, 7
  %v2039 = vsub.s32 6, %v2038
  %v2040 = vrot.slane %v45, %v2039
  %v2041 = vmul.f32 %v2035, %v2040
  %v2042 = vmul.f32 %v2036, %v2040
  %v2043 = vlaneseq
  %v2044 = vshrl.u32 %v2043, 7
  %v2045 = vsub.s32 7, %v2044
  %v2046 = vrot.slane %v45, %v2045
  %v2047 = vadd.f32 %v2041, %v2046
  %v2048 = vadd.f32 %v2042, %v2046
  %s2049 = scalar_lea.vmem %s1, 32
  %v2050 = vld [vmem:[%s2049] sm:$0xff]
  %v2051 = vld [vmem:[%s2049 + $0x8] sm:$0xff]
  %v2052 = vld [vmem:[%s2049 + $0x10] sm:$0xff]
  %v2053 = vld [vmem:[%s2049 + $0x18] sm:$0xff]
  %s2054 = scalar_lea.vmem %s2, 32
  %v2055 = vld [vmem:[%s2054] sm:$0xff]
  %v2056 = vld [vmem:[%s2054 + $0x8] sm:$0xff]
  %v2057 = vld [vmem:[%s2054 + $0x10] sm:$0xff]
  %v2058 = vld [vmem:[%s2054 + $0x18] sm:$0xff]
  %s2059 = scalar_lea.vmem %s3, 32
  %v2060 = vld [vmem:[%s2059] sm:$0xff]
  %v2061 = vld [vmem:[%s2059 + $0x8] sm:$0xff]
  %v2062 = vld [vmem:[%s2059 + $0x10] sm:$0xff]
  %v2063 = vld [vmem:[%s2059 + $0x18] sm:$0xff]
  %s2064 = scalar_lea.vmem %s4, 64
  %v2065 = vld [vmem:[%s2064] sm:$0xff]
  %v2066 = vld [vmem:[%s2064 + $0x8] sm:$0xff]
  %v2067 = vld [vmem:[%s2064 + $0x10] sm:$0xff]
  %v2068 = vld [vmem:[%s2064 + $0x18] sm:$0xff]
  %v2069 = vld [vmem:[%s2064 + $0x20] sm:$0xff]
  %v2070 = vld [vmem:[%s2064 + $0x28] sm:$0xff]
  %v2071 = vld [vmem:[%s2064 + $0x30] sm:$0xff]
  %v2072 = vld [vmem:[%s2064 + $0x38] sm:$0xff]
  %s2073 = scalar_lea.vmem %s5, 8
  %v2074 = vld [vmem:[%s2073] sm:$0xff]
  %v2075 = vlaneseq
  %v2076 = vshrl.u32 %v2075, 7
  %v2077 = vsub.s32 0, %v2076
  %v2078 = vrot.slane %v2074, %v2077
  %v2080 = vsel %vm50, %v2047, 0
  %v2083 = vsel %vm50, %v2048, 0
  %2085 = vmatprep.subr.mxu0 0.0
  %2086 = vmatpush1.msra.mxu0 0.0
  %2087 = vmatprep.subr.mxu0 0.0
  %2088 = vmatpush1.msra.mxu0 0.0
  %2089 = vmatprep.subr.mxu0 0.0
  %2090 = vmatpush1.msra.mxu0 0.0
  %2091 = vmatprep.subr.mxu0 0.0
  %2092 = vmatpush1.msra.mxu0 0.0
  %2093 = vmatprep.subr.mxu0 0.0
  %2094 = vmatpush1.msra.mxu0 0.0
  %2095 = vmatprep.subr.mxu0 0.0
  %2096 = vmatpush1.msra.mxu0 0.0
  %2097 = vmatprep.subr.mxu0 0.0
  %2098 = vmatpush1.msra.mxu0 0.0
  %2099 = vmatprep.subr.mxu0 0.0
  %2100 = vmatpush1.msra.mxu0 0.0
  %2101 = vmatprep.subr.mxu0 0.0
  %2102 = vmatpush1.msra.mxu0 0.0
  %2103 = vmatprep.subr.mxu0 0.0
  %2104 = vmatpush1.msra.mxu0 0.0
  %2105 = vmatprep.subr.mxu0 0.0
  %2106 = vmatpush1.msra.mxu0 0.0
  %2107 = vmatprep.subr.mxu0 0.0
  %2108 = vmatpush1.msra.mxu0 0.0
  %2109 = vmatprep.subr.mxu0 0.0
  %2110 = vmatpush1.msra.mxu0 %v2053
  %2111 = vmatprep.subr.mxu0 0.0
  %2112 = vmatpush1.msra.mxu0 %v2052
  %2113 = vmatprep.subr.mxu0 0.0
  %2114 = vmatpush1.msra.mxu0 %v2051
  %2115 = vmatprep.subr.mxu0 0.0
  %2116 = vmatpush1.msra.mxu0 %v2050
  %2117 = vmatprep.subr.mxu0 0.0
  %2118 = vmatpush2.msra.mxu0 0.0
  %2119 = vmatprep.subr.mxu0 0.0
  %2120 = vmatpush2.msra.mxu0 0.0
  %2121 = vmatprep.subr.mxu0 0.0
  %2122 = vmatpush2.msra.mxu0 0.0
  %2123 = vmatprep.subr.mxu0 0.0
  %2124 = vmatpush2.msra.mxu0 0.0
  %2125 = vmatprep.subr.mxu0 0.0
  %2126 = vmatpush2.msra.mxu0 0.0
  %2127 = vmatprep.subr.mxu0 0.0
  %2128 = vmatpush2.msra.mxu0 0.0
  %2129 = vmatprep.subr.mxu0 0.0
  %2130 = vmatpush2.msra.mxu0 0.0
  %2131 = vmatprep.subr.mxu0 0.0
  %2132 = vmatpush2.msra.mxu0 0.0
  %2133 = vmatprep.subr.mxu0 0.0
  %2134 = vmatpush2.msra.mxu0 0.0
  %2135 = vmatprep.subr.mxu0 0.0
  %2136 = vmatpush2.msra.mxu0 0.0
  %2137 = vmatprep.subr.mxu0 0.0
  %2138 = vmatpush2.msra.mxu0 0.0
  %2139 = vmatprep.subr.mxu0 0.0
  %2140 = vmatpush2.msra.mxu0 0.0
  %2141 = vmatprep.subr.mxu0 0.0
  %2142 = vmatpush2.msra.mxu0 0.0
  %2143 = vmatprep.subr.mxu0 0.0
  %2144 = vmatpush2.msra.mxu0 0.0
  %2145 = vmatprep.subr.mxu0 0.0
  %2146 = vmatpush2.msra.mxu0 0.0
  %2147 = vmatprep.subr.mxu0 0.0
  %2148 = vmatpush2.msra.mxu0 0.0
  %2149 = vmatprep.mubr.f32.mxu0 0.0
  %2150 = vmatmul.mubr.f32.gmra.mxu0 %v2080
  %v2151 = vpop.f32.mrf.mxu0
  %v2152 = vadd.f32 %v2078, %v2151
  %v2153 = vpop.f32.mrf.mxu0
  %2154 = vmatprep.mubr.f32.mxu0 0.0
  %2155 = vmatmul.mubr.f32.gmra.mxu0 %v2083
  %v2156 = vpop.f32.mrf.mxu0
  %v2157 = vadd.f32 %v2078, %v2156
  %v2158 = vpop.f32.mrf.mxu0
  %2159 = vdwg.mxu0
  %2162 = vrot.lane.b32.xlu0 %v2152, 120
  %v2163 = vpop.permute.xlu0 %2162
  %2164 = vrot.lane.b32.xlu0 %v2157, 120
  %v2165 = vpop.permute.xlu0 %2164
  %2166 = vrot.lane.b32.xlu0 %v2152, 112
  %v2167 = vpop.permute.xlu0 %2166
  %2168 = vrot.lane.b32.xlu0 %v2157, 112
  %v2169 = vpop.permute.xlu0 %2168
  %2170 = vrot.lane.b32.xlu0 %v2152, 104
  %v2171 = vpop.permute.xlu0 %2170
  %2172 = vrot.lane.b32.xlu0 %v2157, 104
  %v2173 = vpop.permute.xlu0 %2172
  %2174 = vrot.lane.b32.xlu0 %v2152, 96
  %v2175 = vpop.permute.xlu0 %2174
  %v2176 = vsel %vm148, %v2152, 0
  %v2178 = vsel %vm148, %v2175, 0
  %2180 = vmatprep.subr.mxu0 0.0
  %2181 = vmatpush1.xpose.msra.mxu0 0.0
  %2182 = vmatprep.subr.mxu0 0.0
  %2183 = vmatpush1.xpose.msra.mxu0 0.0
  %2184 = vmatprep.subr.mxu0 0.0
  %2185 = vmatpush1.xpose.msra.mxu0 0.0
  %2186 = vmatprep.subr.mxu0 0.0
  %2187 = vmatpush1.xpose.msra.mxu0 0.0
  %2188 = vmatprep.subr.mxu0 0.0
  %2189 = vmatpush1.xpose.msra.mxu0 0.0
  %2190 = vmatprep.subr.mxu0 0.0
  %2191 = vmatpush1.xpose.msra.mxu0 0.0
  %2192 = vmatprep.subr.mxu0 0.0
  %2193 = vmatpush1.xpose.msra.mxu0 0.0
  %2194 = vmatprep.subr.mxu0 0.0
  %2195 = vmatpush1.xpose.msra.mxu0 0.0
  %2196 = vmatprep.subr.mxu0 0.0
  %2197 = vmatpush1.xpose.msra.mxu0 0.0
  %2198 = vmatprep.subr.mxu0 0.0
  %2199 = vmatpush1.xpose.msra.mxu0 0.0
  %2200 = vmatprep.subr.mxu0 0.0
  %2201 = vmatpush1.xpose.msra.mxu0 0.0
  %2202 = vmatprep.subr.mxu0 0.0
  %2203 = vmatpush1.xpose.msra.mxu0 0.0
  %2204 = vmatprep.subr.mxu0 0.0
  %2205 = vmatpush1.xpose.msra.mxu0 0.0
  %2206 = vmatprep.subr.mxu0 0.0
  %2207 = vmatpush1.xpose.msra.mxu0 0.0
  %2208 = vmatprep.subr.mxu0 0.0
  %2209 = vmatpush1.xpose.msra.mxu0 0.0
  %2210 = vmatprep.subr.mxu0 0.0
  %2211 = vmatpush1.xpose.msra.mxu0 %v2178
  %2212 = vmatprep.subr.mxu0 0.0
  %2213 = vmatpush2.xpose.msra.mxu0 0.0
  %2214 = vmatprep.subr.mxu0 0.0
  %2215 = vmatpush2.xpose.msra.mxu0 0.0
  %2216 = vmatprep.subr.mxu0 0.0
  %2217 = vmatpush2.xpose.msra.mxu0 0.0
  %2218 = vmatprep.subr.mxu0 0.0
  %2219 = vmatpush2.xpose.msra.mxu0 0.0
  %2220 = vmatprep.subr.mxu0 0.0
  %2221 = vmatpush2.xpose.msra.mxu0 0.0
  %2222 = vmatprep.subr.mxu0 0.0
  %2223 = vmatpush2.xpose.msra.mxu0 0.0
  %2224 = vmatprep.subr.mxu0 0.0
  %2225 = vmatpush2.xpose.msra.mxu0 0.0
  %2226 = vmatprep.subr.mxu0 0.0
  %2227 = vmatpush2.xpose.msra.mxu0 0.0
  %2228 = vmatprep.subr.mxu0 0.0
  %2229 = vmatpush2.xpose.msra.mxu0 0.0
  %2230 = vmatprep.subr.mxu0 0.0
  %2231 = vmatpush2.xpose.msra.mxu0 0.0
  %2232 = vmatprep.subr.mxu0 0.0
  %2233 = vmatpush2.xpose.msra.mxu0 0.0
  %2234 = vmatprep.subr.mxu0 0.0
  %2235 = vmatpush2.xpose.msra.mxu0 0.0
  %2236 = vmatprep.subr.mxu0 0.0
  %2237 = vmatpush2.xpose.msra.mxu0 0.0
  %2238 = vmatprep.subr.mxu0 0.0
  %2239 = vmatpush2.xpose.msra.mxu0 0.0
  %2240 = vmatprep.subr.mxu0 0.0
  %2241 = vmatpush2.xpose.msra.mxu0 0.0
  %2242 = vmatprep.subr.mxu0 0.0
  %2243 = vmatpush2.xpose.msra.mxu0 0.0
  %2244 = vmatprep.mubr.f32.mxu0 0.0
  %2245 = vmatmul.mubr.f32.gmra.mxu0 %v2176
  %v2246 = vpop.f32.mrf.mxu0
  %v2247 = vadd.f32 0.0, %v2246
  %v2248 = vpop.f32.mrf.mxu0
  %2249 = vdwg.mxu0
  %2250 = vrot.lane.b32.xlu0 %v2157, 96
  %v2251 = vpop.permute.xlu0 %2250
  %v2252 = vsel %vm148, %v2157, 0
  %v2254 = vsel %vm148, %v2251, 0
  %2256 = vmatprep.subr.mxu0 0.0
  %2257 = vmatpush1.xpose.msra.mxu0 0.0
  %2258 = vmatprep.subr.mxu0 0.0
  %2259 = vmatpush1.xpose.msra.mxu0 0.0
  %2260 = vmatprep.subr.mxu0 0.0
  %2261 = vmatpush1.xpose.msra.mxu0 0.0
  %2262 = vmatprep.subr.mxu0 0.0
  %2263 = vmatpush1.xpose.msra.mxu0 0.0
  %2264 = vmatprep.subr.mxu0 0.0
  %2265 = vmatpush1.xpose.msra.mxu0 0.0
  %2266 = vmatprep.subr.mxu0 0.0
  %2267 = vmatpush1.xpose.msra.mxu0 0.0
  %2268 = vmatprep.subr.mxu0 0.0
  %2269 = vmatpush1.xpose.msra.mxu0 0.0
  %2270 = vmatprep.subr.mxu0 0.0
  %2271 = vmatpush1.xpose.msra.mxu0 0.0
  %2272 = vmatprep.subr.mxu0 0.0
  %2273 = vmatpush1.xpose.msra.mxu0 0.0
  %2274 = vmatprep.subr.mxu0 0.0
  %2275 = vmatpush1.xpose.msra.mxu0 0.0
  %2276 = vmatprep.subr.mxu0 0.0
  %2277 = vmatpush1.xpose.msra.mxu0 0.0
  %2278 = vmatprep.subr.mxu0 0.0
  %2279 = vmatpush1.xpose.msra.mxu0 0.0
  %2280 = vmatprep.subr.mxu0 0.0
  %2281 = vmatpush1.xpose.msra.mxu0 0.0
  %2282 = vmatprep.subr.mxu0 0.0
  %2283 = vmatpush1.xpose.msra.mxu0 0.0
  %2284 = vmatprep.subr.mxu0 0.0
  %2285 = vmatpush1.xpose.msra.mxu0 0.0
  %2286 = vmatprep.subr.mxu0 0.0
  %2287 = vmatpush1.xpose.msra.mxu0 %v2254
  %2288 = vmatprep.subr.mxu0 0.0
  %2289 = vmatpush2.xpose.msra.mxu0 0.0
  %2290 = vmatprep.subr.mxu0 0.0
  %2291 = vmatpush2.xpose.msra.mxu0 0.0
  %2292 = vmatprep.subr.mxu0 0.0
  %2293 = vmatpush2.xpose.msra.mxu0 0.0
  %2294 = vmatprep.subr.mxu0 0.0
  %2295 = vmatpush2.xpose.msra.mxu0 0.0
  %2296 = vmatprep.subr.mxu0 0.0
  %2297 = vmatpush2.xpose.msra.mxu0 0.0
  %2298 = vmatprep.subr.mxu0 0.0
  %2299 = vmatpush2.xpose.msra.mxu0 0.0
  %2300 = vmatprep.subr.mxu0 0.0
  %2301 = vmatpush2.xpose.msra.mxu0 0.0
  %2302 = vmatprep.subr.mxu0 0.0
  %2303 = vmatpush2.xpose.msra.mxu0 0.0
  %2304 = vmatprep.subr.mxu0 0.0
  %2305 = vmatpush2.xpose.msra.mxu0 0.0
  %2306 = vmatprep.subr.mxu0 0.0
  %2307 = vmatpush2.xpose.msra.mxu0 0.0
  %2308 = vmatprep.subr.mxu0 0.0
  %2309 = vmatpush2.xpose.msra.mxu0 0.0
  %2310 = vmatprep.subr.mxu0 0.0
  %2311 = vmatpush2.xpose.msra.mxu0 0.0
  %2312 = vmatprep.subr.mxu0 0.0
  %2313 = vmatpush2.xpose.msra.mxu0 0.0
  %2314 = vmatprep.subr.mxu0 0.0
  %2315 = vmatpush2.xpose.msra.mxu0 0.0
  %2316 = vmatprep.subr.mxu0 0.0
  %2317 = vmatpush2.xpose.msra.mxu0 0.0
  %2318 = vmatprep.subr.mxu0 0.0
  %2319 = vmatpush2.xpose.msra.mxu0 0.0
  %2320 = vmatprep.mubr.f32.mxu0 0.0
  %2321 = vmatmul.mubr.f32.gmra.mxu0 %v2252
  %v2322 = vpop.f32.mrf.mxu0
  %v2323 = vadd.f32 0.0, %v2322
  %v2324 = vpop.f32.mrf.mxu0
  %2325 = vdwg.mxu0
  %2326 = vrot.lane.b32.xlu0 %v2163, 96
  %v2327 = vpop.permute.xlu0 %2326
  %v2328 = vsel %vm148, %v2163, 0
  %v2330 = vsel %vm148, %v2327, 0
  %2332 = vmatprep.subr.mxu0 0.0
  %2333 = vmatpush1.xpose.msra.mxu0 0.0
  %2334 = vmatprep.subr.mxu0 0.0
  %2335 = vmatpush1.xpose.msra.mxu0 0.0
  %2336 = vmatprep.subr.mxu0 0.0
  %2337 = vmatpush1.xpose.msra.mxu0 0.0
  %2338 = vmatprep.subr.mxu0 0.0
  %2339 = vmatpush1.xpose.msra.mxu0 0.0
  %2340 = vmatprep.subr.mxu0 0.0
  %2341 = vmatpush1.xpose.msra.mxu0 0.0
  %2342 = vmatprep.subr.mxu0 0.0
  %2343 = vmatpush1.xpose.msra.mxu0 0.0
  %2344 = vmatprep.subr.mxu0 0.0
  %2345 = vmatpush1.xpose.msra.mxu0 0.0
  %2346 = vmatprep.subr.mxu0 0.0
  %2347 = vmatpush1.xpose.msra.mxu0 0.0
  %2348 = vmatprep.subr.mxu0 0.0
  %2349 = vmatpush1.xpose.msra.mxu0 0.0
  %2350 = vmatprep.subr.mxu0 0.0
  %2351 = vmatpush1.xpose.msra.mxu0 0.0
  %2352 = vmatprep.subr.mxu0 0.0
  %2353 = vmatpush1.xpose.msra.mxu0 0.0
  %2354 = vmatprep.subr.mxu0 0.0
  %2355 = vmatpush1.xpose.msra.mxu0 0.0
  %2356 = vmatprep.subr.mxu0 0.0
  %2357 = vmatpush1.xpose.msra.mxu0 0.0
  %2358 = vmatprep.subr.mxu0 0.0
  %2359 = vmatpush1.xpose.msra.mxu0 0.0
  %2360 = vmatprep.subr.mxu0 0.0
  %2361 = vmatpush1.xpose.msra.mxu0 0.0
  %2362 = vmatprep.subr.mxu0 0.0
  %2363 = vmatpush1.xpose.msra.mxu0 %v2330
  %2364 = vmatprep.subr.mxu0 0.0
  %2365 = vmatpush2.xpose.msra.mxu0 0.0
  %2366 = vmatprep.subr.mxu0 0.0
  %2367 = vmatpush2.xpose.msra.mxu0 0.0
  %2368 = vmatprep.subr.mxu0 0.0
  %2369 = vmatpush2.xpose.msra.mxu0 0.0
  %2370 = vmatprep.subr.mxu0 0.0
  %2371 = vmatpush2.xpose.msra.mxu0 0.0
  %2372 = vmatprep.subr.mxu0 0.0
  %2373 = vmatpush2.xpose.msra.mxu0 0.0
  %2374 = vmatprep.subr.mxu0 0.0
  %2375 = vmatpush2.xpose.msra.mxu0 0.0
  %2376 = vmatprep.subr.mxu0 0.0
  %2377 = vmatpush2.xpose.msra.mxu0 0.0
  %2378 = vmatprep.subr.mxu0 0.0
  %2379 = vmatpush2.xpose.msra.mxu0 0.0
  %2380 = vmatprep.subr.mxu0 0.0
  %2381 = vmatpush2.xpose.msra.mxu0 0.0
  %2382 = vmatprep.subr.mxu0 0.0
  %2383 = vmatpush2.xpose.msra.mxu0 0.0
  %2384 = vmatprep.subr.mxu0 0.0
  %2385 = vmatpush2.xpose.msra.mxu0 0.0
  %2386 = vmatprep.subr.mxu0 0.0
  %2387 = vmatpush2.xpose.msra.mxu0 0.0
  %2388 = vmatprep.subr.mxu0 0.0
  %2389 = vmatpush2.xpose.msra.mxu0 0.0
  %2390 = vmatprep.subr.mxu0 0.0
  %2391 = vmatpush2.xpose.msra.mxu0 0.0
  %2392 = vmatprep.subr.mxu0 0.0
  %2393 = vmatpush2.xpose.msra.mxu0 0.0
  %2394 = vmatprep.subr.mxu0 0.0
  %2395 = vmatpush2.xpose.msra.mxu0 0.0
  %2396 = vmatprep.mubr.f32.mxu0 0.0
  %2397 = vmatmul.mubr.f32.gmra.mxu0 %v2328
  %v2398 = vpop.f32.mrf.mxu0
  %v2399 = vadd.f32 0.0, %v2398
  %v2400 = vpop.f32.mrf.mxu0
  %2401 = vdwg.mxu0
  %2402 = vrot.lane.b32.xlu0 %v2165, 96
  %v2403 = vpop.permute.xlu0 %2402
  %v2404 = vsel %vm148, %v2165, 0
  %v2406 = vsel %vm148, %v2403, 0
  %2408 = vmatprep.subr.mxu0 0.0
  %2409 = vmatpush1.xpose.msra.mxu0 0.0
  %2410 = vmatprep.subr.mxu0 0.0
  %2411 = vmatpush1.xpose.msra.mxu0 0.0
  %2412 = vmatprep.subr.mxu0 0.0
  %2413 = vmatpush1.xpose.msra.mxu0 0.0
  %2414 = vmatprep.subr.mxu0 0.0
  %2415 = vmatpush1.xpose.msra.mxu0 0.0
  %2416 = vmatprep.subr.mxu0 0.0
  %2417 = vmatpush1.xpose.msra.mxu0 0.0
  %2418 = vmatprep.subr.mxu0 0.0
  %2419 = vmatpush1.xpose.msra.mxu0 0.0
  %2420 = vmatprep.subr.mxu0 0.0
  %2421 = vmatpush1.xpose.msra.mxu0 0.0
  %2422 = vmatprep.subr.mxu0 0.0
  %2423 = vmatpush1.xpose.msra.mxu0 0.0
  %2424 = vmatprep.subr.mxu0 0.0
  %2425 = vmatpush1.xpose.msra.mxu0 0.0
  %2426 = vmatprep.subr.mxu0 0.0
  %2427 = vmatpush1.xpose.msra.mxu0 0.0
  %2428 = vmatprep.subr.mxu0 0.0
  %2429 = vmatpush1.xpose.msra.mxu0 0.0
  %2430 = vmatprep.subr.mxu0 0.0
  %2431 = vmatpush1.xpose.msra.mxu0 0.0
  %2432 = vmatprep.subr.mxu0 0.0
  %2433 = vmatpush1.xpose.msra.mxu0 0.0
  %2434 = vmatprep.subr.mxu0 0.0
  %2435 = vmatpush1.xpose.msra.mxu0 0.0
  %2436 = vmatprep.subr.mxu0 0.0
  %2437 = vmatpush1.xpose.msra.mxu0 0.0
  %2438 = vmatprep.subr.mxu0 0.0
  %2439 = vmatpush1.xpose.msra.mxu0 %v2406
  %2440 = vmatprep.subr.mxu0 0.0
  %2441 = vmatpush2.xpose.msra.mxu0 0.0
  %2442 = vmatprep.subr.mxu0 0.0
  %2443 = vmatpush2.xpose.msra.mxu0 0.0
  %2444 = vmatprep.subr.mxu0 0.0
  %2445 = vmatpush2.xpose.msra.mxu0 0.0
  %2446 = vmatprep.subr.mxu0 0.0
  %2447 = vmatpush2.xpose.msra.mxu0 0.0
  %2448 = vmatprep.subr.mxu0 0.0
  %2449 = vmatpush2.xpose.msra.mxu0 0.0
  %2450 = vmatprep.subr.mxu0 0.0
  %2451 = vmatpush2.xpose.msra.mxu0 0.0
  %2452 = vmatprep.subr.mxu0 0.0
  %2453 = vmatpush2.xpose.msra.mxu0 0.0
  %2454 = vmatprep.subr.mxu0 0.0
  %2455 = vmatpush2.xpose.msra.mxu0 0.0
  %2456 = vmatprep.subr.mxu0 0.0
  %2457 = vmatpush2.xpose.msra.mxu0 0.0
  %2458 = vmatprep.subr.mxu0 0.0
  %2459 = vmatpush2.xpose.msra.mxu0 0.0
  %2460 = vmatprep.subr.mxu0 0.0
  %2461 = vmatpush2.xpose.msra.mxu0 0.0
  %2462 = vmatprep.subr.mxu0 0.0
  %2463 = vmatpush2.xpose.msra.mxu0 0.0
  %2464 = vmatprep.subr.mxu0 0.0
  %2465 = vmatpush2.xpose.msra.mxu0 0.0
  %2466 = vmatprep.subr.mxu0 0.0
  %2467 = vmatpush2.xpose.msra.mxu0 0.0
  %2468 = vmatprep.subr.mxu0 0.0
  %2469 = vmatpush2.xpose.msra.mxu0 0.0
  %2470 = vmatprep.subr.mxu0 0.0
  %2471 = vmatpush2.xpose.msra.mxu0 0.0
  %2472 = vmatprep.mubr.f32.mxu0 0.0
  %2473 = vmatmul.mubr.f32.gmra.mxu0 %v2404
  %v2474 = vpop.f32.mrf.mxu0
  %v2475 = vadd.f32 0.0, %v2474
  %v2476 = vpop.f32.mrf.mxu0
  %2477 = vdwg.mxu0
  %2478 = vrot.lane.b32.xlu0 %v2167, 96
  %v2479 = vpop.permute.xlu0 %2478
  %v2480 = vsel %vm148, %v2167, 0
  %v2482 = vsel %vm148, %v2479, 0
  %2484 = vmatprep.subr.mxu0 0.0
  %2485 = vmatpush1.xpose.msra.mxu0 0.0
  %2486 = vmatprep.subr.mxu0 0.0
  %2487 = vmatpush1.xpose.msra.mxu0 0.0
  %2488 = vmatprep.subr.mxu0 0.0
  %2489 = vmatpush1.xpose.msra.mxu0 0.0
  %2490 = vmatprep.subr.mxu0 0.0
  %2491 = vmatpush1.xpose.msra.mxu0 0.0
  %2492 = vmatprep.subr.mxu0 0.0
  %2493 = vmatpush1.xpose.msra.mxu0 0.0
  %2494 = vmatprep.subr.mxu0 0.0
  %2495 = vmatpush1.xpose.msra.mxu0 0.0
  %2496 = vmatprep.subr.mxu0 0.0
  %2497 = vmatpush1.xpose.msra.mxu0 0.0
  %2498 = vmatprep.subr.mxu0 0.0
  %2499 = vmatpush1.xpose.msra.mxu0 0.0
  %2500 = vmatprep.subr.mxu0 0.0
  %2501 = vmatpush1.xpose.msra.mxu0 0.0
  %2502 = vmatprep.subr.mxu0 0.0
  %2503 = vmatpush1.xpose.msra.mxu0 0.0
  %2504 = vmatprep.subr.mxu0 0.0
  %2505 = vmatpush1.xpose.msra.mxu0 0.0
  %2506 = vmatprep.subr.mxu0 0.0
  %2507 = vmatpush1.xpose.msra.mxu0 0.0
  %2508 = vmatprep.subr.mxu0 0.0
  %2509 = vmatpush1.xpose.msra.mxu0 0.0
  %2510 = vmatprep.subr.mxu0 0.0
  %2511 = vmatpush1.xpose.msra.mxu0 0.0
  %2512 = vmatprep.subr.mxu0 0.0
  %2513 = vmatpush1.xpose.msra.mxu0 0.0
  %2514 = vmatprep.subr.mxu0 0.0
  %2515 = vmatpush1.xpose.msra.mxu0 %v2482
  %2516 = vmatprep.subr.mxu0 0.0
  %2517 = vmatpush2.xpose.msra.mxu0 0.0
  %2518 = vmatprep.subr.mxu0 0.0
  %2519 = vmatpush2.xpose.msra.mxu0 0.0
  %2520 = vmatprep.subr.mxu0 0.0
  %2521 = vmatpush2.xpose.msra.mxu0 0.0
  %2522 = vmatprep.subr.mxu0 0.0
  %2523 = vmatpush2.xpose.msra.mxu0 0.0
  %2524 = vmatprep.subr.mxu0 0.0
  %2525 = vmatpush2.xpose.msra.mxu0 0.0
  %2526 = vmatprep.subr.mxu0 0.0
  %2527 = vmatpush2.xpose.msra.mxu0 0.0
  %2528 = vmatprep.subr.mxu0 0.0
  %2529 = vmatpush2.xpose.msra.mxu0 0.0
  %2530 = vmatprep.subr.mxu0 0.0
  %2531 = vmatpush2.xpose.msra.mxu0 0.0
  %2532 = vmatprep.subr.mxu0 0.0
  %2533 = vmatpush2.xpose.msra.mxu0 0.0
  %2534 = vmatprep.subr.mxu0 0.0
  %2535 = vmatpush2.xpose.msra.mxu0 0.0
  %2536 = vmatprep.subr.mxu0 0.0
  %2537 = vmatpush2.xpose.msra.mxu0 0.0
  %2538 = vmatprep.subr.mxu0 0.0
  %2539 = vmatpush2.xpose.msra.mxu0 0.0
  %2540 = vmatprep.subr.mxu0 0.0
  %2541 = vmatpush2.xpose.msra.mxu0 0.0
  %2542 = vmatprep.subr.mxu0 0.0
  %2543 = vmatpush2.xpose.msra.mxu0 0.0
  %2544 = vmatprep.subr.mxu0 0.0
  %2545 = vmatpush2.xpose.msra.mxu0 0.0
  %2546 = vmatprep.subr.mxu0 0.0
  %2547 = vmatpush2.xpose.msra.mxu0 0.0
  %2548 = vmatprep.mubr.f32.mxu0 0.0
  %2549 = vmatmul.mubr.f32.gmra.mxu0 %v2480
  %v2550 = vpop.f32.mrf.mxu0
  %v2551 = vadd.f32 0.0, %v2550
  %v2552 = vpop.f32.mrf.mxu0
  %2553 = vdwg.mxu0
  %2554 = vrot.lane.b32.xlu0 %v2169, 96
  %v2555 = vpop.permute.xlu0 %2554
  %v2556 = vsel %vm148, %v2169, 0
  %v2558 = vsel %vm148, %v2555, 0
  %2560 = vmatprep.subr.mxu0 0.0
  %2561 = vmatpush1.xpose.msra.mxu0 0.0
  %2562 = vmatprep.subr.mxu0 0.0
  %2563 = vmatpush1.xpose.msra.mxu0 0.0
  %2564 = vmatprep.subr.mxu0 0.0
  %2565 = vmatpush1.xpose.msra.mxu0 0.0
  %2566 = vmatprep.subr.mxu0 0.0
  %2567 = vmatpush1.xpose.msra.mxu0 0.0
  %2568 = vmatprep.subr.mxu0 0.0
  %2569 = vmatpush1.xpose.msra.mxu0 0.0
  %2570 = vmatprep.subr.mxu0 0.0
  %2571 = vmatpush1.xpose.msra.mxu0 0.0
  %2572 = vmatprep.subr.mxu0 0.0
  %2573 = vmatpush1.xpose.msra.mxu0 0.0
  %2574 = vmatprep.subr.mxu0 0.0
  %2575 = vmatpush1.xpose.msra.mxu0 0.0
  %2576 = vmatprep.subr.mxu0 0.0
  %2577 = vmatpush1.xpose.msra.mxu0 0.0
  %2578 = vmatprep.subr.mxu0 0.0
  %2579 = vmatpush1.xpose.msra.mxu0 0.0
  %2580 = vmatprep.subr.mxu0 0.0
  %2581 = vmatpush1.xpose.msra.mxu0 0.0
  %2582 = vmatprep.subr.mxu0 0.0
  %2583 = vmatpush1.xpose.msra.mxu0 0.0
  %2584 = vmatprep.subr.mxu0 0.0
  %2585 = vmatpush1.xpose.msra.mxu0 0.0
  %2586 = vmatprep.subr.mxu0 0.0
  %2587 = vmatpush1.xpose.msra.mxu0 0.0
  %2588 = vmatprep.subr.mxu0 0.0
  %2589 = vmatpush1.xpose.msra.mxu0 0.0
  %2590 = vmatprep.subr.mxu0 0.0
  %2591 = vmatpush1.xpose.msra.mxu0 %v2558
  %2592 = vmatprep.subr.mxu0 0.0
  %2593 = vmatpush2.xpose.msra.mxu0 0.0
  %2594 = vmatprep.subr.mxu0 0.0
  %2595 = vmatpush2.xpose.msra.mxu0 0.0
  %2596 = vmatprep.subr.mxu0 0.0
  %2597 = vmatpush2.xpose.msra.mxu0 0.0
  %2598 = vmatprep.subr.mxu0 0.0
  %2599 = vmatpush2.xpose.msra.mxu0 0.0
  %2600 = vmatprep.subr.mxu0 0.0
  %2601 = vmatpush2.xpose.msra.mxu0 0.0
  %2602 = vmatprep.subr.mxu0 0.0
  %2603 = vmatpush2.xpose.msra.mxu0 0.0
  %2604 = vmatprep.subr.mxu0 0.0
  %2605 = vmatpush2.xpose.msra.mxu0 0.0
  %2606 = vmatprep.subr.mxu0 0.0
  %2607 = vmatpush2.xpose.msra.mxu0 0.0
  %2608 = vmatprep.subr.mxu0 0.0
  %2609 = vmatpush2.xpose.msra.mxu0 0.0
  %2610 = vmatprep.subr.mxu0 0.0
  %2611 = vmatpush2.xpose.msra.mxu0 0.0
  %2612 = vmatprep.subr.mxu0 0.0
  %2613 = vmatpush2.xpose.msra.mxu0 0.0
  %2614 = vmatprep.subr.mxu0 0.0
  %2615 = vmatpush2.xpose.msra.mxu0 0.0
  %2616 = vmatprep.subr.mxu0 0.0
  %2617 = vmatpush2.xpose.msra.mxu0 0.0
  %2618 = vmatprep.subr.mxu0 0.0
  %2619 = vmatpush2.xpose.msra.mxu0 0.0
  %2620 = vmatprep.subr.mxu0 0.0
  %2621 = vmatpush2.xpose.msra.mxu0 0.0
  %2622 = vmatprep.subr.mxu0 0.0
  %2623 = vmatpush2.xpose.msra.mxu0 0.0
  %2624 = vmatprep.mubr.f32.mxu0 0.0
  %2625 = vmatmul.mubr.f32.gmra.mxu0 %v2556
  %v2626 = vpop.f32.mrf.mxu0
  %v2627 = vadd.f32 0.0, %v2626
  %v2628 = vpop.f32.mrf.mxu0
  %2629 = vdwg.mxu0
  %2630 = vrot.lane.b32.xlu0 %v2171, 96
  %v2631 = vpop.permute.xlu0 %2630
  %v2632 = vsel %vm148, %v2171, 0
  %v2634 = vsel %vm148, %v2631, 0
  %2636 = vmatprep.subr.mxu0 0.0
  %2637 = vmatpush1.xpose.msra.mxu0 0.0
  %2638 = vmatprep.subr.mxu0 0.0
  %2639 = vmatpush1.xpose.msra.mxu0 0.0
  %2640 = vmatprep.subr.mxu0 0.0
  %2641 = vmatpush1.xpose.msra.mxu0 0.0
  %2642 = vmatprep.subr.mxu0 0.0
  %2643 = vmatpush1.xpose.msra.mxu0 0.0
  %2644 = vmatprep.subr.mxu0 0.0
  %2645 = vmatpush1.xpose.msra.mxu0 0.0
  %2646 = vmatprep.subr.mxu0 0.0
  %2647 = vmatpush1.xpose.msra.mxu0 0.0
  %2648 = vmatprep.subr.mxu0 0.0
  %2649 = vmatpush1.xpose.msra.mxu0 0.0
  %2650 = vmatprep.subr.mxu0 0.0
  %2651 = vmatpush1.xpose.msra.mxu0 0.0
  %2652 = vmatprep.subr.mxu0 0.0
  %2653 = vmatpush1.xpose.msra.mxu0 0.0
  %2654 = vmatprep.subr.mxu0 0.0
  %2655 = vmatpush1.xpose.msra.mxu0 0.0
  %2656 = vmatprep.subr.mxu0 0.0
  %2657 = vmatpush1.xpose.msra.mxu0 0.0
  %2658 = vmatprep.subr.mxu0 0.0
  %2659 = vmatpush1.xpose.msra.mxu0 0.0
  %2660 = vmatprep.subr.mxu0 0.0
  %2661 = vmatpush1.xpose.msra.mxu0 0.0
  %2662 = vmatprep.subr.mxu0 0.0
  %2663 = vmatpush1.xpose.msra.mxu0 0.0
  %2664 = vmatprep.subr.mxu0 0.0
  %2665 = vmatpush1.xpose.msra.mxu0 0.0
  %2666 = vmatprep.subr.mxu0 0.0
  %2667 = vmatpush1.xpose.msra.mxu0 %v2634
  %2668 = vmatprep.subr.mxu0 0.0
  %2669 = vmatpush2.xpose.msra.mxu0 0.0
  %2670 = vmatprep.subr.mxu0 0.0
  %2671 = vmatpush2.xpose.msra.mxu0 0.0
  %2672 = vmatprep.subr.mxu0 0.0
  %2673 = vmatpush2.xpose.msra.mxu0 0.0
  %2674 = vmatprep.subr.mxu0 0.0
  %2675 = vmatpush2.xpose.msra.mxu0 0.0
  %2676 = vmatprep.subr.mxu0 0.0
  %2677 = vmatpush2.xpose.msra.mxu0 0.0
  %2678 = vmatprep.subr.mxu0 0.0
  %2679 = vmatpush2.xpose.msra.mxu0 0.0
  %2680 = vmatprep.subr.mxu0 0.0
  %2681 = vmatpush2.xpose.msra.mxu0 0.0
  %2682 = vmatprep.subr.mxu0 0.0
  %2683 = vmatpush2.xpose.msra.mxu0 0.0
  %2684 = vmatprep.subr.mxu0 0.0
  %2685 = vmatpush2.xpose.msra.mxu0 0.0
  %2686 = vmatprep.subr.mxu0 0.0
  %2687 = vmatpush2.xpose.msra.mxu0 0.0
  %2688 = vmatprep.subr.mxu0 0.0
  %2689 = vmatpush2.xpose.msra.mxu0 0.0
  %2690 = vmatprep.subr.mxu0 0.0
  %2691 = vmatpush2.xpose.msra.mxu0 0.0
  %2692 = vmatprep.subr.mxu0 0.0
  %2693 = vmatpush2.xpose.msra.mxu0 0.0
  %2694 = vmatprep.subr.mxu0 0.0
  %2695 = vmatpush2.xpose.msra.mxu0 0.0
  %2696 = vmatprep.subr.mxu0 0.0
  %2697 = vmatpush2.xpose.msra.mxu0 0.0
  %2698 = vmatprep.subr.mxu0 0.0
  %2699 = vmatpush2.xpose.msra.mxu0 0.0
  %2700 = vmatprep.mubr.f32.mxu0 0.0
  %2701 = vmatmul.mubr.f32.gmra.mxu0 %v2632
  %v2702 = vpop.f32.mrf.mxu0
  %v2703 = vadd.f32 0.0, %v2702
  %v2704 = vpop.f32.mrf.mxu0
  %2705 = vdwg.mxu0
  %2706 = vrot.lane.b32.xlu0 %v2173, 96
  %v2707 = vpop.permute.xlu0 %2706
  %v2708 = vsel %vm148, %v2173, 0
  %v2710 = vsel %vm148, %v2707, 0
  %2712 = vmatprep.subr.mxu0 0.0
  %2713 = vmatpush1.xpose.msra.mxu0 0.0
  %2714 = vmatprep.subr.mxu0 0.0
  %2715 = vmatpush1.xpose.msra.mxu0 0.0
  %2716 = vmatprep.subr.mxu0 0.0
  %2717 = vmatpush1.xpose.msra.mxu0 0.0
  %2718 = vmatprep.subr.mxu0 0.0
  %2719 = vmatpush1.xpose.msra.mxu0 0.0
  %2720 = vmatprep.subr.mxu0 0.0
  %2721 = vmatpush1.xpose.msra.mxu0 0.0
  %2722 = vmatprep.subr.mxu0 0.0
  %2723 = vmatpush1.xpose.msra.mxu0 0.0
  %2724 = vmatprep.subr.mxu0 0.0
  %2725 = vmatpush1.xpose.msra.mxu0 0.0
  %2726 = vmatprep.subr.mxu0 0.0
  %2727 = vmatpush1.xpose.msra.mxu0 0.0
  %2728 = vmatprep.subr.mxu0 0.0
  %2729 = vmatpush1.xpose.msra.mxu0 0.0
  %2730 = vmatprep.subr.mxu0 0.0
  %2731 = vmatpush1.xpose.msra.mxu0 0.0
  %2732 = vmatprep.subr.mxu0 0.0
  %2733 = vmatpush1.xpose.msra.mxu0 0.0
  %2734 = vmatprep.subr.mxu0 0.0
  %2735 = vmatpush1.xpose.msra.mxu0 0.0
  %2736 = vmatprep.subr.mxu0 0.0
  %2737 = vmatpush1.xpose.msra.mxu0 0.0
  %2738 = vmatprep.subr.mxu0 0.0
  %2739 = vmatpush1.xpose.msra.mxu0 0.0
  %2740 = vmatprep.subr.mxu0 0.0
  %2741 = vmatpush1.xpose.msra.mxu0 0.0
  %2742 = vmatprep.subr.mxu0 0.0
  %2743 = vmatpush1.xpose.msra.mxu0 %v2710
  %2744 = vmatprep.subr.mxu0 0.0
  %2745 = vmatpush2.xpose.msra.mxu0 0.0
  %2746 = vmatprep.subr.mxu0 0.0
  %2747 = vmatpush2.xpose.msra.mxu0 0.0
  %2748 = vmatprep.subr.mxu0 0.0
  %2749 = vmatpush2.xpose.msra.mxu0 0.0
  %2750 = vmatprep.subr.mxu0 0.0
  %2751 = vmatpush2.xpose.msra.mxu0 0.0
  %2752 = vmatprep.subr.mxu0 0.0
  %2753 = vmatpush2.xpose.msra.mxu0 0.0
  %2754 = vmatprep.subr.mxu0 0.0
  %2755 = vmatpush2.xpose.msra.mxu0 0.0
  %2756 = vmatprep.subr.mxu0 0.0
  %2757 = vmatpush2.xpose.msra.mxu0 0.0
  %2758 = vmatprep.subr.mxu0 0.0
  %2759 = vmatpush2.xpose.msra.mxu0 0.0
  %2760 = vmatprep.subr.mxu0 0.0
  %2761 = vmatpush2.xpose.msra.mxu0 0.0
  %2762 = vmatprep.subr.mxu0 0.0
  %2763 = vmatpush2.xpose.msra.mxu0 0.0
  %2764 = vmatprep.subr.mxu0 0.0
  %2765 = vmatpush2.xpose.msra.mxu0 0.0
  %2766 = vmatprep.subr.mxu0 0.0
  %2767 = vmatpush2.xpose.msra.mxu0 0.0
  %2768 = vmatprep.subr.mxu0 0.0
  %2769 = vmatpush2.xpose.msra.mxu0 0.0
  %2770 = vmatprep.subr.mxu0 0.0
  %2771 = vmatpush2.xpose.msra.mxu0 0.0
  %2772 = vmatprep.subr.mxu0 0.0
  %2773 = vmatpush2.xpose.msra.mxu0 0.0
  %2774 = vmatprep.subr.mxu0 0.0
  %2775 = vmatpush2.xpose.msra.mxu0 0.0
  %2776 = vmatprep.mubr.f32.mxu0 0.0
  %2777 = vmatmul.mubr.f32.gmra.mxu0 %v2708
  %v2778 = vpop.f32.mrf.mxu0
  %v2779 = vadd.f32 0.0, %v2778
  %v2780 = vpop.f32.mrf.mxu0
  %2781 = vdwg.mxu0
  %v2782 = vmul.f32 %v2247, 0.35355338
  %v2783 = vmul.f32 %v2323, 0.35355338
  %v2784 = vmul.f32 %v2399, 0.35355338
  %v2785 = vmul.f32 %v2475, 0.35355338
  %v2786 = vmul.f32 %v2551, 0.35355338
  %v2787 = vmul.f32 %v2627, 0.35355338
  %v2788 = vmul.f32 %v2703, 0.35355338
  %v2789 = vmul.f32 %v2779, 0.35355338
  %v2790 = vsel %vm148, %v2782, -inf
  %2791 = vmax.xlane.f32.xlu0 %v2790
  %v2792 = vpop.xlane.xlu0 %2791
  %v2793 = vsel %vm148, %v2783, -inf
  %2794 = vmax.xlane.f32.xlu0 %v2793
  %v2795 = vpop.xlane.xlu0 %2794
  %v2796 = vsel %vm148, %v2784, -inf
  %2797 = vmax.xlane.f32.xlu0 %v2796
  %v2798 = vpop.xlane.xlu0 %2797
  %v2799 = vsel %vm148, %v2785, -inf
  %2800 = vmax.xlane.f32.xlu0 %v2799
  %v2801 = vpop.xlane.xlu0 %2800
  %v2802 = vsel %vm148, %v2786, -inf
  %2803 = vmax.xlane.f32.xlu0 %v2802
  %v2804 = vpop.xlane.xlu0 %2803
  %v2805 = vsel %vm148, %v2787, -inf
  %2806 = vmax.xlane.f32.xlu0 %v2805
  %v2807 = vpop.xlane.xlu0 %2806
  %v2808 = vsel %vm148, %v2788, -inf
  %2809 = vmax.xlane.f32.xlu0 %v2808
  %v2810 = vpop.xlane.xlu0 %2809
  %v2811 = vsel %vm148, %v2789, -inf
  %2812 = vmax.xlane.f32.xlu0 %v2811
  %v2813 = vpop.xlane.xlu0 %2812
  %v2814 = vsub.f32 %v2782, %v2792
  %v2815 = vsub.f32 %v2783, %v2795
  %v2816 = vsub.f32 %v2784, %v2798
  %v2817 = vsub.f32 %v2785, %v2801
  %v2818 = vsub.f32 %v2786, %v2804
  %v2819 = vsub.f32 %v2787, %v2807
  %v2820 = vsub.f32 %v2788, %v2810
  %v2821 = vsub.f32 %v2789, %v2813
  %v2822 = vmul.f32 %v2814, 1.442695
  %v2823 = vpow.pop %v2822
  %v2824 = vmul.f32 %v2815, 1.442695
  %v2825 = vpow.pop %v2824
  %v2826 = vmul.f32 %v2816, 1.442695
  %v2827 = vpow.pop %v2826
  %v2828 = vmul.f32 %v2817, 1.442695
  %v2829 = vpow.pop %v2828
  %v2830 = vmul.f32 %v2818, 1.442695
  %v2831 = vpow.pop %v2830
  %v2832 = vmul.f32 %v2819, 1.442695
  %v2833 = vpow.pop %v2832
  %v2834 = vmul.f32 %v2820, 1.442695
  %v2835 = vpow.pop %v2834
  %v2836 = vmul.f32 %v2821, 1.442695
  %v2837 = vpow.pop %v2836
  %v2838 = vsel %vm148, %v2823, 0.0
  %2839 = vadd.xlane.f32.xlu0 %v2838
  %v2840 = vpop.xlane.xlu0 %2839
  %v2841 = vsel %vm148, %v2825, 0.0
  %2842 = vadd.xlane.f32.xlu0 %v2841
  %v2843 = vpop.xlane.xlu0 %2842
  %v2844 = vsel %vm148, %v2827, 0.0
  %2845 = vadd.xlane.f32.xlu0 %v2844
  %v2846 = vpop.xlane.xlu0 %2845
  %v2847 = vsel %vm148, %v2829, 0.0
  %2848 = vadd.xlane.f32.xlu0 %v2847
  %v2849 = vpop.xlane.xlu0 %2848
  %v2850 = vsel %vm148, %v2831, 0.0
  %2851 = vadd.xlane.f32.xlu0 %v2850
  %v2852 = vpop.xlane.xlu0 %2851
  %v2853 = vsel %vm148, %v2833, 0.0
  %2854 = vadd.xlane.f32.xlu0 %v2853
  %v2855 = vpop.xlane.xlu0 %2854
  %v2856 = vsel %vm148, %v2835, 0.0
  %2857 = vadd.xlane.f32.xlu0 %v2856
  %v2858 = vpop.xlane.xlu0 %2857
  %v2859 = vsel %vm148, %v2837, 0.0
  %2860 = vadd.xlane.f32.xlu0 %v2859
  %v2861 = vpop.xlane.xlu0 %2860
  %v2862 = vrcp.pop %v2840
  %v2863 = vrcp.pop %v2843
  %v2864 = vrcp.pop %v2846
  %v2865 = vrcp.pop %v2849
  %v2866 = vrcp.pop %v2852
  %v2867 = vrcp.pop %v2855
  %v2868 = vrcp.pop %v2858
  %v2869 = vrcp.pop %v2861
  %v2870 = vmul.f32 %v2823, %v2862
  %v2871 = vmul.f32 %v2825, %v2863
  %v2872 = vmul.f32 %v2827, %v2864
  %v2873 = vmul.f32 %v2829, %v2865
  %v2874 = vmul.f32 %v2831, %v2866
  %v2875 = vmul.f32 %v2833, %v2867
  %v2876 = vmul.f32 %v2835, %v2868
  %v2877 = vmul.f32 %v2837, %v2869
  %2878 = vrot.lane.b32.xlu0 %v2152, 64
  %v2879 = vpop.permute.xlu0 %2878
  %v2882 = vsel %vm148, %v2870, 0
  %2884 = vmatprep.subr.mxu0 0.0
  %2885 = vmatpush1.msra.mxu0 0.0
  %2886 = vmatprep.subr.mxu0 0.0
  %2887 = vmatpush1.msra.mxu0 0.0
  %2888 = vmatprep.subr.mxu0 0.0
  %2889 = vmatpush1.msra.mxu0 0.0
  %2890 = vmatprep.subr.mxu0 0.0
  %2891 = vmatpush1.msra.mxu0 0.0
  %2892 = vmatprep.subr.mxu0 0.0
  %2893 = vmatpush1.msra.mxu0 0.0
  %2894 = vmatprep.subr.mxu0 0.0
  %2895 = vmatpush1.msra.mxu0 0.0
  %2896 = vmatprep.subr.mxu0 0.0
  %2897 = vmatpush1.msra.mxu0 0.0
  %2898 = vmatprep.subr.mxu0 0.0
  %2899 = vmatpush1.msra.mxu0 0.0
  %2900 = vmatprep.subr.mxu0 0.0
  %2901 = vmatpush1.msra.mxu0 0.0
  %2902 = vmatprep.subr.mxu0 0.0
  %2903 = vmatpush1.msra.mxu0 0.0
  %2904 = vmatprep.subr.mxu0 0.0
  %2905 = vmatpush1.msra.mxu0 0.0
  %2906 = vmatprep.subr.mxu0 0.0
  %2907 = vmatpush1.msra.mxu0 0.0
  %2908 = vmatprep.subr.mxu0 0.0
  %2909 = vmatpush1.msra.mxu0 0.0
  %2910 = vmatprep.subr.mxu0 0.0
  %2911 = vmatpush1.msra.mxu0 0.0
  %2912 = vmatprep.subr.mxu0 0.0
  %2913 = vmatpush1.msra.mxu0 0.0
  %2914 = vmatprep.subr.mxu0 0.0
  %2915 = vmatpush1.msra.mxu0 %v2879
  %2916 = vmatprep.subr.mxu0 0.0
  %2917 = vmatpush2.msra.mxu0 0.0
  %2918 = vmatprep.subr.mxu0 0.0
  %2919 = vmatpush2.msra.mxu0 0.0
  %2920 = vmatprep.subr.mxu0 0.0
  %2921 = vmatpush2.msra.mxu0 0.0
  %2922 = vmatprep.subr.mxu0 0.0
  %2923 = vmatpush2.msra.mxu0 0.0
  %2924 = vmatprep.subr.mxu0 0.0
  %2925 = vmatpush2.msra.mxu0 0.0
  %2926 = vmatprep.subr.mxu0 0.0
  %2927 = vmatpush2.msra.mxu0 0.0
  %2928 = vmatprep.subr.mxu0 0.0
  %2929 = vmatpush2.msra.mxu0 0.0
  %2930 = vmatprep.subr.mxu0 0.0
  %2931 = vmatpush2.msra.mxu0 0.0
  %2932 = vmatprep.subr.mxu0 0.0
  %2933 = vmatpush2.msra.mxu0 0.0
  %2934 = vmatprep.subr.mxu0 0.0
  %2935 = vmatpush2.msra.mxu0 0.0
  %2936 = vmatprep.subr.mxu0 0.0
  %2937 = vmatpush2.msra.mxu0 0.0
  %2938 = vmatprep.subr.mxu0 0.0
  %2939 = vmatpush2.msra.mxu0 0.0
  %2940 = vmatprep.subr.mxu0 0.0
  %2941 = vmatpush2.msra.mxu0 0.0
  %2942 = vmatprep.subr.mxu0 0.0
  %2943 = vmatpush2.msra.mxu0 0.0
  %2944 = vmatprep.subr.mxu0 0.0
  %2945 = vmatpush2.msra.mxu0 0.0
  %2946 = vmatprep.subr.mxu0 0.0
  %2947 = vmatpush2.msra.mxu0 0.0
  %2948 = vmatprep.mubr.f32.mxu0 0.0
  %2949 = vmatmul.mubr.f32.gmra.mxu0 %v2882
  %v2950 = vpop.f32.mrf.mxu0
  %v2951 = vadd.f32 0.0, %v2950
  %v2952 = vpop.f32.mrf.mxu0
  %2953 = vdwg.mxu0
  %2954 = vrot.lane.b32.xlu0 %v2157, 64
  %v2955 = vpop.permute.xlu0 %2954
  %v2958 = vsel %vm148, %v2871, 0
  %2960 = vmatprep.subr.mxu0 0.0
  %2961 = vmatpush1.msra.mxu0 0.0
  %2962 = vmatprep.subr.mxu0 0.0
  %2963 = vmatpush1.msra.mxu0 0.0
  %2964 = vmatprep.subr.mxu0 0.0
  %2965 = vmatpush1.msra.mxu0 0.0
  %2966 = vmatprep.subr.mxu0 0.0
  %2967 = vmatpush1.msra.mxu0 0.0
  %2968 = vmatprep.subr.mxu0 0.0
  %2969 = vmatpush1.msra.mxu0 0.0
  %2970 = vmatprep.subr.mxu0 0.0
  %2971 = vmatpush1.msra.mxu0 0.0
  %2972 = vmatprep.subr.mxu0 0.0
  %2973 = vmatpush1.msra.mxu0 0.0
  %2974 = vmatprep.subr.mxu0 0.0
  %2975 = vmatpush1.msra.mxu0 0.0
  %2976 = vmatprep.subr.mxu0 0.0
  %2977 = vmatpush1.msra.mxu0 0.0
  %2978 = vmatprep.subr.mxu0 0.0
  %2979 = vmatpush1.msra.mxu0 0.0
  %2980 = vmatprep.subr.mxu0 0.0
  %2981 = vmatpush1.msra.mxu0 0.0
  %2982 = vmatprep.subr.mxu0 0.0
  %2983 = vmatpush1.msra.mxu0 0.0
  %2984 = vmatprep.subr.mxu0 0.0
  %2985 = vmatpush1.msra.mxu0 0.0
  %2986 = vmatprep.subr.mxu0 0.0
  %2987 = vmatpush1.msra.mxu0 0.0
  %2988 = vmatprep.subr.mxu0 0.0
  %2989 = vmatpush1.msra.mxu0 0.0
  %2990 = vmatprep.subr.mxu0 0.0
  %2991 = vmatpush1.msra.mxu0 %v2955
  %2992 = vmatprep.subr.mxu0 0.0
  %2993 = vmatpush2.msra.mxu0 0.0
  %2994 = vmatprep.subr.mxu0 0.0
  %2995 = vmatpush2.msra.mxu0 0.0
  %2996 = vmatprep.subr.mxu0 0.0
  %2997 = vmatpush2.msra.mxu0 0.0
  %2998 = vmatprep.subr.mxu0 0.0
  %2999 = vmatpush2.msra.mxu0 0.0
  %3000 = vmatprep.subr.mxu0 0.0
  %3001 = vmatpush2.msra.mxu0 0.0
  %3002 = vmatprep.subr.mxu0 0.0
  %3003 = vmatpush2.msra.mxu0 0.0
  %3004 = vmatprep.subr.mxu0 0.0
  %3005 = vmatpush2.msra.mxu0 0.0
  %3006 = vmatprep.subr.mxu0 0.0
  %3007 = vmatpush2.msra.mxu0 0.0
  %3008 = vmatprep.subr.mxu0 0.0
  %3009 = vmatpush2.msra.mxu0 0.0
  %3010 = vmatprep.subr.mxu0 0.0
  %3011 = vmatpush2.msra.mxu0 0.0
  %3012 = vmatprep.subr.mxu0 0.0
  %3013 = vmatpush2.msra.mxu0 0.0
  %3014 = vmatprep.subr.mxu0 0.0
  %3015 = vmatpush2.msra.mxu0 0.0
  %3016 = vmatprep.subr.mxu0 0.0
  %3017 = vmatpush2.msra.mxu0 0.0
  %3018 = vmatprep.subr.mxu0 0.0
  %3019 = vmatpush2.msra.mxu0 0.0
  %3020 = vmatprep.subr.mxu0 0.0
  %3021 = vmatpush2.msra.mxu0 0.0
  %3022 = vmatprep.subr.mxu0 0.0
  %3023 = vmatpush2.msra.mxu0 0.0
  %3024 = vmatprep.mubr.f32.mxu0 0.0
  %3025 = vmatmul.mubr.f32.gmra.mxu0 %v2958
  %v3026 = vpop.f32.mrf.mxu0
  %v3027 = vadd.f32 0.0, %v3026
  %v3028 = vpop.f32.mrf.mxu0
  %3029 = vdwg.mxu0
  %3030 = vrot.lane.b32.xlu0 %v2163, 64
  %v3031 = vpop.permute.xlu0 %3030
  %v3034 = vsel %vm148, %v2872, 0
  %3036 = vmatprep.subr.mxu0 0.0
  %3037 = vmatpush1.msra.mxu0 0.0
  %3038 = vmatprep.subr.mxu0 0.0
  %3039 = vmatpush1.msra.mxu0 0.0
  %3040 = vmatprep.subr.mxu0 0.0
  %3041 = vmatpush1.msra.mxu0 0.0
  %3042 = vmatprep.subr.mxu0 0.0
  %3043 = vmatpush1.msra.mxu0 0.0
  %3044 = vmatprep.subr.mxu0 0.0
  %3045 = vmatpush1.msra.mxu0 0.0
  %3046 = vmatprep.subr.mxu0 0.0
  %3047 = vmatpush1.msra.mxu0 0.0
  %3048 = vmatprep.subr.mxu0 0.0
  %3049 = vmatpush1.msra.mxu0 0.0
  %3050 = vmatprep.subr.mxu0 0.0
  %3051 = vmatpush1.msra.mxu0 0.0
  %3052 = vmatprep.subr.mxu0 0.0
  %3053 = vmatpush1.msra.mxu0 0.0
  %3054 = vmatprep.subr.mxu0 0.0
  %3055 = vmatpush1.msra.mxu0 0.0
  %3056 = vmatprep.subr.mxu0 0.0
  %3057 = vmatpush1.msra.mxu0 0.0
  %3058 = vmatprep.subr.mxu0 0.0
  %3059 = vmatpush1.msra.mxu0 0.0
  %3060 = vmatprep.subr.mxu0 0.0
  %3061 = vmatpush1.msra.mxu0 0.0
  %3062 = vmatprep.subr.mxu0 0.0
  %3063 = vmatpush1.msra.mxu0 0.0
  %3064 = vmatprep.subr.mxu0 0.0
  %3065 = vmatpush1.msra.mxu0 0.0
  %3066 = vmatprep.subr.mxu0 0.0
  %3067 = vmatpush1.msra.mxu0 %v3031
  %3068 = vmatprep.subr.mxu0 0.0
  %3069 = vmatpush2.msra.mxu0 0.0
  %3070 = vmatprep.subr.mxu0 0.0
  %3071 = vmatpush2.msra.mxu0 0.0
  %3072 = vmatprep.subr.mxu0 0.0
  %3073 = vmatpush2.msra.mxu0 0.0
  %3074 = vmatprep.subr.mxu0 0.0
  %3075 = vmatpush2.msra.mxu0 0.0
  %3076 = vmatprep.subr.mxu0 0.0
  %3077 = vmatpush2.msra.mxu0 0.0
  %3078 = vmatprep.subr.mxu0 0.0
  %3079 = vmatpush2.msra.mxu0 0.0
  %3080 = vmatprep.subr.mxu0 0.0
  %3081 = vmatpush2.msra.mxu0 0.0
  %3082 = vmatprep.subr.mxu0 0.0
  %3083 = vmatpush2.msra.mxu0 0.0
  %3084 = vmatprep.subr.mxu0 0.0
  %3085 = vmatpush2.msra.mxu0 0.0
  %3086 = vmatprep.subr.mxu0 0.0
  %3087 = vmatpush2.msra.mxu0 0.0
  %3088 = vmatprep.subr.mxu0 0.0
  %3089 = vmatpush2.msra.mxu0 0.0
  %3090 = vmatprep.subr.mxu0 0.0
  %3091 = vmatpush2.msra.mxu0 0.0
  %3092 = vmatprep.subr.mxu0 0.0
  %3093 = vmatpush2.msra.mxu0 0.0
  %3094 = vmatprep.subr.mxu0 0.0
  %3095 = vmatpush2.msra.mxu0 0.0
  %3096 = vmatprep.subr.mxu0 0.0
  %3097 = vmatpush2.msra.mxu0 0.0
  %3098 = vmatprep.subr.mxu0 0.0
  %3099 = vmatpush2.msra.mxu0 0.0
  %3100 = vmatprep.mubr.f32.mxu0 0.0
  %3101 = vmatmul.mubr.f32.gmra.mxu0 %v3034
  %v3102 = vpop.f32.mrf.mxu0
  %v3103 = vadd.f32 0.0, %v3102
  %v3104 = vpop.f32.mrf.mxu0
  %3105 = vdwg.mxu0
  %3106 = vrot.lane.b32.xlu0 %v2165, 64
  %v3107 = vpop.permute.xlu0 %3106
  %v3110 = vsel %vm148, %v2873, 0
  %3112 = vmatprep.subr.mxu0 0.0
  %3113 = vmatpush1.msra.mxu0 0.0
  %3114 = vmatprep.subr.mxu0 0.0
  %3115 = vmatpush1.msra.mxu0 0.0
  %3116 = vmatprep.subr.mxu0 0.0
  %3117 = vmatpush1.msra.mxu0 0.0
  %3118 = vmatprep.subr.mxu0 0.0
  %3119 = vmatpush1.msra.mxu0 0.0
  %3120 = vmatprep.subr.mxu0 0.0
  %3121 = vmatpush1.msra.mxu0 0.0
  %3122 = vmatprep.subr.mxu0 0.0
  %3123 = vmatpush1.msra.mxu0 0.0
  %3124 = vmatprep.subr.mxu0 0.0
  %3125 = vmatpush1.msra.mxu0 0.0
  %3126 = vmatprep.subr.mxu0 0.0
  %3127 = vmatpush1.msra.mxu0 0.0
  %3128 = vmatprep.subr.mxu0 0.0
  %3129 = vmatpush1.msra.mxu0 0.0
  %3130 = vmatprep.subr.mxu0 0.0
  %3131 = vmatpush1.msra.mxu0 0.0
  %3132 = vmatprep.subr.mxu0 0.0
  %3133 = vmatpush1.msra.mxu0 0.0
  %3134 = vmatprep.subr.mxu0 0.0
  %3135 = vmatpush1.msra.mxu0 0.0
  %3136 = vmatprep.subr.mxu0 0.0
  %3137 = vmatpush1.msra.mxu0 0.0
  %3138 = vmatprep.subr.mxu0 0.0
  %3139 = vmatpush1.msra.mxu0 0.0
  %3140 = vmatprep.subr.mxu0 0.0
  %3141 = vmatpush1.msra.mxu0 0.0
  %3142 = vmatprep.subr.mxu0 0.0
  %3143 = vmatpush1.msra.mxu0 %v3107
  %3144 = vmatprep.subr.mxu0 0.0
  %3145 = vmatpush2.msra.mxu0 0.0
  %3146 = vmatprep.subr.mxu0 0.0
  %3147 = vmatpush2.msra.mxu0 0.0
  %3148 = vmatprep.subr.mxu0 0.0
  %3149 = vmatpush2.msra.mxu0 0.0
  %3150 = vmatprep.subr.mxu0 0.0
  %3151 = vmatpush2.msra.mxu0 0.0
  %3152 = vmatprep.subr.mxu0 0.0
  %3153 = vmatpush2.msra.mxu0 0.0
  %3154 = vmatprep.subr.mxu0 0.0
  %3155 = vmatpush2.msra.mxu0 0.0
  %3156 = vmatprep.subr.mxu0 0.0
  %3157 = vmatpush2.msra.mxu0 0.0
  %3158 = vmatprep.subr.mxu0 0.0
  %3159 = vmatpush2.msra.mxu0 0.0
  %3160 = vmatprep.subr.mxu0 0.0
  %3161 = vmatpush2.msra.mxu0 0.0
  %3162 = vmatprep.subr.mxu0 0.0
  %3163 = vmatpush2.msra.mxu0 0.0
  %3164 = vmatprep.subr.mxu0 0.0
  %3165 = vmatpush2.msra.mxu0 0.0
  %3166 = vmatprep.subr.mxu0 0.0
  %3167 = vmatpush2.msra.mxu0 0.0
  %3168 = vmatprep.subr.mxu0 0.0
  %3169 = vmatpush2.msra.mxu0 0.0
  %3170 = vmatprep.subr.mxu0 0.0
  %3171 = vmatpush2.msra.mxu0 0.0
  %3172 = vmatprep.subr.mxu0 0.0
  %3173 = vmatpush2.msra.mxu0 0.0
  %3174 = vmatprep.subr.mxu0 0.0
  %3175 = vmatpush2.msra.mxu0 0.0
  %3176 = vmatprep.mubr.f32.mxu0 0.0
  %3177 = vmatmul.mubr.f32.gmra.mxu0 %v3110
  %v3178 = vpop.f32.mrf.mxu0
  %v3179 = vadd.f32 0.0, %v3178
  %v3180 = vpop.f32.mrf.mxu0
  %3181 = vdwg.mxu0
  %3182 = vrot.lane.b32.xlu0 %v2167, 64
  %v3183 = vpop.permute.xlu0 %3182
  %v3186 = vsel %vm148, %v2874, 0
  %3188 = vmatprep.subr.mxu0 0.0
  %3189 = vmatpush1.msra.mxu0 0.0
  %3190 = vmatprep.subr.mxu0 0.0
  %3191 = vmatpush1.msra.mxu0 0.0
  %3192 = vmatprep.subr.mxu0 0.0
  %3193 = vmatpush1.msra.mxu0 0.0
  %3194 = vmatprep.subr.mxu0 0.0
  %3195 = vmatpush1.msra.mxu0 0.0
  %3196 = vmatprep.subr.mxu0 0.0
  %3197 = vmatpush1.msra.mxu0 0.0
  %3198 = vmatprep.subr.mxu0 0.0
  %3199 = vmatpush1.msra.mxu0 0.0
  %3200 = vmatprep.subr.mxu0 0.0
  %3201 = vmatpush1.msra.mxu0 0.0
  %3202 = vmatprep.subr.mxu0 0.0
  %3203 = vmatpush1.msra.mxu0 0.0
  %3204 = vmatprep.subr.mxu0 0.0
  %3205 = vmatpush1.msra.mxu0 0.0
  %3206 = vmatprep.subr.mxu0 0.0
  %3207 = vmatpush1.msra.mxu0 0.0
  %3208 = vmatprep.subr.mxu0 0.0
  %3209 = vmatpush1.msra.mxu0 0.0
  %3210 = vmatprep.subr.mxu0 0.0
  %3211 = vmatpush1.msra.mxu0 0.0
  %3212 = vmatprep.subr.mxu0 0.0
  %3213 = vmatpush1.msra.mxu0 0.0
  %3214 = vmatprep.subr.mxu0 0.0
  %3215 = vmatpush1.msra.mxu0 0.0
  %3216 = vmatprep.subr.mxu0 0.0
  %3217 = vmatpush1.msra.mxu0 0.0
  %3218 = vmatprep.subr.mxu0 0.0
  %3219 = vmatpush1.msra.mxu0 %v3183
  %3220 = vmatprep.subr.mxu0 0.0
  %3221 = vmatpush2.msra.mxu0 0.0
  %3222 = vmatprep.subr.mxu0 0.0
  %3223 = vmatpush2.msra.mxu0 0.0
  %3224 = vmatprep.subr.mxu0 0.0
  %3225 = vmatpush2.msra.mxu0 0.0
  %3226 = vmatprep.subr.mxu0 0.0
  %3227 = vmatpush2.msra.mxu0 0.0
  %3228 = vmatprep.subr.mxu0 0.0
  %3229 = vmatpush2.msra.mxu0 0.0
  %3230 = vmatprep.subr.mxu0 0.0
  %3231 = vmatpush2.msra.mxu0 0.0
  %3232 = vmatprep.subr.mxu0 0.0
  %3233 = vmatpush2.msra.mxu0 0.0
  %3234 = vmatprep.subr.mxu0 0.0
  %3235 = vmatpush2.msra.mxu0 0.0
  %3236 = vmatprep.subr.mxu0 0.0
  %3237 = vmatpush2.msra.mxu0 0.0
  %3238 = vmatprep.subr.mxu0 0.0
  %3239 = vmatpush2.msra.mxu0 0.0
  %3240 = vmatprep.subr.mxu0 0.0
  %3241 = vmatpush2.msra.mxu0 0.0
  %3242 = vmatprep.subr.mxu0 0.0
  %3243 = vmatpush2.msra.mxu0 0.0
  %3244 = vmatprep.subr.mxu0 0.0
  %3245 = vmatpush2.msra.mxu0 0.0
  %3246 = vmatprep.subr.mxu0 0.0
  %3247 = vmatpush2.msra.mxu0 0.0
  %3248 = vmatprep.subr.mxu0 0.0
  %3249 = vmatpush2.msra.mxu0 0.0
  %3250 = vmatprep.subr.mxu0 0.0
  %3251 = vmatpush2.msra.mxu0 0.0
  %3252 = vmatprep.mubr.f32.mxu0 0.0
  %3253 = vmatmul.mubr.f32.gmra.mxu0 %v3186
  %v3254 = vpop.f32.mrf.mxu0
  %v3255 = vadd.f32 0.0, %v3254
  %v3256 = vpop.f32.mrf.mxu0
  %3257 = vdwg.mxu0
  %3258 = vrot.lane.b32.xlu0 %v2169, 64
  %v3259 = vpop.permute.xlu0 %3258
  %v3262 = vsel %vm148, %v2875, 0
  %3264 = vmatprep.subr.mxu0 0.0
  %3265 = vmatpush1.msra.mxu0 0.0
  %3266 = vmatprep.subr.mxu0 0.0
  %3267 = vmatpush1.msra.mxu0 0.0
  %3268 = vmatprep.subr.mxu0 0.0
  %3269 = vmatpush1.msra.mxu0 0.0
  %3270 = vmatprep.subr.mxu0 0.0
  %3271 = vmatpush1.msra.mxu0 0.0
  %3272 = vmatprep.subr.mxu0 0.0
  %3273 = vmatpush1.msra.mxu0 0.0
  %3274 = vmatprep.subr.mxu0 0.0
  %3275 = vmatpush1.msra.mxu0 0.0
  %3276 = vmatprep.subr.mxu0 0.0
  %3277 = vmatpush1.msra.mxu0 0.0
  %3278 = vmatprep.subr.mxu0 0.0
  %3279 = vmatpush1.msra.mxu0 0.0
  %3280 = vmatprep.subr.mxu0 0.0
  %3281 = vmatpush1.msra.mxu0 0.0
  %3282 = vmatprep.subr.mxu0 0.0
  %3283 = vmatpush1.msra.mxu0 0.0
  %3284 = vmatprep.subr.mxu0 0.0
  %3285 = vmatpush1.msra.mxu0 0.0
  %3286 = vmatprep.subr.mxu0 0.0
  %3287 = vmatpush1.msra.mxu0 0.0
  %3288 = vmatprep.subr.mxu0 0.0
  %3289 = vmatpush1.msra.mxu0 0.0
  %3290 = vmatprep.subr.mxu0 0.0
  %3291 = vmatpush1.msra.mxu0 0.0
  %3292 = vmatprep.subr.mxu0 0.0
  %3293 = vmatpush1.msra.mxu0 0.0
  %3294 = vmatprep.subr.mxu0 0.0
  %3295 = vmatpush1.msra.mxu0 %v3259
  %3296 = vmatprep.subr.mxu0 0.0
  %3297 = vmatpush2.msra.mxu0 0.0
  %3298 = vmatprep.subr.mxu0 0.0
  %3299 = vmatpush2.msra.mxu0 0.0
  %3300 = vmatprep.subr.mxu0 0.0
  %3301 = vmatpush2.msra.mxu0 0.0
  %3302 = vmatprep.subr.mxu0 0.0
  %3303 = vmatpush2.msra.mxu0 0.0
  %3304 = vmatprep.subr.mxu0 0.0
  %3305 = vmatpush2.msra.mxu0 0.0
  %3306 = vmatprep.subr.mxu0 0.0
  %3307 = vmatpush2.msra.mxu0 0.0
  %3308 = vmatprep.subr.mxu0 0.0
  %3309 = vmatpush2.msra.mxu0 0.0
  %3310 = vmatprep.subr.mxu0 0.0
  %3311 = vmatpush2.msra.mxu0 0.0
  %3312 = vmatprep.subr.mxu0 0.0
  %3313 = vmatpush2.msra.mxu0 0.0
  %3314 = vmatprep.subr.mxu0 0.0
  %3315 = vmatpush2.msra.mxu0 0.0
  %3316 = vmatprep.subr.mxu0 0.0
  %3317 = vmatpush2.msra.mxu0 0.0
  %3318 = vmatprep.subr.mxu0 0.0
  %3319 = vmatpush2.msra.mxu0 0.0
  %3320 = vmatprep.subr.mxu0 0.0
  %3321 = vmatpush2.msra.mxu0 0.0
  %3322 = vmatprep.subr.mxu0 0.0
  %3323 = vmatpush2.msra.mxu0 0.0
  %3324 = vmatprep.subr.mxu0 0.0
  %3325 = vmatpush2.msra.mxu0 0.0
  %3326 = vmatprep.subr.mxu0 0.0
  %3327 = vmatpush2.msra.mxu0 0.0
  %3328 = vmatprep.mubr.f32.mxu0 0.0
  %3329 = vmatmul.mubr.f32.gmra.mxu0 %v3262
  %v3330 = vpop.f32.mrf.mxu0
  %v3331 = vadd.f32 0.0, %v3330
  %v3332 = vpop.f32.mrf.mxu0
  %3333 = vdwg.mxu0
  %3334 = vrot.lane.b32.xlu0 %v2171, 64
  %v3335 = vpop.permute.xlu0 %3334
  %v3338 = vsel %vm148, %v2876, 0
  %3340 = vmatprep.subr.mxu0 0.0
  %3341 = vmatpush1.msra.mxu0 0.0
  %3342 = vmatprep.subr.mxu0 0.0
  %3343 = vmatpush1.msra.mxu0 0.0
  %3344 = vmatprep.subr.mxu0 0.0
  %3345 = vmatpush1.msra.mxu0 0.0
  %3346 = vmatprep.subr.mxu0 0.0
  %3347 = vmatpush1.msra.mxu0 0.0
  %3348 = vmatprep.subr.mxu0 0.0
  %3349 = vmatpush1.msra.mxu0 0.0
  %3350 = vmatprep.subr.mxu0 0.0
  %3351 = vmatpush1.msra.mxu0 0.0
  %3352 = vmatprep.subr.mxu0 0.0
  %3353 = vmatpush1.msra.mxu0 0.0
  %3354 = vmatprep.subr.mxu0 0.0
  %3355 = vmatpush1.msra.mxu0 0.0
  %3356 = vmatprep.subr.mxu0 0.0
  %3357 = vmatpush1.msra.mxu0 0.0
  %3358 = vmatprep.subr.mxu0 0.0
  %3359 = vmatpush1.msra.mxu0 0.0
  %3360 = vmatprep.subr.mxu0 0.0
  %3361 = vmatpush1.msra.mxu0 0.0
  %3362 = vmatprep.subr.mxu0 0.0
  %3363 = vmatpush1.msra.mxu0 0.0
  %3364 = vmatprep.subr.mxu0 0.0
  %3365 = vmatpush1.msra.mxu0 0.0
  %3366 = vmatprep.subr.mxu0 0.0
  %3367 = vmatpush1.msra.mxu0 0.0
  %3368 = vmatprep.subr.mxu0 0.0
  %3369 = vmatpush1.msra.mxu0 0.0
  %3370 = vmatprep.subr.mxu0 0.0
  %3371 = vmatpush1.msra.mxu0 %v3335
  %3372 = vmatprep.subr.mxu0 0.0
  %3373 = vmatpush2.msra.mxu0 0.0
  %3374 = vmatprep.subr.mxu0 0.0
  %3375 = vmatpush2.msra.mxu0 0.0
  %3376 = vmatprep.subr.mxu0 0.0
  %3377 = vmatpush2.msra.mxu0 0.0
  %3378 = vmatprep.subr.mxu0 0.0
  %3379 = vmatpush2.msra.mxu0 0.0
  %3380 = vmatprep.subr.mxu0 0.0
  %3381 = vmatpush2.msra.mxu0 0.0
  %3382 = vmatprep.subr.mxu0 0.0
  %3383 = vmatpush2.msra.mxu0 0.0
  %3384 = vmatprep.subr.mxu0 0.0
  %3385 = vmatpush2.msra.mxu0 0.0
  %3386 = vmatprep.subr.mxu0 0.0
  %3387 = vmatpush2.msra.mxu0 0.0
  %3388 = vmatprep.subr.mxu0 0.0
  %3389 = vmatpush2.msra.mxu0 0.0
  %3390 = vmatprep.subr.mxu0 0.0
  %3391 = vmatpush2.msra.mxu0 0.0
  %3392 = vmatprep.subr.mxu0 0.0
  %3393 = vmatpush2.msra.mxu0 0.0
  %3394 = vmatprep.subr.mxu0 0.0
  %3395 = vmatpush2.msra.mxu0 0.0
  %3396 = vmatprep.subr.mxu0 0.0
  %3397 = vmatpush2.msra.mxu0 0.0
  %3398 = vmatprep.subr.mxu0 0.0
  %3399 = vmatpush2.msra.mxu0 0.0
  %3400 = vmatprep.subr.mxu0 0.0
  %3401 = vmatpush2.msra.mxu0 0.0
  %3402 = vmatprep.subr.mxu0 0.0
  %3403 = vmatpush2.msra.mxu0 0.0
  %3404 = vmatprep.mubr.f32.mxu0 0.0
  %3405 = vmatmul.mubr.f32.gmra.mxu0 %v3338
  %v3406 = vpop.f32.mrf.mxu0
  %v3407 = vadd.f32 0.0, %v3406
  %v3408 = vpop.f32.mrf.mxu0
  %3409 = vdwg.mxu0
  %3410 = vrot.lane.b32.xlu0 %v2173, 64
  %v3411 = vpop.permute.xlu0 %3410
  %v3414 = vsel %vm148, %v2877, 0
  %3416 = vmatprep.subr.mxu0 0.0
  %3417 = vmatpush1.msra.mxu0 0.0
  %3418 = vmatprep.subr.mxu0 0.0
  %3419 = vmatpush1.msra.mxu0 0.0
  %3420 = vmatprep.subr.mxu0 0.0
  %3421 = vmatpush1.msra.mxu0 0.0
  %3422 = vmatprep.subr.mxu0 0.0
  %3423 = vmatpush1.msra.mxu0 0.0
  %3424 = vmatprep.subr.mxu0 0.0
  %3425 = vmatpush1.msra.mxu0 0.0
  %3426 = vmatprep.subr.mxu0 0.0
  %3427 = vmatpush1.msra.mxu0 0.0
  %3428 = vmatprep.subr.mxu0 0.0
  %3429 = vmatpush1.msra.mxu0 0.0
  %3430 = vmatprep.subr.mxu0 0.0
  %3431 = vmatpush1.msra.mxu0 0.0
  %3432 = vmatprep.subr.mxu0 0.0
  %3433 = vmatpush1.msra.mxu0 0.0
  %3434 = vmatprep.subr.mxu0 0.0
  %3435 = vmatpush1.msra.mxu0 0.0
  %3436 = vmatprep.subr.mxu0 0.0
  %3437 = vmatpush1.msra.mxu0 0.0
  %3438 = vmatprep.subr.mxu0 0.0
  %3439 = vmatpush1.msra.mxu0 0.0
  %3440 = vmatprep.subr.mxu0 0.0
  %3441 = vmatpush1.msra.mxu0 0.0
  %3442 = vmatprep.subr.mxu0 0.0
  %3443 = vmatpush1.msra.mxu0 0.0
  %3444 = vmatprep.subr.mxu0 0.0
  %3445 = vmatpush1.msra.mxu0 0.0
  %3446 = vmatprep.subr.mxu0 0.0
  %3447 = vmatpush1.msra.mxu0 %v3411
  %3448 = vmatprep.subr.mxu0 0.0
  %3449 = vmatpush2.msra.mxu0 0.0
  %3450 = vmatprep.subr.mxu0 0.0
  %3451 = vmatpush2.msra.mxu0 0.0
  %3452 = vmatprep.subr.mxu0 0.0
  %3453 = vmatpush2.msra.mxu0 0.0
  %3454 = vmatprep.subr.mxu0 0.0
  %3455 = vmatpush2.msra.mxu0 0.0
  %3456 = vmatprep.subr.mxu0 0.0
  %3457 = vmatpush2.msra.mxu0 0.0
  %3458 = vmatprep.subr.mxu0 0.0
  %3459 = vmatpush2.msra.mxu0 0.0
  %3460 = vmatprep.subr.mxu0 0.0
  %3461 = vmatpush2.msra.mxu0 0.0
  %3462 = vmatprep.subr.mxu0 0.0
  %3463 = vmatpush2.msra.mxu0 0.0
  %3464 = vmatprep.subr.mxu0 0.0
  %3465 = vmatpush2.msra.mxu0 0.0
  %3466 = vmatprep.subr.mxu0 0.0
  %3467 = vmatpush2.msra.mxu0 0.0
  %3468 = vmatprep.subr.mxu0 0.0
  %3469 = vmatpush2.msra.mxu0 0.0
  %3470 = vmatprep.subr.mxu0 0.0
  %3471 = vmatpush2.msra.mxu0 0.0
  %3472 = vmatprep.subr.mxu0 0.0
  %3473 = vmatpush2.msra.mxu0 0.0
  %3474 = vmatprep.subr.mxu0 0.0
  %3475 = vmatpush2.msra.mxu0 0.0
  %3476 = vmatprep.subr.mxu0 0.0
  %3477 = vmatpush2.msra.mxu0 0.0
  %3478 = vmatprep.subr.mxu0 0.0
  %3479 = vmatpush2.msra.mxu0 0.0
  %3480 = vmatprep.mubr.f32.mxu0 0.0
  %3481 = vmatmul.mubr.f32.gmra.mxu0 %v3414
  %v3482 = vpop.f32.mrf.mxu0
  %v3483 = vadd.f32 0.0, %v3482
  %v3484 = vpop.f32.mrf.mxu0
  %3485 = vdwg.mxu0
  %v3487 = vsel %vm148, %v2951, 0
  %v3490 = vsel %vm148, %v3027, 0
  %3492 = vmatprep.subr.mxu0 0.0
  %3493 = vmatpush1.msra.mxu0 0.0
  %3494 = vmatprep.subr.mxu0 0.0
  %3495 = vmatpush1.msra.mxu0 0.0
  %3496 = vmatprep.subr.mxu0 0.0
  %3497 = vmatpush1.msra.mxu0 0.0
  %3498 = vmatprep.subr.mxu0 0.0
  %3499 = vmatpush1.msra.mxu0 0.0
  %3500 = vmatprep.subr.mxu0 0.0
  %3501 = vmatpush1.msra.mxu0 0.0
  %3502 = vmatprep.subr.mxu0 0.0
  %3503 = vmatpush1.msra.mxu0 0.0
  %3504 = vmatprep.subr.mxu0 0.0
  %3505 = vmatpush1.msra.mxu0 0.0
  %3506 = vmatprep.subr.mxu0 0.0
  %3507 = vmatpush1.msra.mxu0 0.0
  %3508 = vmatprep.subr.mxu0 0.0
  %3509 = vmatpush1.msra.mxu0 0.0
  %3510 = vmatprep.subr.mxu0 0.0
  %3511 = vmatpush1.msra.mxu0 0.0
  %3512 = vmatprep.subr.mxu0 0.0
  %3513 = vmatpush1.msra.mxu0 0.0
  %3514 = vmatprep.subr.mxu0 0.0
  %3515 = vmatpush1.msra.mxu0 0.0
  %3516 = vmatprep.subr.mxu0 0.0
  %3517 = vmatpush1.msra.mxu0 0.0
  %3518 = vmatprep.subr.mxu0 0.0
  %3519 = vmatpush1.msra.mxu0 0.0
  %3520 = vmatprep.subr.mxu0 0.0
  %3521 = vmatpush1.msra.mxu0 0.0
  %3522 = vmatprep.subr.mxu0 0.0
  %3523 = vmatpush1.msra.mxu0 %v2055
  %3524 = vmatprep.subr.mxu0 0.0
  %3525 = vmatpush2.msra.mxu0 0.0
  %3526 = vmatprep.subr.mxu0 0.0
  %3527 = vmatpush2.msra.mxu0 0.0
  %3528 = vmatprep.subr.mxu0 0.0
  %3529 = vmatpush2.msra.mxu0 0.0
  %3530 = vmatprep.subr.mxu0 0.0
  %3531 = vmatpush2.msra.mxu0 0.0
  %3532 = vmatprep.subr.mxu0 0.0
  %3533 = vmatpush2.msra.mxu0 0.0
  %3534 = vmatprep.subr.mxu0 0.0
  %3535 = vmatpush2.msra.mxu0 0.0
  %3536 = vmatprep.subr.mxu0 0.0
  %3537 = vmatpush2.msra.mxu0 0.0
  %3538 = vmatprep.subr.mxu0 0.0
  %3539 = vmatpush2.msra.mxu0 0.0
  %3540 = vmatprep.subr.mxu0 0.0
  %3541 = vmatpush2.msra.mxu0 0.0
  %3542 = vmatprep.subr.mxu0 0.0
  %3543 = vmatpush2.msra.mxu0 0.0
  %3544 = vmatprep.subr.mxu0 0.0
  %3545 = vmatpush2.msra.mxu0 0.0
  %3546 = vmatprep.subr.mxu0 0.0
  %3547 = vmatpush2.msra.mxu0 0.0
  %3548 = vmatprep.subr.mxu0 0.0
  %3549 = vmatpush2.msra.mxu0 0.0
  %3550 = vmatprep.subr.mxu0 0.0
  %3551 = vmatpush2.msra.mxu0 0.0
  %3552 = vmatprep.subr.mxu0 0.0
  %3553 = vmatpush2.msra.mxu0 0.0
  %3554 = vmatprep.subr.mxu0 0.0
  %3555 = vmatpush2.msra.mxu0 0.0
  %3556 = vmatprep.mubr.f32.mxu0 0.0
  %3557 = vmatmul.mubr.f32.gmra.mxu0 %v3487
  %v3558 = vpop.f32.mrf.mxu0
  %v3559 = vadd.f32 0.0, %v3558
  %v3560 = vpop.f32.mrf.mxu0
  %3561 = vmatprep.mubr.f32.mxu0 0.0
  %3562 = vmatmul.mubr.f32.gmra.mxu0 %v3490
  %v3563 = vpop.f32.mrf.mxu0
  %v3564 = vadd.f32 0.0, %v3563
  %v3565 = vpop.f32.mrf.mxu0
  %3566 = vdwg.mxu0
  %v3567 = vlaneseq
  %v3568 = vshrl.u32 %v3567, 7
  %v3569 = vsub.s32 1, %v3568
  %v3570 = vrot.slane %v2074, %v3569
  %v3571 = vadd.f32 %v3570, %v3559
  %v3572 = vadd.f32 %v3570, %v3564
  %v3574 = vsel %vm148, %v3103, 0
  %v3577 = vsel %vm148, %v3179, 0
  %3579 = vmatprep.subr.mxu0 0.0
  %3580 = vmatpush1.msra.mxu0 0.0
  %3581 = vmatprep.subr.mxu0 0.0
  %3582 = vmatpush1.msra.mxu0 0.0
  %3583 = vmatprep.subr.mxu0 0.0
  %3584 = vmatpush1.msra.mxu0 0.0
  %3585 = vmatprep.subr.mxu0 0.0
  %3586 = vmatpush1.msra.mxu0 0.0
  %3587 = vmatprep.subr.mxu0 0.0
  %3588 = vmatpush1.msra.mxu0 0.0
  %3589 = vmatprep.subr.mxu0 0.0
  %3590 = vmatpush1.msra.mxu0 0.0
  %3591 = vmatprep.subr.mxu0 0.0
  %3592 = vmatpush1.msra.mxu0 0.0
  %3593 = vmatprep.subr.mxu0 0.0
  %3594 = vmatpush1.msra.mxu0 0.0
  %3595 = vmatprep.subr.mxu0 0.0
  %3596 = vmatpush1.msra.mxu0 0.0
  %3597 = vmatprep.subr.mxu0 0.0
  %3598 = vmatpush1.msra.mxu0 0.0
  %3599 = vmatprep.subr.mxu0 0.0
  %3600 = vmatpush1.msra.mxu0 0.0
  %3601 = vmatprep.subr.mxu0 0.0
  %3602 = vmatpush1.msra.mxu0 0.0
  %3603 = vmatprep.subr.mxu0 0.0
  %3604 = vmatpush1.msra.mxu0 0.0
  %3605 = vmatprep.subr.mxu0 0.0
  %3606 = vmatpush1.msra.mxu0 0.0
  %3607 = vmatprep.subr.mxu0 0.0
  %3608 = vmatpush1.msra.mxu0 0.0
  %3609 = vmatprep.subr.mxu0 0.0
  %3610 = vmatpush1.msra.mxu0 %v2056
  %3611 = vmatprep.subr.mxu0 0.0
  %3612 = vmatpush2.msra.mxu0 0.0
  %3613 = vmatprep.subr.mxu0 0.0
  %3614 = vmatpush2.msra.mxu0 0.0
  %3615 = vmatprep.subr.mxu0 0.0
  %3616 = vmatpush2.msra.mxu0 0.0
  %3617 = vmatprep.subr.mxu0 0.0
  %3618 = vmatpush2.msra.mxu0 0.0
  %3619 = vmatprep.subr.mxu0 0.0
  %3620 = vmatpush2.msra.mxu0 0.0
  %3621 = vmatprep.subr.mxu0 0.0
  %3622 = vmatpush2.msra.mxu0 0.0
  %3623 = vmatprep.subr.mxu0 0.0
  %3624 = vmatpush2.msra.mxu0 0.0
  %3625 = vmatprep.subr.mxu0 0.0
  %3626 = vmatpush2.msra.mxu0 0.0
  %3627 = vmatprep.subr.mxu0 0.0
  %3628 = vmatpush2.msra.mxu0 0.0
  %3629 = vmatprep.subr.mxu0 0.0
  %3630 = vmatpush2.msra.mxu0 0.0
  %3631 = vmatprep.subr.mxu0 0.0
  %3632 = vmatpush2.msra.mxu0 0.0
  %3633 = vmatprep.subr.mxu0 0.0
  %3634 = vmatpush2.msra.mxu0 0.0
  %3635 = vmatprep.subr.mxu0 0.0
  %3636 = vmatpush2.msra.mxu0 0.0
  %3637 = vmatprep.subr.mxu0 0.0
  %3638 = vmatpush2.msra.mxu0 0.0
  %3639 = vmatprep.subr.mxu0 0.0
  %3640 = vmatpush2.msra.mxu0 0.0
  %3641 = vmatprep.subr.mxu0 0.0
  %3642 = vmatpush2.msra.mxu0 0.0
  %3643 = vmatprep.mubr.f32.mxu0 0.0
  %3644 = vmatmul.mubr.f32.gmra.mxu0 %v3574
  %v3645 = vpop.f32.mrf.mxu0
  %v3646 = vadd.f32 0.0, %v3645
  %v3647 = vpop.f32.mrf.mxu0
  %3648 = vmatprep.mubr.f32.mxu0 0.0
  %3649 = vmatmul.mubr.f32.gmra.mxu0 %v3577
  %v3650 = vpop.f32.mrf.mxu0
  %v3651 = vadd.f32 0.0, %v3650
  %v3652 = vpop.f32.mrf.mxu0
  %3653 = vdwg.mxu0
  %v3654 = vadd.f32 %v3571, %v3646
  %v3655 = vadd.f32 %v3572, %v3651
  %v3657 = vsel %vm148, %v3255, 0
  %v3660 = vsel %vm148, %v3331, 0
  %3662 = vmatprep.subr.mxu0 0.0
  %3663 = vmatpush1.msra.mxu0 0.0
  %3664 = vmatprep.subr.mxu0 0.0
  %3665 = vmatpush1.msra.mxu0 0.0
  %3666 = vmatprep.subr.mxu0 0.0
  %3667 = vmatpush1.msra.mxu0 0.0
  %3668 = vmatprep.subr.mxu0 0.0
  %3669 = vmatpush1.msra.mxu0 0.0
  %3670 = vmatprep.subr.mxu0 0.0
  %3671 = vmatpush1.msra.mxu0 0.0
  %3672 = vmatprep.subr.mxu0 0.0
  %3673 = vmatpush1.msra.mxu0 0.0
  %3674 = vmatprep.subr.mxu0 0.0
  %3675 = vmatpush1.msra.mxu0 0.0
  %3676 = vmatprep.subr.mxu0 0.0
  %3677 = vmatpush1.msra.mxu0 0.0
  %3678 = vmatprep.subr.mxu0 0.0
  %3679 = vmatpush1.msra.mxu0 0.0
  %3680 = vmatprep.subr.mxu0 0.0
  %3681 = vmatpush1.msra.mxu0 0.0
  %3682 = vmatprep.subr.mxu0 0.0
  %3683 = vmatpush1.msra.mxu0 0.0
  %3684 = vmatprep.subr.mxu0 0.0
  %3685 = vmatpush1.msra.mxu0 0.0
  %3686 = vmatprep.subr.mxu0 0.0
  %3687 = vmatpush1.msra.mxu0 0.0
  %3688 = vmatprep.subr.mxu0 0.0
  %3689 = vmatpush1.msra.mxu0 0.0
  %3690 = vmatprep.subr.mxu0 0.0
  %3691 = vmatpush1.msra.mxu0 0.0
  %3692 = vmatprep.subr.mxu0 0.0
  %3693 = vmatpush1.msra.mxu0 %v2057
  %3694 = vmatprep.subr.mxu0 0.0
  %3695 = vmatpush2.msra.mxu0 0.0
  %3696 = vmatprep.subr.mxu0 0.0
  %3697 = vmatpush2.msra.mxu0 0.0
  %3698 = vmatprep.subr.mxu0 0.0
  %3699 = vmatpush2.msra.mxu0 0.0
  %3700 = vmatprep.subr.mxu0 0.0
  %3701 = vmatpush2.msra.mxu0 0.0
  %3702 = vmatprep.subr.mxu0 0.0
  %3703 = vmatpush2.msra.mxu0 0.0
  %3704 = vmatprep.subr.mxu0 0.0
  %3705 = vmatpush2.msra.mxu0 0.0
  %3706 = vmatprep.subr.mxu0 0.0
  %3707 = vmatpush2.msra.mxu0 0.0
  %3708 = vmatprep.subr.mxu0 0.0
  %3709 = vmatpush2.msra.mxu0 0.0
  %3710 = vmatprep.subr.mxu0 0.0
  %3711 = vmatpush2.msra.mxu0 0.0
  %3712 = vmatprep.subr.mxu0 0.0
  %3713 = vmatpush2.msra.mxu0 0.0
  %3714 = vmatprep.subr.mxu0 0.0
  %3715 = vmatpush2.msra.mxu0 0.0
  %3716 = vmatprep.subr.mxu0 0.0
  %3717 = vmatpush2.msra.mxu0 0.0
  %3718 = vmatprep.subr.mxu0 0.0
  %3719 = vmatpush2.msra.mxu0 0.0
  %3720 = vmatprep.subr.mxu0 0.0
  %3721 = vmatpush2.msra.mxu0 0.0
  %3722 = vmatprep.subr.mxu0 0.0
  %3723 = vmatpush2.msra.mxu0 0.0
  %3724 = vmatprep.subr.mxu0 0.0
  %3725 = vmatpush2.msra.mxu0 0.0
  %3726 = vmatprep.mubr.f32.mxu0 0.0
  %3727 = vmatmul.mubr.f32.gmra.mxu0 %v3657
  %v3728 = vpop.f32.mrf.mxu0
  %v3729 = vadd.f32 0.0, %v3728
  %v3730 = vpop.f32.mrf.mxu0
  %3731 = vmatprep.mubr.f32.mxu0 0.0
  %3732 = vmatmul.mubr.f32.gmra.mxu0 %v3660
  %v3733 = vpop.f32.mrf.mxu0
  %v3734 = vadd.f32 0.0, %v3733
  %v3735 = vpop.f32.mrf.mxu0
  %3736 = vdwg.mxu0
  %v3737 = vadd.f32 %v3654, %v3729
  %v3738 = vadd.f32 %v3655, %v3734
  %v3740 = vsel %vm148, %v3407, 0
  %v3743 = vsel %vm148, %v3483, 0
  %3745 = vmatprep.subr.mxu0 0.0
  %3746 = vmatpush1.msra.mxu0 0.0
  %3747 = vmatprep.subr.mxu0 0.0
  %3748 = vmatpush1.msra.mxu0 0.0
  %3749 = vmatprep.subr.mxu0 0.0
  %3750 = vmatpush1.msra.mxu0 0.0
  %3751 = vmatprep.subr.mxu0 0.0
  %3752 = vmatpush1.msra.mxu0 0.0
  %3753 = vmatprep.subr.mxu0 0.0
  %3754 = vmatpush1.msra.mxu0 0.0
  %3755 = vmatprep.subr.mxu0 0.0
  %3756 = vmatpush1.msra.mxu0 0.0
  %3757 = vmatprep.subr.mxu0 0.0
  %3758 = vmatpush1.msra.mxu0 0.0
  %3759 = vmatprep.subr.mxu0 0.0
  %3760 = vmatpush1.msra.mxu0 0.0
  %3761 = vmatprep.subr.mxu0 0.0
  %3762 = vmatpush1.msra.mxu0 0.0
  %3763 = vmatprep.subr.mxu0 0.0
  %3764 = vmatpush1.msra.mxu0 0.0
  %3765 = vmatprep.subr.mxu0 0.0
  %3766 = vmatpush1.msra.mxu0 0.0
  %3767 = vmatprep.subr.mxu0 0.0
  %3768 = vmatpush1.msra.mxu0 0.0
  %3769 = vmatprep.subr.mxu0 0.0
  %3770 = vmatpush1.msra.mxu0 0.0
  %3771 = vmatprep.subr.mxu0 0.0
  %3772 = vmatpush1.msra.mxu0 0.0
  %3773 = vmatprep.subr.mxu0 0.0
  %3774 = vmatpush1.msra.mxu0 0.0
  %3775 = vmatprep.subr.mxu0 0.0
  %3776 = vmatpush1.msra.mxu0 %v2058
  %3777 = vmatprep.subr.mxu0 0.0
  %3778 = vmatpush2.msra.mxu0 0.0
  %3779 = vmatprep.subr.mxu0 0.0
  %3780 = vmatpush2.msra.mxu0 0.0
  %3781 = vmatprep.subr.mxu0 0.0
  %3782 = vmatpush2.msra.mxu0 0.0
  %3783 = vmatprep.subr.mxu0 0.0
  %3784 = vmatpush2.msra.mxu0 0.0
  %3785 = vmatprep.subr.mxu0 0.0
  %3786 = vmatpush2.msra.mxu0 0.0
  %3787 = vmatprep.subr.mxu0 0.0
  %3788 = vmatpush2.msra.mxu0 0.0
  %3789 = vmatprep.subr.mxu0 0.0
  %3790 = vmatpush2.msra.mxu0 0.0
  %3791 = vmatprep.subr.mxu0 0.0
  %3792 = vmatpush2.msra.mxu0 0.0
  %3793 = vmatprep.subr.mxu0 0.0
  %3794 = vmatpush2.msra.mxu0 0.0
  %3795 = vmatprep.subr.mxu0 0.0
  %3796 = vmatpush2.msra.mxu0 0.0
  %3797 = vmatprep.subr.mxu0 0.0
  %3798 = vmatpush2.msra.mxu0 0.0
  %3799 = vmatprep.subr.mxu0 0.0
  %3800 = vmatpush2.msra.mxu0 0.0
  %3801 = vmatprep.subr.mxu0 0.0
  %3802 = vmatpush2.msra.mxu0 0.0
  %3803 = vmatprep.subr.mxu0 0.0
  %3804 = vmatpush2.msra.mxu0 0.0
  %3805 = vmatprep.subr.mxu0 0.0
  %3806 = vmatpush2.msra.mxu0 0.0
  %3807 = vmatprep.subr.mxu0 0.0
  %3808 = vmatpush2.msra.mxu0 0.0
  %3809 = vmatprep.mubr.f32.mxu0 0.0
  %3810 = vmatmul.mubr.f32.gmra.mxu0 %v3740
  %v3811 = vpop.f32.mrf.mxu0
  %v3812 = vadd.f32 0.0, %v3811
  %v3813 = vpop.f32.mrf.mxu0
  %3814 = vmatprep.mubr.f32.mxu0 0.0
  %3815 = vmatmul.mubr.f32.gmra.mxu0 %v3743
  %v3816 = vpop.f32.mrf.mxu0
  %v3817 = vadd.f32 0.0, %v3816
  %v3818 = vpop.f32.mrf.mxu0
  %3819 = vdwg.mxu0
  %v3820 = vadd.f32 %v3737, %v3812
  %v3821 = vadd.f32 %v3738, %v3817
  %v3822 = vadd.f32 %v2047, %v3820
  %v3823 = vadd.f32 %v2048, %v3821
  %v3824 = vsel %vm50, %v3822, 0.0
  %3825 = vadd.xlane.f32.xlu0 %v3824
  %v3826 = vpop.xlane.xlu0 %3825
  %v3827 = vsel %vm50, %v3823, 0.0
  %3828 = vadd.xlane.f32.xlu0 %v3827
  %v3829 = vpop.xlane.xlu0 %3828
  %v3830 = vmul.f32 %v3826, %v1803
  %v3831 = vmul.f32 %v3829, %v1803
  %v3832 = vsub.f32 %v3822, %v3830
  %v3833 = vsub.f32 %v3823, %v3831
  %v3834 = vmul.f32 %v3832, %v3832
  %v3835 = vmul.f32 %v3833, %v3833
  %v3836 = vsel %vm50, %v3834, 0.0
  %3837 = vadd.xlane.f32.xlu0 %v3836
  %v3838 = vpop.xlane.xlu0 %3837
  %v3839 = vsel %vm50, %v3835, 0.0
  %3840 = vadd.xlane.f32.xlu0 %v3839
  %v3841 = vpop.xlane.xlu0 %3840
  %v3842 = vmul.f32 %v3838, %v1803
  %v3843 = vmul.f32 %v3841, %v1803
  %v3844 = vadd.f32 %v3842, 1e-05
  %v3845 = vadd.f32 %v3843, 1e-05
  %v3846 = vrsqrt.pop %v3844
  %v3847 = vrsqrt.pop %v3845
  %v3848 = vmul.f32 %v3832, %v3846
  %v3849 = vmul.f32 %v3833, %v3847
  %v3850 = vlaneseq
  %v3851 = vshrl.u32 %v3850, 7
  %v3852 = vsub.s32 4, %v3851
  %v3853 = vrot.slane %v2074, %v3852
  %v3854 = vmul.f32 %v3848, %v3853
  %v3855 = vmul.f32 %v3849, %v3853
  %v3856 = vlaneseq
  %v3857 = vshrl.u32 %v3856, 7
  %v3858 = vsub.s32 5, %v3857
  %v3859 = vrot.slane %v2074, %v3858
  %v3860 = vadd.f32 %v3854, %v3859
  %v3861 = vadd.f32 %v3855, %v3859
  %v3862 = vlaneseq
  %v3863 = vshrl.u32 %v3862, 7
  %v3864 = vsub.s32 2, %v3863
  %v3865 = vrot.slane %v2074, %v3864
  %v3867 = vsel %vm50, %v3860, 0
  %v3870 = vsel %vm50, %v3861, 0
  %3872 = vmatprep.subr.mxu0 0.0
  %3873 = vmatpush1.msra.mxu0 0.0
  %3874 = vmatprep.subr.mxu0 0.0
  %3875 = vmatpush1.msra.mxu0 0.0
  %3876 = vmatprep.subr.mxu0 0.0
  %3877 = vmatpush1.msra.mxu0 0.0
  %3878 = vmatprep.subr.mxu0 0.0
  %3879 = vmatpush1.msra.mxu0 0.0
  %3880 = vmatprep.subr.mxu0 0.0
  %3881 = vmatpush1.msra.mxu0 0.0
  %3882 = vmatprep.subr.mxu0 0.0
  %3883 = vmatpush1.msra.mxu0 0.0
  %3884 = vmatprep.subr.mxu0 0.0
  %3885 = vmatpush1.msra.mxu0 0.0
  %3886 = vmatprep.subr.mxu0 0.0
  %3887 = vmatpush1.msra.mxu0 0.0
  %3888 = vmatprep.subr.mxu0 0.0
  %3889 = vmatpush1.msra.mxu0 0.0
  %3890 = vmatprep.subr.mxu0 0.0
  %3891 = vmatpush1.msra.mxu0 0.0
  %3892 = vmatprep.subr.mxu0 0.0
  %3893 = vmatpush1.msra.mxu0 0.0
  %3894 = vmatprep.subr.mxu0 0.0
  %3895 = vmatpush1.msra.mxu0 0.0
  %3896 = vmatprep.subr.mxu0 0.0
  %3897 = vmatpush1.msra.mxu0 %v2063
  %3898 = vmatprep.subr.mxu0 0.0
  %3899 = vmatpush1.msra.mxu0 %v2062
  %3900 = vmatprep.subr.mxu0 0.0
  %3901 = vmatpush1.msra.mxu0 %v2061
  %3902 = vmatprep.subr.mxu0 0.0
  %3903 = vmatpush1.msra.mxu0 %v2060
  %3904 = vmatprep.subr.mxu0 0.0
  %3905 = vmatpush2.msra.mxu0 0.0
  %3906 = vmatprep.subr.mxu0 0.0
  %3907 = vmatpush2.msra.mxu0 0.0
  %3908 = vmatprep.subr.mxu0 0.0
  %3909 = vmatpush2.msra.mxu0 0.0
  %3910 = vmatprep.subr.mxu0 0.0
  %3911 = vmatpush2.msra.mxu0 0.0
  %3912 = vmatprep.subr.mxu0 0.0
  %3913 = vmatpush2.msra.mxu0 0.0
  %3914 = vmatprep.subr.mxu0 0.0
  %3915 = vmatpush2.msra.mxu0 0.0
  %3916 = vmatprep.subr.mxu0 0.0
  %3917 = vmatpush2.msra.mxu0 0.0
  %3918 = vmatprep.subr.mxu0 0.0
  %3919 = vmatpush2.msra.mxu0 0.0
  %3920 = vmatprep.subr.mxu0 0.0
  %3921 = vmatpush2.msra.mxu0 0.0
  %3922 = vmatprep.subr.mxu0 0.0
  %3923 = vmatpush2.msra.mxu0 0.0
  %3924 = vmatprep.subr.mxu0 0.0
  %3925 = vmatpush2.msra.mxu0 0.0
  %3926 = vmatprep.subr.mxu0 0.0
  %3927 = vmatpush2.msra.mxu0 0.0
  %3928 = vmatprep.subr.mxu0 0.0
  %3929 = vmatpush2.msra.mxu0 0.0
  %3930 = vmatprep.subr.mxu0 0.0
  %3931 = vmatpush2.msra.mxu0 0.0
  %3932 = vmatprep.subr.mxu0 0.0
  %3933 = vmatpush2.msra.mxu0 0.0
  %3934 = vmatprep.subr.mxu0 0.0
  %3935 = vmatpush2.msra.mxu0 0.0
  %3936 = vmatprep.mubr.f32.mxu0 0.0
  %3937 = vmatmul.mubr.f32.gmra.mxu0 %v3867
  %v3938 = vpop.f32.mrf.mxu0
  %v3939 = vadd.f32 %v3865, %v3938
  %v3940 = vpop.f32.mrf.mxu0
  %3941 = vmatprep.mubr.f32.mxu0 0.0
  %3942 = vmatmul.mubr.f32.gmra.mxu0 %v3870
  %v3943 = vpop.f32.mrf.mxu0
  %v3944 = vadd.f32 %v3865, %v3943
  %v3945 = vpop.f32.mrf.mxu0
  %3946 = vdwg.mxu0
  %v3947 = vmax.f32 %v3939, 0.0
  %v3948 = vmax.f32 %v3944, 0.0
  %v3949 = vlaneseq
  %v3950 = vshrl.u32 %v3949, 7
  %v3951 = vsub.s32 3, %v3950
  %v3952 = vrot.slane %v2074, %v3951
  %v3954 = vsel %vm1927, %v3947, 0
  %v3957 = vsel %vm1927, %v3948, 0
  %3959 = vmatprep.subr.mxu0 0.0
  %3960 = vmatpush1.msra.mxu0 0.0
  %3961 = vmatprep.subr.mxu0 0.0
  %3962 = vmatpush1.msra.mxu0 0.0
  %3963 = vmatprep.subr.mxu0 0.0
  %3964 = vmatpush1.msra.mxu0 0.0
  %3965 = vmatprep.subr.mxu0 0.0
  %3966 = vmatpush1.msra.mxu0 0.0
  %3967 = vmatprep.subr.mxu0 0.0
  %3968 = vmatpush1.msra.mxu0 0.0
  %3969 = vmatprep.subr.mxu0 0.0
  %3970 = vmatpush1.msra.mxu0 0.0
  %3971 = vmatprep.subr.mxu0 0.0
  %3972 = vmatpush1.msra.mxu0 0.0
  %3973 = vmatprep.subr.mxu0 0.0
  %3974 = vmatpush1.msra.mxu0 0.0
  %3975 = vmatprep.subr.mxu0 0.0
  %3976 = vmatpush1.msra.mxu0 %v2072
  %3977 = vmatprep.subr.mxu0 0.0
  %3978 = vmatpush1.msra.mxu0 %v2071
  %3979 = vmatprep.subr.mxu0 0.0
  %3980 = vmatpush1.msra.mxu0 %v2070
  %3981 = vmatprep.subr.mxu0 0.0
  %3982 = vmatpush1.msra.mxu0 %v2069
  %3983 = vmatprep.subr.mxu0 0.0
  %3984 = vmatpush1.msra.mxu0 %v2068
  %3985 = vmatprep.subr.mxu0 0.0
  %3986 = vmatpush1.msra.mxu0 %v2067
  %3987 = vmatprep.subr.mxu0 0.0
  %3988 = vmatpush1.msra.mxu0 %v2066
  %3989 = vmatprep.subr.mxu0 0.0
  %3990 = vmatpush1.msra.mxu0 %v2065
  %3991 = vmatprep.subr.mxu0 0.0
  %3992 = vmatpush2.msra.mxu0 0.0
  %3993 = vmatprep.subr.mxu0 0.0
  %3994 = vmatpush2.msra.mxu0 0.0
  %3995 = vmatprep.subr.mxu0 0.0
  %3996 = vmatpush2.msra.mxu0 0.0
  %3997 = vmatprep.subr.mxu0 0.0
  %3998 = vmatpush2.msra.mxu0 0.0
  %3999 = vmatprep.subr.mxu0 0.0
  %4000 = vmatpush2.msra.mxu0 0.0
  %4001 = vmatprep.subr.mxu0 0.0
  %4002 = vmatpush2.msra.mxu0 0.0
  %4003 = vmatprep.subr.mxu0 0.0
  %4004 = vmatpush2.msra.mxu0 0.0
  %4005 = vmatprep.subr.mxu0 0.0
  %4006 = vmatpush2.msra.mxu0 0.0
  %4007 = vmatprep.subr.mxu0 0.0
  %4008 = vmatpush2.msra.mxu0 0.0
  %4009 = vmatprep.subr.mxu0 0.0
  %4010 = vmatpush2.msra.mxu0 0.0
  %4011 = vmatprep.subr.mxu0 0.0
  %4012 = vmatpush2.msra.mxu0 0.0
  %4013 = vmatprep.subr.mxu0 0.0
  %4014 = vmatpush2.msra.mxu0 0.0
  %4015 = vmatprep.subr.mxu0 0.0
  %4016 = vmatpush2.msra.mxu0 0.0
  %4017 = vmatprep.subr.mxu0 0.0
  %4018 = vmatpush2.msra.mxu0 0.0
  %4019 = vmatprep.subr.mxu0 0.0
  %4020 = vmatpush2.msra.mxu0 0.0
  %4021 = vmatprep.subr.mxu0 0.0
  %4022 = vmatpush2.msra.mxu0 0.0
  %4023 = vmatprep.mubr.f32.mxu0 0.0
  %4024 = vmatmul.mubr.f32.gmra.mxu0 %v3954
  %v4025 = vpop.f32.mrf.mxu0
  %v4026 = vadd.f32 %v3952, %v4025
  %v4027 = vpop.f32.mrf.mxu0
  %4028 = vmatprep.mubr.f32.mxu0 0.0
  %4029 = vmatmul.mubr.f32.gmra.mxu0 %v3957
  %v4030 = vpop.f32.mrf.mxu0
  %v4031 = vadd.f32 %v3952, %v4030
  %v4032 = vpop.f32.mrf.mxu0
  %4033 = vdwg.mxu0
  %v4034 = vadd.f32 %v3860, %v4026
  %v4035 = vadd.f32 %v3861, %v4031
  %v4036 = vsel %vm50, %v4034, 0.0
  %4037 = vadd.xlane.f32.xlu0 %v4036
  %v4038 = vpop.xlane.xlu0 %4037
  %v4039 = vsel %vm50, %v4035, 0.0
  %4040 = vadd.xlane.f32.xlu0 %v4039
  %v4041 = vpop.xlane.xlu0 %4040
  %v4042 = vmul.f32 %v4038, %v1803
  %v4043 = vmul.f32 %v4041, %v1803
  %v4044 = vsub.f32 %v4034, %v4042
  %v4045 = vsub.f32 %v4035, %v4043
  %v4046 = vmul.f32 %v4044, %v4044
  %v4047 = vmul.f32 %v4045, %v4045
  %v4048 = vsel %vm50, %v4046, 0.0
  %4049 = vadd.xlane.f32.xlu0 %v4048
  %v4050 = vpop.xlane.xlu0 %4049
  %v4051 = vsel %vm50, %v4047, 0.0
  %4052 = vadd.xlane.f32.xlu0 %v4051
  %v4053 = vpop.xlane.xlu0 %4052
  %v4054 = vmul.f32 %v4050, %v1803
  %v4055 = vmul.f32 %v4053, %v1803
  %v4056 = vadd.f32 %v4054, 1e-05
  %v4057 = vadd.f32 %v4055, 1e-05
  %v4058 = vrsqrt.pop %v4056
  %v4059 = vrsqrt.pop %v4057
  %v4060 = vmul.f32 %v4044, %v4058
  %v4061 = vmul.f32 %v4045, %v4059
  %v4062 = vlaneseq
  %v4063 = vshrl.u32 %v4062, 7
  %v4064 = vsub.s32 6, %v4063
  %v4065 = vrot.slane %v2074, %v4064
  %v4066 = vmul.f32 %v4060, %v4065
  %v4067 = vmul.f32 %v4061, %v4065
  %v4068 = vlaneseq
  %v4069 = vshrl.u32 %v4068, 7
  %v4070 = vsub.s32 7, %v4069
  %v4071 = vrot.slane %v2074, %v4070
  %v4072 = vadd.f32 %v4066, %v4071
  %v4073 = vadd.f32 %v4067, %v4071
  %4074 = vst.msk [vmem:[%s6] sm:$0xff] %vm50, %v4072
  %4075 = vst.msk [vmem:[%s6 + $0x8] sm:$0xff] %vm50, %v4073
  // Predicated region
  $region26: #{decoder_only_transformer.1} parent=0 // pred_check
    _
  $region27: #{decoder_only_transformer.1} parent=0 // pred_check_branch
    %4077 = sbr.rel (0) target = $region29
  $region28: #{decoder_only_transformer.1} parent=0 // pred_region
    _
  $region29: #{decoder_only_transformer.1} parent=0 // pred_fallthru
    _
  // Predicated region
  $region30: #{decoder_only_transformer.1} parent=0 // pred_check
    _
  $region31: #{decoder_only_transformer.1} parent=0 // pred_check_branch
    %4079 = sbr.rel (0) target = $region33
  $region32: #{decoder_only_transformer.1} parent=0 // pred_region
    _
  $region33: #{decoder_only_transformer.1} parent=0 // pred_fallthru
    _

</llo_original>
